<compile_context>
chip_gen: v7x
topology: tpu7x:2x2x1
jax: 0.10.0
libtpu: 0.0.40
codegen_flags: <defaults>
</compile_context>

<pallas_src>
import functools

import jax
import jax.numpy as jnp
from jax.experimental import pallas as pl
from jax.experimental.pallas import tpu as pltpu

LANE = 128
SUBLANE = 8


def _round_up(x, m):
    return (x + m - 1) // m * m


# ----------------------------- Pallas kernel --------------------------------
def _bottleneck_kernel(x_top_ref, x_mid_ref, x_bot_ref,
                       w1_ref, w2_ref, w3_ref,
                       b1_ref, b2_ref, b3_ref,
                       o_ref, pad_ref, *, TH, WP, WREAL):
    Wd = w2_ref.shape[1]          # (padded) bottleneck width
    Cp = w3_ref.shape[1]          # (padded) output channels == input channels

    h = pl.program_id(1)
    is_first = h == 0
    is_last = h == pl.num_programs(1) - 1

    w1 = w1_ref[...]              # BN scale already folded into the weight columns
    b1 = b1_ref[...]

    def conv1_rows(rows2d):
        y = jnp.dot(rows2d.astype(jnp.bfloat16), w1,
                    preferred_element_type=jnp.float32)
        return jnp.maximum(y + b1, 0.0).astype(jnp.bfloat16)

    # ---- conv1 (1x1) + bn1 + relu on the TH center rows, written straight into
    # the padded-activation scratch (bf16).
    y1_mid = conv1_rows(x_mid_ref[...].reshape(TH * WP, Cp))
    pad_ref[1:TH + 1, 1:WP + 1, :] = y1_mid.reshape(TH, WP, Wd)

    # ---- 1-row halos: conv1 of the neighbouring row, or exact zeros at the image
    # boundary (conv2's padding=1 zero-pads the *activation*).
    @pl.when(jnp.logical_not(is_first))
    def _():
        top = conv1_rows(x_top_ref[...].reshape(WP, Cp))
        pad_ref[0:1, 1:WP + 1, :] = top.reshape(1, WP, Wd)

    @pl.when(is_first)
    def _():
        pad_ref[0:1, :, :] = jnp.zeros((1, WP + 2, Wd), jnp.bfloat16)

    @pl.when(jnp.logical_not(is_last))
    def _():
        bot = conv1_rows(x_bot_ref[...].reshape(WP, Cp))
        pad_ref[TH + 1:TH + 2, 1:WP + 1, :] = bot.reshape(1, WP, Wd)

    @pl.when(is_last)
    def _():
        pad_ref[TH + 1:TH + 2, :, :] = jnp.zeros((1, WP + 2, Wd), jnp.bfloat16)

    # ---- 1-px column halo (conv2 padding=1) plus any spatial-W padding columns.
    pad_ref[:, 0:1, :] = jnp.zeros((TH + 2, 1, Wd), jnp.bfloat16)
    pad_ref[:, WREAL + 1:WP + 2, :] = jnp.zeros(
        (TH + 2, WP - WREAL + 1, Wd), jnp.bfloat16)

    # ---- conv2 (3x3, groups=1, dilation=1) as ONE im2col matmul on the MXU.
    taps = [pad_ref[dy:dy + TH, dx:dx + WP, :]
            for dy in range(3) for dx in range(3)]                  # 9 x (TH, WP, Wd) bf16
    slab = jnp.concatenate(taps, axis=-1).reshape(TH * WP, 9 * Wd)
    y2 = jnp.dot(slab, w2_ref[...], preferred_element_type=jnp.float32)
    y2 = jnp.maximum(y2 + b2_ref[...], 0.0)

    # ---- conv3 (1x1) + bn3 + identity residual + relu.
    y3 = jnp.dot(y2.astype(jnp.bfloat16), w3_ref[...],
                 preferred_element_type=jnp.float32) + b3_ref[...]
    # Re-read the input tile from VMEM right before the add (short live range);
    # identity path only (stride=1, downsample=None), kept f32 for an exact add.
    resid = x_mid_ref[...].reshape(TH * WP, Cp)
    out = jnp.maximum(y3 + resid, 0.0)
    o_ref[...] = out.reshape(TH, WP, Cp).astype(o_ref.dtype)


# --------------------------- Tile-size selection ------------------------------
def _pick_tile_h(H, Wp, Cp, Wd, budget_bytes=28 << 20):
    """Largest divisor of H whose per-step VMEM footprint fits the budget."""
    def footprint(th):
        x_tiles = 2 * th * Wp * Cp * 4 + 4 * Wp * Cp * 4      # mid (dbuf) + 2 halo rows (dbuf)
        out_tile = 2 * th * Wp * Cp * 4                        # f32 output tile (dbuf)
        pad = (th + 2) * (Wp + 2) * Wd * 2                     # bf16 scratch
        slab = th * Wp * 9 * Wd * 2                            # bf16 im2col slab
        inter = th * Wp * (Wd + Wd + Cp) * 4                   # f32 y1/y2/y3 live values
        weights = 2 * 2 * (Cp * Wd + 9 * Wd * Wd + Wd * Cp)    # bf16 weights (dbuf)
        return x_tiles + out_tile + pad + slab + inter + weights

    best = 1
    for d in range(1, H + 1):
        if H % d == 0 and footprint(d) <= budget_bytes:
            best = d
    return best


# ------------------------------- Wrapper -------------------------------------
def bottleneck_forward(x_nchw, p, eps=1e-5, tile_h=None):
    """x_nchw: (N, C, H, W) float32, same layout as the PyTorch module."""

    def fold_bn(g, b, m, v):
        s = g / jnp.sqrt(v + eps)
        return s, b - m * s

    s1, b1 = fold_bn(p['bn1_g'], p['bn1_b'], p['bn1_m'], p['bn1_v'])
    s2, b2 = fold_bn(p['bn2_g'], p['bn2_b'], p['bn2_m'], p['bn2_v'])
    s3, b3 = fold_bn(p['bn3_g'], p['bn3_b'], p['bn3_m'], p['bn3_v'])

    # PyTorch OIHW conv weights -> matmul layouts, with BN scale folded in (f32),
    # then cast to bf16 for the MXU.
    w1 = jnp.transpose(p['conv1_w'][:, :, 0, 0]) * s1[None, :]          # (Cin, width)
    w2 = jnp.transpose(p['conv2_w'], (2, 3, 1, 0)) * s2[None, None, None, :]  # (ky,kx,cin,cout)
    w3 = jnp.transpose(p['conv3_w'][:, :, 0, 0]) * s3[None, :]          # (width, Cout)

    Cin, width = w1.shape
    Cout = w3.shape[1]
    assert Cin == Cout, "identity add requires inplanes == planes * expansion"

    # Lane-dense channel dims: zero-pad to multiples of 128 (exact through
    # conv/BN/relu/residual because the padded weight rows/cols are zero).
    Cp = _round_up(Cin, LANE)
    Wd = _round_up(width, LANE)

    w1p = jnp.zeros((Cp, Wd), jnp.bfloat16).at[:Cin, :width].set(w1.astype(jnp.bfloat16))
    w2p = jnp.zeros((3, 3, Wd, Wd), jnp.bfloat16).at[:, :, :width, :width].set(
        w2.astype(jnp.bfloat16))
    w2p = w2p.reshape(9 * Wd, Wd)                          # pre-stacked im2col weight
    w3p = jnp.zeros((Wd, Cp), jnp.bfloat16).at[:width, :Cout].set(w3.astype(jnp.bfloat16))

    def padvec(v, n):
        return jnp.zeros((1, n), jnp.float32).at[0, :v.shape[0]].set(v.astype(jnp.float32))

    b1p, b2p, b3p = padvec(b1, Wd), padvec(b2, Wd), padvec(b3, Cp)

    # NCHW -> NHWC so channels sit on the 128-lane axis; pad channels and pad the
    # spatial width to a multiple of 8 (sublane-friendly reshapes).
    x = jnp.transpose(x_nchw, (0, 2, 3, 1))
    N, H, W, _ = x.shape
    Wp = _round_up(W, SUBLANE)
    x = jnp.pad(x, ((0, 0), (0, 0), (0, Wp - W), (0, Cp - Cin)))

    if tile_h is not None and H % tile_h == 0:
        TH = tile_h
    else:
        TH = _pick_tile_h(H, Wp, Cp, Wd)
    nH = H // TH

    kernel = functools.partial(_bottleneck_kernel, TH=TH, WP=Wp, WREAL=W)

    def resident(block_shape):     # weights / BN biases stay resident in VMEM
        return pl.BlockSpec(block_shape, lambda n, h: (0, 0))

    x_mid_spec = pl.BlockSpec((None, TH, Wp, Cp), lambda n, h: (n, h, 0, 0))
    x_top_spec = pl.BlockSpec((None, 1, Wp, Cp),
                              lambda n, h: (n, jnp.maximum(h * TH - 1, 0), 0, 0))
    x_bot_spec = pl.BlockSpec((None, 1, Wp, Cp),
                              lambda n, h: (n, jnp.minimum(h * TH + TH, H - 1), 0, 0))

    flops = 2 * N * H * Wp * (Cp * Wd + 9 * Wd * Wd + Wd * Cp)
    bytes_accessed = (N * nH * (TH + 2) * Wp * Cp * 4        # x center tile + 2 halo rows per step
                      + N * H * Wp * Cp * 4                  # f32 output write
                      + 2 * (w1p.size + w2p.size + w3p.size)  # bf16 weights (resident)
                      + 4 * (b1p.size + b2p.size + b3p.size))

    out = pl.pallas_call(
        kernel,
        out_shape=jax.ShapeDtypeStruct((N, H, Wp, Cp), jnp.float32),
        grid=(N, nH),
        in_specs=[x_top_spec, x_mid_spec, x_bot_spec,
                  resident((Cp, Wd)), resident((9 * Wd, Wd)), resident((Wd, Cp)),
                  resident((1, Wd)), resident((1, Wd)), resident((1, Cp))],
        out_specs=pl.BlockSpec((None, TH, Wp, Cp), lambda n, h: (n, h, 0, 0)),
        scratch_shapes=[pltpu.VMEM((TH + 2, Wp + 2, Wd), jnp.bfloat16)],
        compiler_params=pltpu.CompilerParams(
            dimension_semantics=("parallel", "parallel"),
            # Safe on v7x (64 MiB physical per TC), comfortable on v5e/v6e (128 MiB);
            # the tile picker budgets ~28 MiB per step.
            vmem_limit_bytes=48 * 1024 * 1024),
        cost_estimate=pl.CostEstimate(flops=flops, transcendentals=0,
                                      bytes_accessed=bytes_accessed),
    )(x, x, x, w1p, w2p, w3p, b1p, b2p, b3p)

    out = out[:, :, :W, :Cout]                             # drop spatial/channel padding
    return jnp.transpose(out, (0, 3, 1, 2))                # back to NCHW


# --------------------------- Deterministic params ----------------------------
def init_params(key, inplanes, planes, base_width=64, groups=1):
    expansion = 4
    width = int(planes * (base_width / 64.0)) * groups
    cout = planes * expansion
    ks = jax.random.split(key, 15)
    p = {
        'conv1_w': 0.1 * jax.random.normal(ks[0], (width, inplanes, 1, 1), jnp.float32),
        'conv2_w': 0.1 * jax.random.normal(ks[1], (width, width, 3, 3), jnp.float32),
        'conv3_w': 0.1 * jax.random.normal(ks[2], (cout, width, 1, 1), jnp.float32),
    }
    for i, (name, c) in enumerate([('bn1', width), ('bn2', width), ('bn3', cout)]):
        k0, k1, k2, k3 = ks[3 + 4 * i: 7 + 4 * i]
        p[f'{name}_g'] = 1.0 + 0.1 * jax.random.normal(k0, (c,), jnp.float32)
        p[f'{name}_b'] = 0.1 * jax.random.normal(k1, (c,), jnp.float32)
        p[f'{name}_m'] = 0.05 * jax.random.normal(k2, (c,), jnp.float32)
        p[f'{name}_v'] = 1.0 + 0.1 * jnp.abs(jax.random.normal(k3, (c,), jnp.float32))
    return p


# ------------------------------ JAX reference ---------------------------------
def bottleneck_reference(x, p, eps=1e-5):
    HI = jax.lax.Precision.HIGHEST

    def conv(x, w, pad=0):
        return jax.lax.conv_general_dilated(
            x, w, (1, 1), [(pad, pad), (pad, pad)],
            dimension_numbers=('NCHW', 'OIHW', 'NCHW'), precision=HI)

    def bn(x, g, b, m, v):
        s = g / jnp.sqrt(v + eps)
        return x * s[None, :, None, None] + (b - m * s)[None, :, None, None]

    out = jax.nn.relu(bn(conv(x, p['conv1_w']), p['bn1_g'], p['bn1_b'], p['bn1_m'], p['bn1_v']))
    out = jax.nn.relu(bn(conv(out, p['conv2_w'], pad=1), p['bn2_g'], p['bn2_b'], p['bn2_m'], p['bn2_v']))
    out = bn(conv(out, p['conv3_w']), p['bn3_g'], p['bn3_b'], p['bn3_m'], p['bn3_v'])
    return jax.nn.relu(out + x)


# ---------------------------------- Main --------------------------------------
if __name__ == "__main__":
    planes = 8
    inplanes = planes * 4          # identity add valid (no downsample)
    N, H, W = 2, 16, 16

    key = jax.random.PRNGKey(0)
    kx, kp = jax.random.split(key)
    x = jax.random.normal(kx, (N, inplanes, H, W), jnp.float32)   # NCHW input
    params = init_params(kp, inplanes, planes)

    out = jax.block_until_ready(bottleneck_forward(x, params))
    ref = jax.block_until_ready(bottleneck_reference(x, params))

    assert out.shape == (N, planes * 4, H, W)
    # bf16-in / f32-accumulate matmul path vs f32 HIGHEST reference.
    max_diff = float(jnp.max(jnp.abs(out - ref)))
    assert jnp.allclose(out, ref, atol=2e-2, rtol=2e-2), max_diff

    print("KERNEL_OK")
</pallas_src>

<mosaic_0001>
module attributes {stable_mosaic.version = 11 : i64} {
  func.func @_bottleneck_kernel(%arg0: i32, %arg1: i32, %arg2: memref<1x1x16x128xf32, #tpu.memory_space<vmem>>, %arg3: memref<1x16x16x128xf32, #tpu.memory_space<vmem>>, %arg4: memref<1x1x16x128xf32, #tpu.memory_space<vmem>>, %arg5: memref<128x128xbf16, #tpu.memory_space<vmem>>, %arg6: memref<1152x128xbf16, #tpu.memory_space<vmem>>, %arg7: memref<128x128xbf16, #tpu.memory_space<vmem>>, %arg8: memref<1x128xf32, #tpu.memory_space<vmem>>, %arg9: memref<1x128xf32, #tpu.memory_space<vmem>>, %arg10: memref<1x128xf32, #tpu.memory_space<vmem>>, %arg11: memref<1x16x16x128xf32, #tpu.memory_space<vmem>>, %arg12: memref<18x18x128xbf16, #tpu.memory_space<vmem>>) attributes {dimension_semantics = [#tpu.dimension_semantics<parallel>, #tpu.dimension_semantics<parallel>], iteration_bounds = array<i64: 2, 1>, scalar_prefetch = 0 : i64, scratch_operands = 1 : i64, tpu.core_type = #tpu.core_type<tc>, window_params = [{transform_indices = @transform_0, window_bounds = array<i64: 1, 1, 16, 128>}, {transform_indices = @transform_1, window_bounds = array<i64: 1, 16, 16, 128>}, {transform_indices = @transform_2, window_bounds = array<i64: 1, 1, 16, 128>}, {pipeline_mode = #tpu.pipeline_mode<synchronous>, transform_indices = @transform_3, window_bounds = array<i64: 128, 128>}, {pipeline_mode = #tpu.pipeline_mode<synchronous>, transform_indices = @transform_4, window_bounds = array<i64: 1152, 128>}, {pipeline_mode = #tpu.pipeline_mode<synchronous>, transform_indices = @transform_5, window_bounds = array<i64: 128, 128>}, {pipeline_mode = #tpu.pipeline_mode<synchronous>, transform_indices = @transform_6, window_bounds = array<i64: 1, 128>}, {pipeline_mode = #tpu.pipeline_mode<synchronous>, transform_indices = @transform_7, window_bounds = array<i64: 1, 128>}, {pipeline_mode = #tpu.pipeline_mode<synchronous>, transform_indices = @transform_8, window_bounds = array<i64: 1, 128>}, {transform_indices = @transform_9, window_bounds = array<i64: 1, 16, 16, 128>}]} {
    %c0_i32 = arith.constant 0 : i32
    %0 = arith.cmpi eq, %arg1, %c0_i32 : i32
    %c0_i32_0 = arith.constant 0 : i32
    %1 = arith.cmpi eq, %arg1, %c0_i32_0 : i32
    %c0 = arith.constant 0 : index
    %c0_1 = arith.constant 0 : index
    %2 = vector.load %arg5[%c0, %c0_1] : memref<128x128xbf16, #tpu.memory_space<vmem>>, vector<128x128xbf16>
    %c0_2 = arith.constant 0 : index
    %c0_3 = arith.constant 0 : index
    %3 = vector.load %arg8[%c0_2, %c0_3] : memref<1x128xf32, #tpu.memory_space<vmem>>, vector<1x128xf32>
    %c0_4 = arith.constant 0 : index
    %c0_5 = arith.constant 0 : index
    %c0_6 = arith.constant 0 : index
    %c0_7 = arith.constant 0 : index
    %4 = vector.load %arg3[%c0_4, %c0_5, %c0_6, %c0_7] : memref<1x16x16x128xf32, #tpu.memory_space<vmem>>, vector<1x16x16x128xf32>
    %5 = vector.shape_cast %4 : vector<1x16x16x128xf32> to vector<16x16x128xf32>
    %6 = vector.shape_cast %5 : vector<16x16x128xf32> to vector<256x128xf32>
    %7 = arith.truncf %6 : vector<256x128xf32> to vector<256x128xbf16>
    %cst = arith.constant dense<0.000000e+00> : vector<256x128xf32>
    %8 = tpu.matmul %7, %2, %cst {dimension_numbers = #tpu.dot_dimension_numbers<[1], [0], [0], [1], [0, 0, 1, 1], [], []>} : vector<256x128xbf16>, vector<128x128xbf16>, vector<256x128xf32> -> vector<256x128xf32>
    %9 = vector.broadcast %3 : vector<1x128xf32> to vector<256x128xf32>
    %10 = arith.addf %8, %9 : vector<256x128xf32>
    %cst_8 = arith.constant 0.000000e+00 : f32
    %11 = vector.broadcast %cst_8 : f32 to vector<256x128xf32>
    %12 = arith.maximumf %10, %11 : vector<256x128xf32>
    %13 = arith.truncf %12 : vector<256x128xf32> to vector<256x128xbf16>
    %14 = vector.shape_cast %13 : vector<256x128xbf16> to vector<16x16x128xbf16>
    %c1 = arith.constant 1 : index
    %c1_9 = arith.constant 1 : index
    %c0_10 = arith.constant 0 : index
    %15 = vector.load %arg12[%c1, %c1_9, %c0_10] : memref<18x18x128xbf16, #tpu.memory_space<vmem>>, vector<16x16x128xbf16>
    tpu.vector_store %arg12[%c1, %c1_9, %c0_10], %14 {strides = array<i32>} : memref<18x18x128xbf16, #tpu.memory_space<vmem>>, vector<16x16x128xbf16>,
    %true = arith.constant true
    %16 = arith.xori %0, %true : i1
    %17 = arith.extui %16 : i1 to i32
    %c0_i32_11 = arith.constant 0 : i32
    %18 = arith.cmpi ne, %17, %c0_i32_11 : i32
    scf.if %18 {
      %c0_69 = arith.constant 0 : index
      %c0_70 = arith.constant 0 : index
      %c0_71 = arith.constant 0 : index
      %c0_72 = arith.constant 0 : index
      %64 = vector.load %arg2[%c0_69, %c0_70, %c0_71, %c0_72] : memref<1x1x16x128xf32, #tpu.memory_space<vmem>>, vector<1x1x16x128xf32>
      %65 = vector.shape_cast %64 : vector<1x1x16x128xf32> to vector<1x16x128xf32>
      %66 = vector.shape_cast %65 : vector<1x16x128xf32> to vector<16x128xf32>
      %67 = arith.truncf %66 : vector<16x128xf32> to vector<16x128xbf16>
      %cst_73 = arith.constant dense<0.000000e+00> : vector<16x128xf32>
      %68 = tpu.matmul %67, %2, %cst_73 {dimension_numbers = #tpu.dot_dimension_numbers<[1], [0], [0], [1], [0, 0, 1, 1], [], []>} : vector<16x128xbf16>, vector<128x128xbf16>, vector<16x128xf32> -> vector<16x128xf32>
      %69 = vector.broadcast %3 : vector<1x128xf32> to vector<16x128xf32>
      %70 = arith.addf %68, %69 : vector<16x128xf32>
      %cst_74 = arith.constant 0.000000e+00 : f32
      %71 = vector.broadcast %cst_74 : f32 to vector<16x128xf32>
      %72 = arith.maximumf %70, %71 : vector<16x128xf32>
      %73 = arith.truncf %72 : vector<16x128xf32> to vector<16x128xbf16>
      %74 = vector.shape_cast %73 : vector<16x128xbf16> to vector<1x16x128xbf16>
      %c0_75 = arith.constant 0 : index
      %c1_76 = arith.constant 1 : index
      %c0_77 = arith.constant 0 : index
      %75 = vector.load %arg12[%c0_75, %c1_76, %c0_77] : memref<18x18x128xbf16, #tpu.memory_space<vmem>>, vector<1x16x128xbf16>
      tpu.vector_store %arg12[%c0_75, %c1_76, %c0_77], %74 {strides = array<i32>} : memref<18x18x128xbf16, #tpu.memory_space<vmem>>, vector<1x16x128xbf16>,
    } else {
    }
    %19 = arith.extui %0 : i1 to i32
    %c0_i32_12 = arith.constant 0 : i32
    %20 = arith.cmpi ne, %19, %c0_i32_12 : i32
    scf.if %20 {
      %cst_69 = arith.constant 0.000000e+00 : bf16
      %64 = vector.broadcast %cst_69 : bf16 to vector<1x18x128xbf16>
      %c0_70 = arith.constant 0 : index
      %c0_71 = arith.constant 0 : index
      %c0_72 = arith.constant 0 : index
      %65 = vector.load %arg12[%c0_70, %c0_71, %c0_72] : memref<18x18x128xbf16, #tpu.memory_space<vmem>>, vector<1x18x128xbf16>
      tpu.vector_store %arg12[%c0_70, %c0_71, %c0_72], %64 {strides = array<i32>} : memref<18x18x128xbf16, #tpu.memory_space<vmem>>, vector<1x18x128xbf16>,
    } else {
    }
    %true_13 = arith.constant true
    %21 = arith.xori %1, %true_13 : i1
    %22 = arith.extui %21 : i1 to i32
    %c0_i32_14 = arith.constant 0 : i32
    %23 = arith.cmpi ne, %22, %c0_i32_14 : i32
    scf.if %23 {
      %c0_69 = arith.constant 0 : index
      %c0_70 = arith.constant 0 : index
      %c0_71 = arith.constant 0 : index
      %c0_72 = arith.constant 0 : index
      %64 = vector.load %arg4[%c0_69, %c0_70, %c0_71, %c0_72] : memref<1x1x16x128xf32, #tpu.memory_space<vmem>>, vector<1x1x16x128xf32>
      %65 = vector.shape_cast %64 : vector<1x1x16x128xf32> to vector<1x16x128xf32>
      %66 = vector.shape_cast %65 : vector<1x16x128xf32> to vector<16x128xf32>
      %67 = arith.truncf %66 : vector<16x128xf32> to vector<16x128xbf16>
      %cst_73 = arith.constant dense<0.000000e+00> : vector<16x128xf32>
      %68 = tpu.matmul %67, %2, %cst_73 {dimension_numbers = #tpu.dot_dimension_numbers<[1], [0], [0], [1], [0, 0, 1, 1], [], []>} : vector<16x128xbf16>, vector<128x128xbf16>, vector<16x128xf32> -> vector<16x128xf32>
      %69 = vector.broadcast %3 : vector<1x128xf32> to vector<16x128xf32>
      %70 = arith.addf %68, %69 : vector<16x128xf32>
      %cst_74 = arith.constant 0.000000e+00 : f32
      %71 = vector.broadcast %cst_74 : f32 to vector<16x128xf32>
      %72 = arith.maximumf %70, %71 : vector<16x128xf32>
      %73 = arith.truncf %72 : vector<16x128xf32> to vector<16x128xbf16>
      %74 = vector.shape_cast %73 : vector<16x128xbf16> to vector<1x16x128xbf16>
      %c17_75 = arith.constant 17 : index
      %c1_76 = arith.constant 1 : index
      %c0_77 = arith.constant 0 : index
      %75 = vector.load %arg12[%c17_75, %c1_76, %c0_77] : memref<18x18x128xbf16, #tpu.memory_space<vmem>>, vector<1x16x128xbf16>
      tpu.vector_store %arg12[%c17_75, %c1_76, %c0_77], %74 {strides = array<i32>} : memref<18x18x128xbf16, #tpu.memory_space<vmem>>, vector<1x16x128xbf16>,
    } else {
    }
    %24 = arith.extui %1 : i1 to i32
    %c0_i32_15 = arith.constant 0 : i32
    %25 = arith.cmpi ne, %24, %c0_i32_15 : i32
    scf.if %25 {
      %cst_69 = arith.constant 0.000000e+00 : bf16
      %64 = vector.broadcast %cst_69 : bf16 to vector<1x18x128xbf16>
      %c17_70 = arith.constant 17 : index
      %c0_71 = arith.constant 0 : index
      %c0_72 = arith.constant 0 : index
      %65 = vector.load %arg12[%c17_70, %c0_71, %c0_72] : memref<18x18x128xbf16, #tpu.memory_space<vmem>>, vector<1x18x128xbf16>
      tpu.vector_store %arg12[%c17_70, %c0_71, %c0_72], %64 {strides = array<i32>} : memref<18x18x128xbf16, #tpu.memory_space<vmem>>, vector<1x18x128xbf16>,
    } else {
    }
    %cst_16 = arith.constant 0.000000e+00 : bf16
    %26 = vector.broadcast %cst_16 : bf16 to vector<18x1x128xbf16>
    %c0_17 = arith.constant 0 : index
    %c0_18 = arith.constant 0 : index
    %c0_19 = arith.constant 0 : index
    %27 = vector.load %arg12[%c0_17, %c0_18, %c0_19] : memref<18x18x128xbf16, #tpu.memory_space<vmem>>, vector<18x1x128xbf16>
    tpu.vector_store %arg12[%c0_17, %c0_18, %c0_19], %26 {strides = array<i32>} : memref<18x18x128xbf16, #tpu.memory_space<vmem>>, vector<18x1x128xbf16>,
    %cst_20 = arith.constant 0.000000e+00 : bf16
    %28 = vector.broadcast %cst_20 : bf16 to vector<18x1x128xbf16>
    %c0_21 = arith.constant 0 : index
    %c17 = arith.constant 17 : index
    %c0_22 = arith.constant 0 : index
    %29 = vector.load %arg12[%c0_21, %c17, %c0_22] : memref<18x18x128xbf16, #tpu.memory_space<vmem>>, vector<18x1x128xbf16>
    tpu.vector_store %arg12[%c0_21, %c17, %c0_22], %28 {strides = array<i32>} : memref<18x18x128xbf16, #tpu.memory_space<vmem>>, vector<18x1x128xbf16>,
    %c0_23 = arith.constant 0 : index
    %c0_24 = arith.constant 0 : index
    %c0_25 = arith.constant 0 : index
    %30 = vector.load %arg12[%c0_23, %c0_24, %c0_25] : memref<18x18x128xbf16, #tpu.memory_space<vmem>>, vector<16x16x128xbf16>
    %c0_26 = arith.constant 0 : index
    %c1_27 = arith.constant 1 : index
    %c0_28 = arith.constant 0 : index
    %31 = vector.load %arg12[%c0_26, %c1_27, %c0_28] : memref<18x18x128xbf16, #tpu.memory_space<vmem>>, vector<16x16x128xbf16>
    %c0_29 = arith.constant 0 : index
    %c2 = arith.constant 2 : index
    %c0_30 = arith.constant 0 : index
    %32 = vector.load %arg12[%c0_29, %c2, %c0_30] : memref<18x18x128xbf16, #tpu.memory_space<vmem>>, vector<16x16x128xbf16>
    %c1_31 = arith.constant 1 : index
    %c0_32 = arith.constant 0 : index
    %c0_33 = arith.constant 0 : index
    %33 = vector.load %arg12[%c1_31, %c0_32, %c0_33] : memref<18x18x128xbf16, #tpu.memory_space<vmem>>, vector<16x16x128xbf16>
    %c1_34 = arith.constant 1 : index
    %c1_35 = arith.constant 1 : index
    %c0_36 = arith.constant 0 : index
    %34 = vector.load %arg12[%c1_34, %c1_35, %c0_36] : memref<18x18x128xbf16, #tpu.memory_space<vmem>>, vector<16x16x128xbf16>
    %c1_37 = arith.constant 1 : index
    %c2_38 = arith.constant 2 : index
    %c0_39 = arith.constant 0 : index
    %35 = vector.load %arg12[%c1_37, %c2_38, %c0_39] : memref<18x18x128xbf16, #tpu.memory_space<vmem>>, vector<16x16x128xbf16>
    %c2_40 = arith.constant 2 : index
    %c0_41 = arith.constant 0 : index
    %c0_42 = arith.constant 0 : index
    %36 = vector.load %arg12[%c2_40, %c0_41, %c0_42] : memref<18x18x128xbf16, #tpu.memory_space<vmem>>, vector<16x16x128xbf16>
    %c2_43 = arith.constant 2 : index
    %c1_44 = arith.constant 1 : index
    %c0_45 = arith.constant 0 : index
    %37 = vector.load %arg12[%c2_43, %c1_44, %c0_45] : memref<18x18x128xbf16, #tpu.memory_space<vmem>>, vector<16x16x128xbf16>
    %c2_46 = arith.constant 2 : index
    %c2_47 = arith.constant 2 : index
    %c0_48 = arith.constant 0 : index
    %38 = vector.load %arg12[%c2_46, %c2_47, %c0_48] : memref<18x18x128xbf16, #tpu.memory_space<vmem>>, vector<16x16x128xbf16>
    %39 = tpu.concatenate %30, %31, %32, %33, %34, %35, %36, %37, %38 in 2 : vector<16x16x128xbf16>, vector<16x16x128xbf16>, vector<16x16x128xbf16>, vector<16x16x128xbf16>, vector<16x16x128xbf16>, vector<16x16x128xbf16>, vector<16x16x128xbf16>, vector<16x16x128xbf16>, vector<16x16x128xbf16> -> vector<16x16x1152xbf16>
    %40 = vector.shape_cast %39 : vector<16x16x1152xbf16> to vector<256x1152xbf16>
    %c0_49 = arith.constant 0 : index
    %c0_50 = arith.constant 0 : index
    %41 = vector.load %arg6[%c0_49, %c0_50] : memref<1152x128xbf16, #tpu.memory_space<vmem>>, vector<1152x128xbf16>
    %cst_51 = arith.constant dense<0.000000e+00> : vector<256x128xf32>
    %42 = tpu.matmul %40, %41, %cst_51 {dimension_numbers = #tpu.dot_dimension_numbers<[1], [0], [0], [1], [0, 0, 1, 1], [], []>} : vector<256x1152xbf16>, vector<1152x128xbf16>, vector<256x128xf32> -> vector<256x128xf32>
    %c0_52 = arith.constant 0 : index
    %c0_53 = arith.constant 0 : index
    %43 = vector.load %arg9[%c0_52, %c0_53] : memref<1x128xf32, #tpu.memory_space<vmem>>, vector<1x128xf32>
    %44 = vector.broadcast %43 : vector<1x128xf32> to vector<256x128xf32>
    %45 = arith.addf %42, %44 : vector<256x128xf32>
    %cst_54 = arith.constant 0.000000e+00 : f32
    %46 = vector.broadcast %cst_54 : f32 to vector<256x128xf32>
    %47 = arith.maximumf %45, %46 : vector<256x128xf32>
    %48 = arith.truncf %47 : vector<256x128xf32> to vector<256x128xbf16>
    %c0_55 = arith.constant 0 : index
    %c0_56 = arith.constant 0 : index
    %49 = vector.load %arg7[%c0_55, %c0_56] : memref<128x128xbf16, #tpu.memory_space<vmem>>, vector<128x128xbf16>
    %cst_57 = arith.constant dense<0.000000e+00> : vector<256x128xf32>
    %50 = tpu.matmul %48, %49, %cst_57 {dimension_numbers = #tpu.dot_dimension_numbers<[1], [0], [0], [1], [0, 0, 1, 1], [], []>} : vector<256x128xbf16>, vector<128x128xbf16>, vector<256x128xf32> -> vector<256x128xf32>
    %c0_58 = arith.constant 0 : index
    %c0_59 = arith.constant 0 : index
    %51 = vector.load %arg10[%c0_58, %c0_59] : memref<1x128xf32, #tpu.memory_space<vmem>>, vector<1x128xf32>
    %52 = vector.broadcast %51 : vector<1x128xf32> to vector<256x128xf32>
    %53 = arith.addf %50, %52 : vector<256x128xf32>
    %c0_60 = arith.constant 0 : index
    %c0_61 = arith.constant 0 : index
    %c0_62 = arith.constant 0 : index
    %c0_63 = arith.constant 0 : index
    %54 = vector.load %arg3[%c0_60, %c0_61, %c0_62, %c0_63] : memref<1x16x16x128xf32, #tpu.memory_space<vmem>>, vector<1x16x16x128xf32>
    %55 = vector.shape_cast %54 : vector<1x16x16x128xf32> to vector<16x16x128xf32>
    %56 = vector.shape_cast %55 : vector<16x16x128xf32> to vector<256x128xf32>
    %57 = arith.addf %53, %56 : vector<256x128xf32>
    %cst_64 = arith.constant 0.000000e+00 : f32
    %58 = vector.broadcast %cst_64 : f32 to vector<256x128xf32>
    %59 = arith.maximumf %57, %58 : vector<256x128xf32>
    %60 = vector.shape_cast %59 : vector<256x128xf32> to vector<16x16x128xf32>
    %c0_65 = arith.constant 0 : index
    %c0_66 = arith.constant 0 : index
    %c0_67 = arith.constant 0 : index
    %c0_68 = arith.constant 0 : index
    %61 = vector.load %arg11[%c0_65, %c0_66, %c0_67, %c0_68] : memref<1x16x16x128xf32, #tpu.memory_space<vmem>>, vector<1x16x16x128xf32>
    %62 = vector.shape_cast %61 : vector<1x16x16x128xf32> to vector<16x16x128xf32>
    %63 = vector.shape_cast %60 : vector<16x16x128xf32> to vector<1x16x16x128xf32>
    tpu.vector_store %arg11[%c0_65, %c0_66, %c0_67, %c0_68], %63 {strides = array<i32>} : memref<1x16x16x128xf32, #tpu.memory_space<vmem>>, vector<1x16x16x128xf32>,
    return
  }
  func.func @transform_0(%arg0: i32, %arg1: i32) -> (i32, i32, i32, i32) {
    %c16_i32 = arith.constant 16 : i32
    %0 = arith.muli %arg1, %c16_i32 : i32
    %c1_i32 = arith.constant 1 : i32
    %1 = arith.subi %0, %c1_i32 : i32
    %c0_i32 = arith.constant 0 : i32
    %2 = arith.maxsi %1, %c0_i32 : i32
    %c0_i32_0 = arith.constant 0 : i32
    %c0_i32_1 = arith.constant 0 : i32
    %c0_i32_2 = arith.constant 0 : i32
    return %arg0, %2, %c0_i32_0, %c0_i32_1 : i32, i32, i32, i32
  }
  func.func @transform_1(%arg0: i32, %arg1: i32) -> (i32, i32, i32, i32) {
    %c0_i32 = arith.constant 0 : i32
    %c0_i32_0 = arith.constant 0 : i32
    %c0_i32_1 = arith.constant 0 : i32
    return %arg0, %arg1, %c0_i32, %c0_i32_0 : i32, i32, i32, i32
  }
  func.func @transform_2(%arg0: i32, %arg1: i32) -> (i32, i32, i32, i32) {
    %c16_i32 = arith.constant 16 : i32
    %0 = arith.muli %arg1, %c16_i32 : i32
    %c16_i32_0 = arith.constant 16 : i32
    %1 = arith.addi %0, %c16_i32_0 : i32
    %c15_i32 = arith.constant 15 : i32
    %2 = arith.minsi %1, %c15_i32 : i32
    %c0_i32 = arith.constant 0 : i32
    %c0_i32_1 = arith.constant 0 : i32
    %c0_i32_2 = arith.constant 0 : i32
    return %arg0, %2, %c0_i32, %c0_i32_1 : i32, i32, i32, i32
  }
  func.func @transform_3(%arg0: i32, %arg1: i32) -> (i32, i32) {
    %c0_i32 = arith.constant 0 : i32
    %c0_i32_0 = arith.constant 0 : i32
    %c0_i32_1 = arith.constant 0 : i32
    return %c0_i32, %c0_i32_0 : i32, i32
  }
  func.func @transform_4(%arg0: i32, %arg1: i32) -> (i32, i32) {
    %c0_i32 = arith.constant 0 : i32
    %c0_i32_0 = arith.constant 0 : i32
    %c0_i32_1 = arith.constant 0 : i32
    return %c0_i32, %c0_i32_0 : i32, i32
  }
  func.func @transform_5(%arg0: i32, %arg1: i32) -> (i32, i32) {
    %c0_i32 = arith.constant 0 : i32
    %c0_i32_0 = arith.constant 0 : i32
    %c0_i32_1 = arith.constant 0 : i32
    return %c0_i32, %c0_i32_0 : i32, i32
  }
  func.func @transform_6(%arg0: i32, %arg1: i32) -> (i32, i32) {
    %c0_i32 = arith.constant 0 : i32
    %c0_i32_0 = arith.constant 0 : i32
    %c0_i32_1 = arith.constant 0 : i32
    return %c0_i32, %c0_i32_0 : i32, i32
  }
  func.func @transform_7(%arg0: i32, %arg1: i32) -> (i32, i32) {
    %c0_i32 = arith.constant 0 : i32
    %c0_i32_0 = arith.constant 0 : i32
    %c0_i32_1 = arith.constant 0 : i32
    return %c0_i32, %c0_i32_0 : i32, i32
  }
  func.func @transform_8(%arg0: i32, %arg1: i32) -> (i32, i32) {
    %c0_i32 = arith.constant 0 : i32
    %c0_i32_0 = arith.constant 0 : i32
    %c0_i32_1 = arith.constant 0 : i32
    return %c0_i32, %c0_i32_0 : i32, i32
  }
  func.func @transform_9(%arg0: i32, %arg1: i32) -> (i32, i32, i32, i32) {
    %c0_i32 = arith.constant 0 : i32
    %c0_i32_0 = arith.constant 0 : i32
    %c0_i32_1 = arith.constant 0 : i32
    return %arg0, %arg1, %c0_i32, %c0_i32_0 : i32, i32, i32, i32
  }
}

</mosaic_0001>

<llo_original>
// kernel: tpu_custom_call.1
$region0: #{tpu_custom_call.1}
  #allocation0 [shape = 'u32[]', space=smem, size = 0x4, offset = 0x4, fixed_abs, tag = 'smem constant byte address 0x4 - core index']
  #allocation1 [shape = 'u32[144,128]{1,0:T(1,128)}', space=vmem, size = 0x12000, scoped, tag = 'internal scratch']
  #allocation2 [shape = 'bf16[18,18,128]{2,1,0:T(8,128)(2,1)}', space=vmem, size = 0x1b000, scoped, tag = 'scratch operand']
  %s0 = inlined_call_operand.hbm [shape: f32[2,16,16,128], index: 0, kind: input, shape index: {}]
  %s1 = inlined_call_operand.hbm [shape: f32[2,16,16,128], index: 1, kind: input, shape index: {}]
  %s2 = inlined_call_operand.hbm [shape: f32[2,16,16,128], index: 2, kind: input, shape index: {}]
  %s3 = inlined_call_operand.hbm [shape: bf16[128,128], index: 3, kind: input, shape index: {}]
  %s4 = inlined_call_operand.hbm [shape: bf16[1152,128], index: 4, kind: input, shape index: {}]
  %s5 = inlined_call_operand.hbm [shape: bf16[128,128], index: 5, kind: input, shape index: {}]
  %s6 = inlined_call_operand.vmem [shape: f32[1,128], index: 6, kind: input, shape index: {}]
  %s7 = inlined_call_operand.vmem [shape: f32[1,128], index: 7, kind: input, shape index: {}]
  %s8 = inlined_call_operand.vmem [shape: f32[1,128], index: 8, kind: input, shape index: {}]
  %s9 = inlined_call_operand.hbm [shape: f32[2,16,16,128], index: 9, kind: output, shape index: {}]
  %s10 = sld [smem:[#allocation0]]
  $region109: #{tpu_custom_call.1} parent=0
    _
  %s12 = ssub.s32 1, %s10
  %s13 = scalar_select 0, %s12, %s10
  $region1: #{tpu_custom_call.1} parent=0
    #allocation3 [shape = 'u8[16384]{0}', space=vmem, size = 0x4000, scoped, tag = 'input window, operand 0']
    #allocation4 [shape = 's32[2]{0}', space=sflag, size = 0x8, scoped, tag = 'scoped memory for tpu_custom_call.1']
    #allocation5 [shape = 's32[2]{0}', space=sflag, size = 0x8, scoped, tag = 'scoped memory for tpu_custom_call.1']
    #allocation6 [shape = 'u8[262144]{0}', space=vmem, size = 0x40000, scoped, tag = 'input window, operand 1']
    #allocation7 [shape = 's32[2]{0}', space=sflag, size = 0x8, scoped, tag = 'scoped memory for tpu_custom_call.1']
    #allocation8 [shape = 'u8[16384]{0}', space=vmem, size = 0x4000, scoped, tag = 'input window, operand 2']
    #allocation9 [shape = 'u8[32768]{0}', space=vmem, size = 0x8000, scoped, tag = 'input window, operand 3, single buffered']
    #allocation10 [shape = 's32[1]{0}', space=sflag, size = 0x4, scoped, tag = 'scoped memory for tpu_custom_call.1']
    #allocation11 [shape = 'u8[294912]{0}', space=vmem, size = 0x48000, scoped, tag = 'input window, operand 4, single buffered']
    #allocation12 [shape = 'u8[32768]{0}', space=vmem, size = 0x8000, scoped, tag = 'input window, operand 5, single buffered']
    #allocation13 [shape = 's32[1]{0}', space=sflag, size = 0x4, scoped, tag = 'scoped memory for tpu_custom_call.1']
    #allocation14 [shape = 'u8[262144]{0}', space=vmem, size = 0x40000, scoped, tag = 'output window, operand 0']
    %14 = vsyncpa [#allocation4], 0
    %s15 = scalar_lea.sflag [#allocation4], 1
    %16 = vsyncpa %s15, 0
    %17 = vsyncpa [#allocation7], 0
    %s18 = scalar_lea.sflag [#allocation7], 1
    %19 = vsyncpa %s18, 0
    %20 = vsyncpa [#allocation10], 0
    %21 = vsyncpa [#allocation13], 0
    %22 = vsyncpa [#allocation5], 0
    %s23 = scalar_lea.sflag [#allocation5], 1
    %24 = vsyncpa %s23, 0
    loop: start=0, step=1, limit=4
    $region2: #{tpu_custom_call.1} parent=1 // loop_pre_header
      _
    $region3: #{tpu_custom_call.1} parent=1 // loop_header
      %s26 = sphi 0, %s30
      %p27 = scmp.ge.s32.totalorder %s26, 4
      %s33 = sphi 0, %s45
      %s34 = sphi 0, %s41
      %s35 = sphi 0, %s33
      %s36 = sphi 0, %s34
      %s37 = sphi 0, %s35
      %s38 = sphi 0, %s36
      %s58 = sphi 0, %s60
      %s61 = sphi 0, %s58
      %s62 = sphi 0, %s61
      %s78 = sphi 0, %s62
      %s86 = sphi 0, %s88
      %s89 = sphi 0, %s86
      %s90 = sphi 0, %s89
      %s106 = sphi 0, %s90
      %s122 = sphi 0, %s124
      %s125 = sphi 0, %s122
      %s126 = sphi 0, %s125
      %s142 = sphi 0, %s126
      %s146 = sphi 0, %s146
      %s148 = sphi 0, %s146
      %s149 = sphi 0, %s148
      %s163 = sphi 0, %s149
      %s167 = sphi 0, %s167
      %s169 = sphi 0, %s167
      %s170 = sphi 0, %s169
      %s184 = sphi 0, %s170
      %s188 = sphi 0, %s188
      %s190 = sphi 0, %s188
      %s191 = sphi 0, %s190
      %s205 = sphi 0, %s191
      %s209 = sphi 0, %s209
      %s211 = sphi 0, %s209
      %s212 = sphi 0, %s211
      %s226 = sphi 0, %s212
      %s230 = sphi 0, %s230
      %s232 = sphi 0, %s230
      %s233 = sphi 0, %s232
      %s247 = sphi 0, %s233
      %s251 = sphi 0, %s251
      %s253 = sphi 0, %s251
      %s254 = sphi 0, %s253
      %s268 = sphi 0, %s254
      %s276 = sphi 0, %s278
      %s279 = sphi 0, %s276
      %s280 = sphi 0, %s279
      %s296 = sphi 0, %s280
    $region4: #{tpu_custom_call.1} parent=1 // loop_header_branch
      %29 = sbr.rel (%p27) target = $region8
    $region5: #{tpu_custom_call.1} parent=1 // loop_body
      %s31 = ssub.s32 %s26, 1
      %s32 = ssub.s32 %s26, 2
      %s39 = sadd.s32 1, %s34
      %p40 = scmp.ge.s32.totalorder %s39, 1
      %s41 = scalar_select %p40, 0, %s39
      %s42 = sadd.s32 1, %s33
      %s43 = scalar_select %p40, %s42, %s33
      %p44 = scmp.ge.s32.totalorder %s43, 2
      %s45 = scalar_select %p44, 0, %s43
      %s46 = smul.u32 %s34, 16
      %s47 = ssub.s32 %s46, 1
      %p48 = scmp.gt.s32.totalorder %s47, 0
      %s49 = scalar_select %p48, %s47, 0
      %s50 = smul.u32 %s41, 16
      %s51 = ssub.s32 %s50, 1
      %p52 = scmp.gt.s32.totalorder %s51, 0
      %s53 = scalar_select %p52, %s51, 0
      %s54 = ssub.s32 %s33, %s45
      %s55 = ssub.s32 %s49, %s53
      %s56 = sor.u32 %s54, %s55
      %p57 = scmp.eq.s32.totalorder %s56, 0
      %s59 = sadd.s32 %s58, 1
      %s60 = scalar_select %p57, %s58, %s59
      %p63 = pneg %p57
      %p64 = scmp.eq.s32.totalorder %s26, 1
      %p65 = por %p63, %p64
      %p66 = scmp.ne.s32.totalorder %s58, %s61
      %p67 = scmp.eq.s32.totalorder %s26, 0
      %p68 = por %p66, %p67
      %p69 = scmp.ne.s32.totalorder %s58, %s61
      %p70 = scmp.eq.s32.totalorder %s31, 1
      %p71 = por %p69, %p70
      %p72 = scmp.ne.s32.totalorder %s61, %s62
      %p73 = scmp.eq.s32.totalorder %s31, 0
      %p74 = por %p72, %p73
      %p75 = scmp.ne.s32.totalorder %s61, %s62
      %p76 = scmp.eq.s32.totalorder %s32, 1
      %p77 = por %p75, %p76
      %p79 = scmp.ne.s32.totalorder %s62, %s78
      %p80 = scmp.eq.s32.totalorder %s32, 0
      %p81 = por %p79, %p80
      %s82 = ssub.s32 %s33, %s45
      %s83 = ssub.s32 %s34, %s41
      %s84 = sor.u32 %s82, %s83
      %p85 = scmp.eq.s32.totalorder %s84, 0
      %s87 = sadd.s32 %s86, 1
      %s88 = scalar_select %p85, %s86, %s87
      %p91 = pneg %p85
      %p92 = scmp.eq.s32.totalorder %s26, 1
      %p93 = por %p91, %p92
      %p94 = scmp.ne.s32.totalorder %s86, %s89
      %p95 = scmp.eq.s32.totalorder %s26, 0
      %p96 = por %p94, %p95
      %p97 = scmp.ne.s32.totalorder %s86, %s89
      %p98 = scmp.eq.s32.totalorder %s31, 1
      %p99 = por %p97, %p98
      %p100 = scmp.ne.s32.totalorder %s89, %s90
      %p101 = scmp.eq.s32.totalorder %s31, 0
      %p102 = por %p100, %p101
      %p103 = scmp.ne.s32.totalorder %s89, %s90
      %p104 = scmp.eq.s32.totalorder %s32, 1
      %p105 = por %p103, %p104
      %p107 = scmp.ne.s32.totalorder %s90, %s106
      %p108 = scmp.eq.s32.totalorder %s32, 0
      %p109 = por %p107, %p108
      %s110 = smul.u32 %s34, 16
      %s111 = sadd.s32 %s110, 16
      %p112 = scmp.lt.s32.totalorder %s111, 15
      %s113 = scalar_select %p112, %s111, 15
      %s114 = smul.u32 %s41, 16
      %s115 = sadd.s32 %s114, 16
      %p116 = scmp.lt.s32.totalorder %s115, 15
      %s117 = scalar_select %p116, %s115, 15
      %s118 = ssub.s32 %s33, %s45
      %s119 = ssub.s32 %s113, %s117
      %s120 = sor.u32 %s118, %s119
      %p121 = scmp.eq.s32.totalorder %s120, 0
      %s123 = sadd.s32 %s122, 1
      %s124 = scalar_select %p121, %s122, %s123
      %p127 = pneg %p121
      %p128 = scmp.eq.s32.totalorder %s26, 1
      %p129 = por %p127, %p128
      %p130 = scmp.ne.s32.totalorder %s122, %s125
      %p131 = scmp.eq.s32.totalorder %s26, 0
      %p132 = por %p130, %p131
      %p133 = scmp.ne.s32.totalorder %s122, %s125
      %p134 = scmp.eq.s32.totalorder %s31, 1
      %p135 = por %p133, %p134
      %p136 = scmp.ne.s32.totalorder %s125, %s126
      %p137 = scmp.eq.s32.totalorder %s31, 0
      %p138 = por %p136, %p137
      %p139 = scmp.ne.s32.totalorder %s125, %s126
      %p140 = scmp.eq.s32.totalorder %s32, 1
      %p141 = por %p139, %p140
      %p143 = scmp.ne.s32.totalorder %s126, %s142
      %p144 = scmp.eq.s32.totalorder %s32, 0
      %p145 = por %p143, %p144
      %s147 = sadd.s32 %s146, 1
      %p150 = scmp.eq.s32.totalorder %s26, 1
      %p151 = scmp.ne.s32.totalorder %s146, %s148
      %p152 = scmp.eq.s32.totalorder %s26, 0
      %p153 = por %p151, %p152
      %p154 = scmp.ne.s32.totalorder %s146, %s148
      %p155 = scmp.eq.s32.totalorder %s31, 1
      %p156 = por %p154, %p155
      %p157 = scmp.ne.s32.totalorder %s148, %s149
      %p158 = scmp.eq.s32.totalorder %s31, 0
      %p159 = por %p157, %p158
      %p160 = scmp.ne.s32.totalorder %s148, %s149
      %p161 = scmp.eq.s32.totalorder %s32, 1
      %p162 = por %p160, %p161
      %p164 = scmp.ne.s32.totalorder %s149, %s163
      %p165 = scmp.eq.s32.totalorder %s32, 0
      %p166 = por %p164, %p165
      %s168 = sadd.s32 %s167, 1
      %p171 = scmp.eq.s32.totalorder %s26, 1
      %p172 = scmp.ne.s32.totalorder %s167, %s169
      %p173 = scmp.eq.s32.totalorder %s26, 0
      %p174 = por %p172, %p173
      %p175 = scmp.ne.s32.totalorder %s167, %s169
      %p176 = scmp.eq.s32.totalorder %s31, 1
      %p177 = por %p175, %p176
      %p178 = scmp.ne.s32.totalorder %s169, %s170
      %p179 = scmp.eq.s32.totalorder %s31, 0
      %p180 = por %p178, %p179
      %p181 = scmp.ne.s32.totalorder %s169, %s170
      %p182 = scmp.eq.s32.totalorder %s32, 1
      %p183 = por %p181, %p182
      %p185 = scmp.ne.s32.totalorder %s170, %s184
      %p186 = scmp.eq.s32.totalorder %s32, 0
      %p187 = por %p185, %p186
      %s189 = sadd.s32 %s188, 1
      %p192 = scmp.eq.s32.totalorder %s26, 1
      %p193 = scmp.ne.s32.totalorder %s188, %s190
      %p194 = scmp.eq.s32.totalorder %s26, 0
      %p195 = por %p193, %p194
      %p196 = scmp.ne.s32.totalorder %s188, %s190
      %p197 = scmp.eq.s32.totalorder %s31, 1
      %p198 = por %p196, %p197
      %p199 = scmp.ne.s32.totalorder %s190, %s191
      %p200 = scmp.eq.s32.totalorder %s31, 0
      %p201 = por %p199, %p200
      %p202 = scmp.ne.s32.totalorder %s190, %s191
      %p203 = scmp.eq.s32.totalorder %s32, 1
      %p204 = por %p202, %p203
      %p206 = scmp.ne.s32.totalorder %s191, %s205
      %p207 = scmp.eq.s32.totalorder %s32, 0
      %p208 = por %p206, %p207
      %s210 = sadd.s32 %s209, 1
      %p213 = scmp.eq.s32.totalorder %s26, 1
      %p214 = scmp.ne.s32.totalorder %s209, %s211
      %p215 = scmp.eq.s32.totalorder %s26, 0
      %p216 = por %p214, %p215
      %p217 = scmp.ne.s32.totalorder %s209, %s211
      %p218 = scmp.eq.s32.totalorder %s31, 1
      %p219 = por %p217, %p218
      %p220 = scmp.ne.s32.totalorder %s211, %s212
      %p221 = scmp.eq.s32.totalorder %s31, 0
      %p222 = por %p220, %p221
      %p223 = scmp.ne.s32.totalorder %s211, %s212
      %p224 = scmp.eq.s32.totalorder %s32, 1
      %p225 = por %p223, %p224
      %p227 = scmp.ne.s32.totalorder %s212, %s226
      %p228 = scmp.eq.s32.totalorder %s32, 0
      %p229 = por %p227, %p228
      %s231 = sadd.s32 %s230, 1
      %p234 = scmp.eq.s32.totalorder %s26, 1
      %p235 = scmp.ne.s32.totalorder %s230, %s232
      %p236 = scmp.eq.s32.totalorder %s26, 0
      %p237 = por %p235, %p236
      %p238 = scmp.ne.s32.totalorder %s230, %s232
      %p239 = scmp.eq.s32.totalorder %s31, 1
      %p240 = por %p238, %p239
      %p241 = scmp.ne.s32.totalorder %s232, %s233
      %p242 = scmp.eq.s32.totalorder %s31, 0
      %p243 = por %p241, %p242
      %p244 = scmp.ne.s32.totalorder %s232, %s233
      %p245 = scmp.eq.s32.totalorder %s32, 1
      %p246 = por %p244, %p245
      %p248 = scmp.ne.s32.totalorder %s233, %s247
      %p249 = scmp.eq.s32.totalorder %s32, 0
      %p250 = por %p248, %p249
      %s252 = sadd.s32 %s251, 1
      %p255 = scmp.eq.s32.totalorder %s26, 1
      %p256 = scmp.ne.s32.totalorder %s251, %s253
      %p257 = scmp.eq.s32.totalorder %s26, 0
      %p258 = por %p256, %p257
      %p259 = scmp.ne.s32.totalorder %s251, %s253
      %p260 = scmp.eq.s32.totalorder %s31, 1
      %p261 = por %p259, %p260
      %p262 = scmp.ne.s32.totalorder %s253, %s254
      %p263 = scmp.eq.s32.totalorder %s31, 0
      %p264 = por %p262, %p263
      %p265 = scmp.ne.s32.totalorder %s253, %s254
      %p266 = scmp.eq.s32.totalorder %s32, 1
      %p267 = por %p265, %p266
      %p269 = scmp.ne.s32.totalorder %s254, %s268
      %p270 = scmp.eq.s32.totalorder %s32, 0
      %p271 = por %p269, %p270
      %s272 = ssub.s32 %s33, %s45
      %s273 = ssub.s32 %s34, %s41
      %s274 = sor.u32 %s272, %s273
      %p275 = scmp.eq.s32.totalorder %s274, 0
      %s277 = sadd.s32 %s276, 1
      %s278 = scalar_select %p275, %s276, %s277
      %p281 = pneg %p275
      %p282 = scmp.eq.s32.totalorder %s26, 1
      %p283 = por %p281, %p282
      %p284 = scmp.ne.s32.totalorder %s276, %s279
      %p285 = scmp.eq.s32.totalorder %s26, 0
      %p286 = por %p284, %p285
      %p287 = scmp.ne.s32.totalorder %s276, %s279
      %p288 = scmp.eq.s32.totalorder %s31, 1
      %p289 = por %p287, %p288
      %p290 = scmp.ne.s32.totalorder %s279, %s280
      %p291 = scmp.eq.s32.totalorder %s31, 0
      %p292 = por %p290, %p291
      %p293 = scmp.ne.s32.totalorder %s279, %s280
      %p294 = scmp.eq.s32.totalorder %s32, 1
      %p295 = por %p293, %p294
      %p297 = scmp.ne.s32.totalorder %s280, %s296
      %p298 = scmp.eq.s32.totalorder %s32, 0
      %p299 = por %p297, %p298
      %p300 = scmp.le.s32.totalorder 1, %s26
      %p301 = scmp.lt.s32.totalorder %s26, 3
      %p302 = pnand %p300, %p301
      %p303 = pneg %p302
      // Predicated region
      $region9: #{tpu_custom_call.1} parent=5 // pred_check
        _
      $region10: #{tpu_custom_call.1} parent=5 // pred_check_branch
        %305 = sbr.rel (%p302) target = $region12
      $region11: #{tpu_custom_call.1} parent=5 // pred_region
        %s306 = ssub.s32 %s26, 1
        // Predicated region
        $region13: #{tpu_custom_call.1} parent=11 // pred_check
          %p307 = pneg %p159
        $region14: #{tpu_custom_call.1} parent=11 // pred_check_branch
          %309 = sbr.rel (%p307) target = $region16
        $region15: #{tpu_custom_call.1} parent=11 // pred_region
          %s311 = ssub.s32 1024, 1024
          %312 = vsyncadd [#allocation10], %s311
          %s313 = sshll.u32 [#allocation9], 4
          %s314 = int_to_ptr.vmem [resolvable:$true] %s313
          %319 = dma.hbm_to_vmem [thread:$0]  %s3, 1024, %s314, [#allocation10], 64, 64, 4
        $region16: #{tpu_custom_call.1} parent=11 // pred_fallthru
          _
        // Predicated region
        $region17: #{tpu_custom_call.1} parent=11 // pred_check
          %p320 = pneg %p180
        $region18: #{tpu_custom_call.1} parent=11 // pred_check_branch
          %322 = sbr.rel (%p320) target = $region20
        $region19: #{tpu_custom_call.1} parent=11 // pred_region
          %s324 = ssub.s32 9216, 9216
          %325 = vsyncadd [#allocation10], %s324
          %s326 = sshll.u32 [#allocation11], 4
          %s327 = int_to_ptr.vmem [resolvable:$true] %s326
          %332 = dma.hbm_to_vmem [thread:$0]  %s4, 9216, %s327, [#allocation10], 64, 64, 4
        $region20: #{tpu_custom_call.1} parent=11 // pred_fallthru
          _
        // Predicated region
        $region21: #{tpu_custom_call.1} parent=11 // pred_check
          %p333 = pneg %p201
        $region22: #{tpu_custom_call.1} parent=11 // pred_check_branch
          %335 = sbr.rel (%p333) target = $region24
        $region23: #{tpu_custom_call.1} parent=11 // pred_region
          %s337 = ssub.s32 1024, 1024
          %338 = vsyncadd [#allocation13], %s337
          %s339 = sshll.u32 [#allocation12], 4
          %s340 = int_to_ptr.vmem [resolvable:$true] %s339
          %345 = dma.hbm_to_vmem [thread:$0]  %s5, 1024, %s340, [#allocation13], 64, 64, 4
        $region24: #{tpu_custom_call.1} parent=11 // pred_fallthru
          _
        // Predicated region
        $region25: #{tpu_custom_call.1} parent=11 // pred_check
          %p346 = pneg %p222
        $region26: #{tpu_custom_call.1} parent=11 // pred_check_branch
          %348 = sbr.rel (%p346) target = $region28
        $region27: #{tpu_custom_call.1} parent=11 // pred_region
          _
        $region28: #{tpu_custom_call.1} parent=11 // pred_fallthru
          _
        // Predicated region
        $region29: #{tpu_custom_call.1} parent=11 // pred_check
          %p349 = pneg %p243
        $region30: #{tpu_custom_call.1} parent=11 // pred_check_branch
          %351 = sbr.rel (%p349) target = $region32
        $region31: #{tpu_custom_call.1} parent=11 // pred_region
          _
        $region32: #{tpu_custom_call.1} parent=11 // pred_fallthru
          _
        // Predicated region
        $region33: #{tpu_custom_call.1} parent=11 // pred_check
          %p352 = pneg %p264
        $region34: #{tpu_custom_call.1} parent=11 // pred_check_branch
          %354 = sbr.rel (%p352) target = $region36
        $region35: #{tpu_custom_call.1} parent=11 // pred_region
          _
        $region36: #{tpu_custom_call.1} parent=11 // pred_fallthru
          _
      $region12: #{tpu_custom_call.1} parent=5 // pred_fallthru
        _
      %p355 = scmp.lt.s32.totalorder %s26, 2
      // Predicated region
      $region37: #{tpu_custom_call.1} parent=5 // pred_check
        %p356 = pneg %p355
      $region38: #{tpu_custom_call.1} parent=5 // pred_check_branch
        %358 = sbr.rel (%p356) target = $region40
      $region39: #{tpu_custom_call.1} parent=5 // pred_region
        // Predicated region
        $region41: #{tpu_custom_call.1} parent=39 // pred_check
          %p359 = pneg %p68
        $region42: #{tpu_custom_call.1} parent=39 // pred_check_branch
          %361 = sbr.rel (%p359) target = $region44
        $region43: #{tpu_custom_call.1} parent=39 // pred_region
          %s362 = sand.u32 %s58, 1
          %s363 = scalar_lea.sflag [#allocation4], %s362
          %s364 = sand.u32 %s58, 1
          %s365 = smul.addr %s364, 16
          %s366 = scalar_lea.vmem [#allocation3], %s365
          %s367 = smul.u32 %s34, 16
          %s368 = ssub.s32 %s367, 1
          %p369 = scmp.gt.s32.totalorder %s368, 0
          %s370 = scalar_select %p369, %s368, 0
          %s372 = ssub.s32 256, 256
          %373 = vsyncadd %s363, %s372
          %s374 = smul.addr %s370, 2
          %s375 = smul.addr %s33, 32
          %s376 = sadd.s32 %s374, %s375
          %s377 = smul.addr %s376, 128
          %s378 = scalar_lea.hbm %s0, %s377
          %s379 = sshll.u32 %s366, 4
          %s380 = int_to_ptr.vmem [resolvable:$true] %s379
          %385 = dma.hbm_to_vmem [thread:$0]  %s378, 256, %s380, %s363, 128, 128, 8
        $region44: #{tpu_custom_call.1} parent=39 // pred_fallthru
          _
        // Predicated region
        $region45: #{tpu_custom_call.1} parent=39 // pred_check
          %p386 = pneg %p96
        $region46: #{tpu_custom_call.1} parent=39 // pred_check_branch
          %388 = sbr.rel (%p386) target = $region48
        $region47: #{tpu_custom_call.1} parent=39 // pred_region
          %s389 = sand.u32 %s26, 1
          %s390 = scalar_lea.sflag [#allocation7], %s389
          %s391 = sand.u32 %s86, 1
          %s392 = smul.addr %s391, 256
          %s393 = scalar_lea.vmem [#allocation6], %s392
          %s394 = smul.u32 16, %s34
          %s396 = ssub.s32 4096, 4096
          %397 = vsyncadd %s390, %s396
          %s398 = smul.addr %s394, 2
          %s399 = smul.addr %s33, 32
          %s400 = sadd.s32 %s398, %s399
          %s401 = smul.addr %s400, 128
          %s402 = scalar_lea.hbm %s1, %s401
          %s403 = sshll.u32 %s393, 4
          %s404 = int_to_ptr.vmem [resolvable:$true] %s403
          %409 = dma.hbm_to_vmem [thread:$0]  %s402, 4096, %s404, %s390, 128, 128, 8
        $region48: #{tpu_custom_call.1} parent=39 // pred_fallthru
          _
        // Predicated region
        $region49: #{tpu_custom_call.1} parent=39 // pred_check
          %p410 = pneg %p132
        $region50: #{tpu_custom_call.1} parent=39 // pred_check_branch
          %412 = sbr.rel (%p410) target = $region52
        $region51: #{tpu_custom_call.1} parent=39 // pred_region
          %s413 = sand.u32 %s26, 1
          %s414 = scalar_lea.sflag [#allocation7], %s413
          %s415 = sand.u32 %s122, 1
          %s416 = smul.addr %s415, 16
          %s417 = scalar_lea.vmem [#allocation8], %s416
          %s418 = smul.u32 %s34, 16
          %s419 = sadd.s32 %s418, 16
          %p420 = scmp.lt.s32.totalorder %s419, 15
          %s421 = scalar_select %p420, %s419, 15
          %s423 = ssub.s32 256, 256
          %424 = vsyncadd %s414, %s423
          %s425 = smul.addr %s421, 2
          %s426 = smul.addr %s33, 32
          %s427 = sadd.s32 %s425, %s426
          %s428 = smul.addr %s427, 128
          %s429 = scalar_lea.hbm %s2, %s428
          %s430 = sshll.u32 %s417, 4
          %s431 = int_to_ptr.vmem [resolvable:$true] %s430
          %436 = dma.hbm_to_vmem [thread:$0]  %s429, 256, %s431, %s414, 128, 128, 8
        $region52: #{tpu_custom_call.1} parent=39 // pred_fallthru
          _
      $region40: #{tpu_custom_call.1} parent=5 // pred_fallthru
        _
      %p437 = scmp.le.s32.totalorder 1, %s26
      %p438 = scmp.lt.s32.totalorder %s26, 3
      %p439 = pnand %p437, %p438
      %p440 = pneg %p439
      // Predicated region
      $region53: #{tpu_custom_call.1} parent=5 // pred_check
        _
      $region54: #{tpu_custom_call.1} parent=5 // pred_check_branch
        %442 = sbr.rel (%p439) target = $region56
      $region55: #{tpu_custom_call.1} parent=5 // pred_region
        %s443 = ssub.s32 %s26, 1
        %s444 = sand.u32 %s61, 1
        %s445 = scalar_lea.sflag [#allocation4], %s444
        %s446 = sand.u32 %s61, 1
        %s447 = smul.addr %s446, 16
        %s448 = scalar_lea.vmem [#allocation3], %s447
        // Predicated region
        $region57: #{tpu_custom_call.1} parent=55 // pred_check
          %p449 = pneg %p74
        $region58: #{tpu_custom_call.1} parent=55 // pred_check_branch
          %451 = sbr.rel (%p449) target = $region60
        $region59: #{tpu_custom_call.1} parent=55 // pred_region
          %452 = dma.done %s445, 256
        $region60: #{tpu_custom_call.1} parent=55 // pred_fallthru
          _
        %s453 = sand.u32 %s31, 1
        %s454 = scalar_lea.sflag [#allocation7], %s453
        %s455 = sand.u32 %s89, 1
        %s456 = smul.addr %s455, 256
        %s457 = scalar_lea.vmem [#allocation6], %s456
        // Predicated region
        $region61: #{tpu_custom_call.1} parent=55 // pred_check
          %p458 = pneg %p102
        $region62: #{tpu_custom_call.1} parent=55 // pred_check_branch
          %460 = sbr.rel (%p458) target = $region64
        $region63: #{tpu_custom_call.1} parent=55 // pred_region
          %461 = dma.done %s454, 4096
        $region64: #{tpu_custom_call.1} parent=55 // pred_fallthru
          _
        %s462 = sand.u32 %s31, 1
        %s463 = scalar_lea.sflag [#allocation7], %s462
        %s464 = sand.u32 %s125, 1
        %s465 = smul.addr %s464, 16
        %s466 = scalar_lea.vmem [#allocation8], %s465
        // Predicated region
        $region65: #{tpu_custom_call.1} parent=55 // pred_check
          %p467 = pneg %p138
        $region66: #{tpu_custom_call.1} parent=55 // pred_check_branch
          %469 = sbr.rel (%p467) target = $region68
        $region67: #{tpu_custom_call.1} parent=55 // pred_region
          %470 = dma.done %s463, 256
        $region68: #{tpu_custom_call.1} parent=55 // pred_fallthru
          _
        // Predicated region
        $region69: #{tpu_custom_call.1} parent=55 // pred_check
          %p471 = pneg %p159
        $region70: #{tpu_custom_call.1} parent=55 // pred_check_branch
          %473 = sbr.rel (%p471) target = $region72
        $region71: #{tpu_custom_call.1} parent=55 // pred_region
          %474 = dma.done [#allocation10], 1024
        $region72: #{tpu_custom_call.1} parent=55 // pred_fallthru
          _
        // Predicated region
        $region73: #{tpu_custom_call.1} parent=55 // pred_check
          %p475 = pneg %p180
        $region74: #{tpu_custom_call.1} parent=55 // pred_check_branch
          %477 = sbr.rel (%p475) target = $region76
        $region75: #{tpu_custom_call.1} parent=55 // pred_region
          %478 = dma.done [#allocation10], 9216
        $region76: #{tpu_custom_call.1} parent=55 // pred_fallthru
          _
        // Predicated region
        $region77: #{tpu_custom_call.1} parent=55 // pred_check
          %p479 = pneg %p201
        $region78: #{tpu_custom_call.1} parent=55 // pred_check_branch
          %481 = sbr.rel (%p479) target = $region80
        $region79: #{tpu_custom_call.1} parent=55 // pred_region
          %482 = dma.done [#allocation13], 1024
        $region80: #{tpu_custom_call.1} parent=55 // pred_fallthru
          _
        %s483 = sand.u32 %s61, 1
        %s484 = scalar_lea.sflag [#allocation4], %s483
        %s485 = sand.u32 %s61, 1
        %s486 = smul.addr %s485, 16
        %s487 = scalar_lea.vmem [#allocation3], %s486
        %p488 = pneg %p74
        %p489 = pneg %p71
        %s490 = sand.u32 %s31, 1
        %s491 = scalar_lea.sflag [#allocation7], %s490
        %s492 = sand.u32 %s89, 1
        %s493 = smul.addr %s492, 256
        %s494 = scalar_lea.vmem [#allocation6], %s493
        %p495 = pneg %p102
        %p496 = pneg %p99
        %s497 = sand.u32 %s31, 1
        %s498 = scalar_lea.sflag [#allocation7], %s497
        %s499 = sand.u32 %s125, 1
        %s500 = smul.addr %s499, 16
        %s501 = scalar_lea.vmem [#allocation8], %s500
        %p502 = pneg %p138
        %p503 = pneg %p135
        %p504 = pneg %p159
        %p505 = pneg %p156
        %p506 = pneg %p180
        %p507 = pneg %p177
        %p508 = pneg %p201
        %p509 = pneg %p198
        %p510 = pneg %p222
        %p511 = pneg %p219
        %p512 = pneg %p243
        %p513 = pneg %p240
        %p514 = pneg %p264
        %p515 = pneg %p261
        %p516 = pneg %p292
        %p517 = pneg %p289
        %s518 = sand.u32 %s279, 1
        %s519 = scalar_lea.sflag [#allocation5], %s518
        %s520 = sand.u32 %s279, 1
        %s521 = smul.addr %s520, 256
        %s522 = scalar_lea.vmem [#allocation14], %s521
        %s523 = smul.u32 %s36, 16
        %s524 = ssub.s32 %s523, 1
        %p525 = scmp.gt.s32.totalorder %s524, 0
        %s526 = scalar_select %p525, %s524, 0
        %s527 = smul.u32 16, %s36
        %s528 = smul.u32 %s36, 16
        %s529 = sadd.s32 %s528, 16
        %p530 = scmp.lt.s32.totalorder %s529, 15
        %s531 = scalar_select %p530, %s529, 15
        %s532 = smul.u32 16, %s36
        %p534 = scmp.eq.s32.totalorder %s36, 0
        %v535 = vld [vmem:[#allocation9] sm:$0xf]
        %v536 = vld [vmem:[#allocation9 + $0x4] sm:$0xf]
        %v537 = vld [vmem:[#allocation9 + $0x8] sm:$0xf]
        %v538 = vld [vmem:[#allocation9 + $0xc] sm:$0xf]
        %v539 = vld [vmem:[#allocation9 + $0x10] sm:$0xf]
        %v540 = vld [vmem:[#allocation9 + $0x14] sm:$0xf]
        %v541 = vld [vmem:[#allocation9 + $0x18] sm:$0xf]
        %v542 = vld [vmem:[#allocation9 + $0x1c] sm:$0xf]
        %v543 = vld [vmem:[#allocation9 + $0x20] sm:$0xf]
        %v544 = vld [vmem:[#allocation9 + $0x24] sm:$0xf]
        %v545 = vld [vmem:[#allocation9 + $0x28] sm:$0xf]
        %v546 = vld [vmem:[#allocation9 + $0x2c] sm:$0xf]
        %v547 = vld [vmem:[#allocation9 + $0x30] sm:$0xf]
        %v548 = vld [vmem:[#allocation9 + $0x34] sm:$0xf]
        %v549 = vld [vmem:[#allocation9 + $0x38] sm:$0xf]
        %v550 = vld [vmem:[#allocation9 + $0x3c] sm:$0xf]
        %v551 = vld [vmem:[%s6] sm:$0x1]
        %v552 = vld [vmem:[%s457] sm:$0xff]
        %v553 = vld [vmem:[%s457 + $0x8] sm:$0xff]
        %v554 = vld [vmem:[%s457 + $0x10] sm:$0xff]
        %v555 = vld [vmem:[%s457 + $0x18] sm:$0xff]
        %v556 = vld [vmem:[%s457 + $0x20] sm:$0xff]
        %v557 = vld [vmem:[%s457 + $0x28] sm:$0xff]
        %v558 = vld [vmem:[%s457 + $0x30] sm:$0xff]
        %v559 = vld [vmem:[%s457 + $0x38] sm:$0xff]
        %v560 = vld [vmem:[%s457 + $0x40] sm:$0xff]
        %v561 = vld [vmem:[%s457 + $0x48] sm:$0xff]
        %v562 = vld [vmem:[%s457 + $0x50] sm:$0xff]
        %v563 = vld [vmem:[%s457 + $0x58] sm:$0xff]
        %v564 = vld [vmem:[%s457 + $0x60] sm:$0xff]
        %v565 = vld [vmem:[%s457 + $0x68] sm:$0xff]
        %v566 = vld [vmem:[%s457 + $0x70] sm:$0xff]
        %v567 = vld [vmem:[%s457 + $0x78] sm:$0xff]
        %v568 = vld [vmem:[%s457 + $0x80] sm:$0xff]
        %v569 = vld [vmem:[%s457 + $0x88] sm:$0xff]
        %v570 = vld [vmem:[%s457 + $0x90] sm:$0xff]
        %v571 = vld [vmem:[%s457 + $0x98] sm:$0xff]
        %v572 = vld [vmem:[%s457 + $0xa0] sm:$0xff]
        %v573 = vld [vmem:[%s457 + $0xa8] sm:$0xff]
        %v574 = vld [vmem:[%s457 + $0xb0] sm:$0xff]
        %v575 = vld [vmem:[%s457 + $0xb8] sm:$0xff]
        %v576 = vld [vmem:[%s457 + $0xc0] sm:$0xff]
        %v577 = vld [vmem:[%s457 + $0xc8] sm:$0xff]
        %v578 = vld [vmem:[%s457 + $0xd0] sm:$0xff]
        %v579 = vld [vmem:[%s457 + $0xd8] sm:$0xff]
        %v580 = vld [vmem:[%s457 + $0xe0] sm:$0xff]
        %v581 = vld [vmem:[%s457 + $0xe8] sm:$0xff]
        %v582 = vld [vmem:[%s457 + $0xf0] sm:$0xff]
        %v583 = vld [vmem:[%s457 + $0xf8] sm:$0xff]
        %v584 = vpack.c.bf16 %v553, %v552
        %v585 = vpack.c.bf16 %v555, %v554
        %v586 = vpack.c.bf16 %v557, %v556
        %v587 = vpack.c.bf16 %v559, %v558
        %v588 = vpack.c.bf16 %v561, %v560
        %v589 = vpack.c.bf16 %v563, %v562
        %v590 = vpack.c.bf16 %v565, %v564
        %v591 = vpack.c.bf16 %v567, %v566
        %v592 = vpack.c.bf16 %v569, %v568
        %v593 = vpack.c.bf16 %v571, %v570
        %v594 = vpack.c.bf16 %v573, %v572
        %v595 = vpack.c.bf16 %v575, %v574
        %v596 = vpack.c.bf16 %v577, %v576
        %v597 = vpack.c.bf16 %v579, %v578
        %v598 = vpack.c.bf16 %v581, %v580
        %v599 = vpack.c.bf16 %v583, %v582
        %v601 = vlaneseq
        %v602 = vshrl.u32 %v601, 7
        %v603 = vsub.s32 0, %v602
        %v604 = vrot.slane %v551, %v603
        %v622 = vunpack.c.l.b16 %v535
        %v623 = vunpack.c.l.b16 %v536
        %v624 = vunpack.c.l.b16 %v537
        %v625 = vunpack.c.l.b16 %v538
        %v626 = vunpack.c.l.b16 %v539
        %v627 = vunpack.c.l.b16 %v540
        %v628 = vunpack.c.l.b16 %v541
        %v629 = vunpack.c.l.b16 %v542
        %v630 = vunpack.c.l.b16 %v543
        %v631 = vunpack.c.l.b16 %v544
        %v632 = vunpack.c.l.b16 %v545
        %v633 = vunpack.c.l.b16 %v546
        %v634 = vunpack.c.l.b16 %v547
        %v635 = vunpack.c.l.b16 %v548
        %v636 = vunpack.c.l.b16 %v549
        %v637 = vunpack.c.l.b16 %v550
        %v638 = vpack.c.b16 %v623, %v622
        %v639 = vpack.c.b16 %v625, %v624
        %v640 = vpack.c.b16 %v627, %v626
        %v641 = vpack.c.b16 %v629, %v628
        %v642 = vpack.c.b16 %v631, %v630
        %v643 = vpack.c.b16 %v633, %v632
        %v644 = vpack.c.b16 %v635, %v634
        %v645 = vpack.c.b16 %v637, %v636
        %654 = vmatprep.subr.bf16.mxu0 0
        %655 = vmatpush1.bf16.msra.mxu0 %v638
        %656 = vmatprep.subr.bf16.mxu0 0
        %657 = vmatpush1.bf16.msra.mxu0 %v639
        %658 = vmatprep.subr.bf16.mxu0 0
        %659 = vmatpush1.bf16.msra.mxu0 %v640
        %660 = vmatprep.subr.bf16.mxu0 0
        %661 = vmatpush1.bf16.msra.mxu0 %v641
        %662 = vmatprep.subr.bf16.mxu0 0
        %663 = vmatpush1.bf16.msra.mxu0 %v642
        %664 = vmatprep.subr.bf16.mxu0 0
        %665 = vmatpush1.bf16.msra.mxu0 %v643
        %666 = vmatprep.subr.bf16.mxu0 0
        %667 = vmatpush1.bf16.msra.mxu0 %v644
        %668 = vmatprep.subr.bf16.mxu0 0
        %669 = vmatpush1.bf16.msra.mxu0 %v645
        %670 = vmatprep.subr.bf16.mxu0 0
        %671 = vmatpush1.bf16.msra.mxu0 0
        %672 = vmatprep.subr.bf16.mxu0 0
        %673 = vmatpush1.bf16.msra.mxu0 0
        %674 = vmatprep.subr.bf16.mxu0 0
        %675 = vmatpush1.bf16.msra.mxu0 0
        %676 = vmatprep.subr.bf16.mxu0 0
        %677 = vmatpush1.bf16.msra.mxu0 0
        %678 = vmatprep.subr.bf16.mxu0 0
        %679 = vmatpush1.bf16.msra.mxu0 0
        %680 = vmatprep.subr.bf16.mxu0 0
        %681 = vmatpush1.bf16.msra.mxu0 0
        %682 = vmatprep.subr.bf16.mxu0 0
        %683 = vmatpush1.bf16.msra.mxu0 0
        %684 = vmatprep.subr.bf16.mxu0 0
        %685 = vmatpush1.bf16.msra.mxu0 0
        %686 = vmatprep.mubr.bf16.mxu0 0
        %687 = vmatmul.mubr.bf16.gmra.mrb[0].mxu0 %v584
        %v688 = vpop.f32.mrb[0].mxu0
        %v689 = vadd.f32 %v604, %v688
        %v690 = vpop.f32.mrb[0].mxu0
        %v691 = vpop.f32.mrb[0].mxu0
        %v692 = vadd.f32 %v604, %v691
        %v693 = vpop.f32.mrb[0].mxu0
        %694 = vmatprep.mubr.bf16.mxu0 0
        %695 = vmatmul.mubr.bf16.gmra.mrb[0].mxu0 %v585
        %v696 = vpop.f32.mrb[0].mxu0
        %v697 = vadd.f32 %v604, %v696
        %v698 = vpop.f32.mrb[0].mxu0
        %v699 = vpop.f32.mrb[0].mxu0
        %v700 = vadd.f32 %v604, %v699
        %v701 = vpop.f32.mrb[0].mxu0
        %702 = vmatprep.mubr.bf16.mxu0 0
        %703 = vmatmul.mubr.bf16.gmra.mrb[0].mxu0 %v586
        %v704 = vpop.f32.mrb[0].mxu0
        %v705 = vadd.f32 %v604, %v704
        %v706 = vpop.f32.mrb[0].mxu0
        %v707 = vpop.f32.mrb[0].mxu0
        %v708 = vadd.f32 %v604, %v707
        %v709 = vpop.f32.mrb[0].mxu0
        %710 = vmatprep.mubr.bf16.mxu0 0
        %711 = vmatmul.mubr.bf16.gmra.mrb[0].mxu0 %v587
        %v712 = vpop.f32.mrb[0].mxu0
        %v713 = vadd.f32 %v604, %v712
        %v714 = vpop.f32.mrb[0].mxu0
        %v715 = vpop.f32.mrb[0].mxu0
        %v716 = vadd.f32 %v604, %v715
        %v717 = vpop.f32.mrb[0].mxu0
        %718 = vmatprep.mubr.bf16.mxu0 0
        %719 = vmatmul.mubr.bf16.gmra.mrb[0].mxu0 %v588
        %v720 = vpop.f32.mrb[0].mxu0
        %v721 = vadd.f32 %v604, %v720
        %v722 = vpop.f32.mrb[0].mxu0
        %v723 = vpop.f32.mrb[0].mxu0
        %v724 = vadd.f32 %v604, %v723
        %v725 = vpop.f32.mrb[0].mxu0
        %726 = vmatprep.mubr.bf16.mxu0 0
        %727 = vmatmul.mubr.bf16.gmra.mrb[0].mxu0 %v589
        %v728 = vpop.f32.mrb[0].mxu0
        %v729 = vadd.f32 %v604, %v728
        %v730 = vpop.f32.mrb[0].mxu0
        %v731 = vpop.f32.mrb[0].mxu0
        %v732 = vadd.f32 %v604, %v731
        %v733 = vpop.f32.mrb[0].mxu0
        %734 = vmatprep.mubr.bf16.mxu0 0
        %735 = vmatmul.mubr.bf16.gmra.mrb[0].mxu0 %v590
        %v736 = vpop.f32.mrb[0].mxu0
        %v737 = vadd.f32 %v604, %v736
        %v738 = vpop.f32.mrb[0].mxu0
        %v739 = vpop.f32.mrb[0].mxu0
        %v740 = vadd.f32 %v604, %v739
        %v741 = vpop.f32.mrb[0].mxu0
        %742 = vmatprep.mubr.bf16.mxu0 0
        %743 = vmatmul.mubr.bf16.gmra.mrb[0].mxu0 %v591
        %v744 = vpop.f32.mrb[0].mxu0
        %v745 = vadd.f32 %v604, %v744
        %v746 = vpop.f32.mrb[0].mxu0
        %v747 = vpop.f32.mrb[0].mxu0
        %v748 = vadd.f32 %v604, %v747
        %v749 = vpop.f32.mrb[0].mxu0
        %750 = vmatprep.mubr.bf16.mxu0 0
        %751 = vmatmul.mubr.bf16.gmra.mrb[0].mxu0 %v592
        %v752 = vpop.f32.mrb[0].mxu0
        %v753 = vadd.f32 %v604, %v752
        %v754 = vpop.f32.mrb[0].mxu0
        %v755 = vpop.f32.mrb[0].mxu0
        %v756 = vadd.f32 %v604, %v755
        %v757 = vpop.f32.mrb[0].mxu0
        %758 = vmatprep.mubr.bf16.mxu0 0
        %759 = vmatmul.mubr.bf16.gmra.mrb[0].mxu0 %v593
        %v760 = vpop.f32.mrb[0].mxu0
        %v761 = vadd.f32 %v604, %v760
        %v762 = vpop.f32.mrb[0].mxu0
        %v763 = vpop.f32.mrb[0].mxu0
        %v764 = vadd.f32 %v604, %v763
        %v765 = vpop.f32.mrb[0].mxu0
        %766 = vmatprep.mubr.bf16.mxu0 0
        %767 = vmatmul.mubr.bf16.gmra.mrb[0].mxu0 %v594
        %v768 = vpop.f32.mrb[0].mxu0
        %v769 = vadd.f32 %v604, %v768
        %v770 = vpop.f32.mrb[0].mxu0
        %v771 = vpop.f32.mrb[0].mxu0
        %v772 = vadd.f32 %v604, %v771
        %v773 = vpop.f32.mrb[0].mxu0
        %774 = vmatprep.mubr.bf16.mxu0 0
        %775 = vmatmul.mubr.bf16.gmra.mrb[0].mxu0 %v595
        %v776 = vpop.f32.mrb[0].mxu0
        %v777 = vadd.f32 %v604, %v776
        %v778 = vpop.f32.mrb[0].mxu0
        %v779 = vpop.f32.mrb[0].mxu0
        %v780 = vadd.f32 %v604, %v779
        %v781 = vpop.f32.mrb[0].mxu0
        %782 = vmatprep.mubr.bf16.mxu0 0
        %783 = vmatmul.mubr.bf16.gmra.mrb[0].mxu0 %v596
        %v784 = vpop.f32.mrb[0].mxu0
        %v785 = vadd.f32 %v604, %v784
        %v786 = vpop.f32.mrb[0].mxu0
        %v787 = vpop.f32.mrb[0].mxu0
        %v788 = vadd.f32 %v604, %v787
        %v789 = vpop.f32.mrb[0].mxu0
        %790 = vmatprep.mubr.bf16.mxu0 0
        %791 = vmatmul.mubr.bf16.gmra.mrb[0].mxu0 %v597
        %v792 = vpop.f32.mrb[0].mxu0
        %v793 = vadd.f32 %v604, %v792
        %v794 = vpop.f32.mrb[0].mxu0
        %v795 = vpop.f32.mrb[0].mxu0
        %v796 = vadd.f32 %v604, %v795
        %v797 = vpop.f32.mrb[0].mxu0
        %798 = vmatprep.mubr.bf16.mxu0 0
        %799 = vmatmul.mubr.bf16.gmra.mrb[0].mxu0 %v598
        %v800 = vpop.f32.mrb[0].mxu0
        %v801 = vadd.f32 %v604, %v800
        %v802 = vpop.f32.mrb[0].mxu0
        %v803 = vpop.f32.mrb[0].mxu0
        %v804 = vadd.f32 %v604, %v803
        %v805 = vpop.f32.mrb[0].mxu0
        %806 = vmatprep.mubr.bf16.mxu0 0
        %807 = vmatmul.mubr.bf16.gmra.mrb[0].mxu0 %v599
        %v808 = vpop.f32.mrb[0].mxu0
        %v809 = vadd.f32 %v604, %v808
        %v810 = vpop.f32.mrb[0].mxu0
        %v811 = vpop.f32.mrb[0].mxu0
        %v812 = vadd.f32 %v604, %v811
        %v813 = vpop.f32.mrb[0].mxu0
        %814 = vdwg.mxu0
        %v815 = vmax.f32 %v689, 0.0
        %v816 = vmax.f32 %v692, 0.0
        %v817 = vmax.f32 %v697, 0.0
        %v818 = vmax.f32 %v700, 0.0
        %v819 = vmax.f32 %v705, 0.0
        %v820 = vmax.f32 %v708, 0.0
        %v821 = vmax.f32 %v713, 0.0
        %v822 = vmax.f32 %v716, 0.0
        %v823 = vmax.f32 %v721, 0.0
        %v824 = vmax.f32 %v724, 0.0
        %v825 = vmax.f32 %v729, 0.0
        %v826 = vmax.f32 %v732, 0.0
        %v827 = vmax.f32 %v737, 0.0
        %v828 = vmax.f32 %v740, 0.0
        %v829 = vmax.f32 %v745, 0.0
        %v830 = vmax.f32 %v748, 0.0
        %v831 = vmax.f32 %v753, 0.0
        %v832 = vmax.f32 %v756, 0.0
        %v833 = vmax.f32 %v761, 0.0
        %v834 = vmax.f32 %v764, 0.0
        %v835 = vmax.f32 %v769, 0.0
        %v836 = vmax.f32 %v772, 0.0
        %v837 = vmax.f32 %v777, 0.0
        %v838 = vmax.f32 %v780, 0.0
        %v839 = vmax.f32 %v785, 0.0
        %v840 = vmax.f32 %v788, 0.0
        %v841 = vmax.f32 %v793, 0.0
        %v842 = vmax.f32 %v796, 0.0
        %v843 = vmax.f32 %v801, 0.0
        %v844 = vmax.f32 %v804, 0.0
        %v845 = vmax.f32 %v809, 0.0
        %v846 = vmax.f32 %v812, 0.0
        %v847 = vpack.c.bf16 %v816, %v815
        %v848 = vpack.c.bf16 %v818, %v817
        %v849 = vpack.c.bf16 %v820, %v819
        %v850 = vpack.c.bf16 %v822, %v821
        %v851 = vpack.c.bf16 %v824, %v823
        %v852 = vpack.c.bf16 %v826, %v825
        %v853 = vpack.c.bf16 %v828, %v827
        %v854 = vpack.c.bf16 %v830, %v829
        %v855 = vpack.c.bf16 %v832, %v831
        %v856 = vpack.c.bf16 %v834, %v833
        %v857 = vpack.c.bf16 %v836, %v835
        %v858 = vpack.c.bf16 %v838, %v837
        %v859 = vpack.c.bf16 %v840, %v839
        %v860 = vpack.c.bf16 %v842, %v841
        %v861 = vpack.c.bf16 %v844, %v843
        %v862 = vpack.c.bf16 %v846, %v845
        %v879 = vunpack.c.l.b16 %v847
        %v880 = vunpack.c.h.b16 %v847
        %v881 = vunpack.c.l.b16 %v848
        %v882 = vunpack.c.h.b16 %v848
        %v883 = vunpack.c.l.b16 %v849
        %v884 = vunpack.c.h.b16 %v849
        %v885 = vunpack.c.l.b16 %v850
        %v886 = vunpack.c.h.b16 %v850
        %v887 = vunpack.c.l.b16 %v851
        %v888 = vunpack.c.h.b16 %v851
        %v889 = vunpack.c.l.b16 %v852
        %v890 = vunpack.c.h.b16 %v852
        %v891 = vunpack.c.l.b16 %v853
        %v892 = vunpack.c.h.b16 %v853
        %v893 = vunpack.c.l.b16 %v854
        %v894 = vunpack.c.h.b16 %v854
        %v895 = vunpack.c.l.b16 %v855
        %v896 = vunpack.c.h.b16 %v855
        %v897 = vunpack.c.l.b16 %v856
        %v898 = vunpack.c.h.b16 %v856
        %v899 = vunpack.c.l.b16 %v857
        %v900 = vunpack.c.h.b16 %v857
        %v901 = vunpack.c.l.b16 %v858
        %v902 = vunpack.c.h.b16 %v858
        %v903 = vunpack.c.l.b16 %v859
        %v904 = vunpack.c.h.b16 %v859
        %v905 = vunpack.c.l.b16 %v860
        %v906 = vunpack.c.h.b16 %v860
        %v907 = vunpack.c.l.b16 %v861
        %v908 = vunpack.c.h.b16 %v861
        %v909 = vunpack.c.l.b16 %v862
        %v910 = vunpack.c.h.b16 %v862
        %v911 = vpack.c.b16 %v879, %v879
        %v912 = vpack.c.b16 %v880, %v880
        %v913 = vpack.c.b16 %v881, %v881
        %v914 = vpack.c.b16 %v882, %v882
        %v915 = vpack.c.b16 %v883, %v883
        %v916 = vpack.c.b16 %v884, %v884
        %v917 = vpack.c.b16 %v885, %v885
        %v918 = vpack.c.b16 %v886, %v886
        %v919 = vpack.c.b16 %v887, %v887
        %v920 = vpack.c.b16 %v888, %v888
        %v921 = vpack.c.b16 %v889, %v889
        %v922 = vpack.c.b16 %v890, %v890
        %v923 = vpack.c.b16 %v891, %v891
        %v924 = vpack.c.b16 %v892, %v892
        %v925 = vpack.c.b16 %v893, %v893
        %v926 = vpack.c.b16 %v894, %v894
        %v927 = vpack.c.b16 %v895, %v895
        %v928 = vpack.c.b16 %v896, %v896
        %v929 = vpack.c.b16 %v897, %v897
        %v930 = vpack.c.b16 %v898, %v898
        %v931 = vpack.c.b16 %v899, %v899
        %v932 = vpack.c.b16 %v900, %v900
        %v933 = vpack.c.b16 %v901, %v901
        %v934 = vpack.c.b16 %v902, %v902
        %v935 = vpack.c.b16 %v903, %v903
        %v936 = vpack.c.b16 %v904, %v904
        %v937 = vpack.c.b16 %v905, %v905
        %v938 = vpack.c.b16 %v906, %v906
        %v939 = vpack.c.b16 %v907, %v907
        %v940 = vpack.c.b16 %v908, %v908
        %v941 = vpack.c.b16 %v909, %v909
        %v942 = vpack.c.b16 %v910, %v910
        %vm943 = vsmask.f32 256
        %vm944 = vsmask.f32 4368
        %vm945 = vmor %vm943, %vm944
        %v947 = vshrl.u32 %v911, 16
        %v949 = vrot.slane %v947, 7
        %v950 = vshll.u32 %v911, 16
        %v952 = vor.u32 %v949, %v950
        %v953 = vrot.slane %v949, 4
        %v955 = vshrl.u32 %v912, 16
        %v957 = vrot.slane %v955, 7
        %v958 = vshll.u32 %v912, 16
        %v960 = vor.u32 %v957, %v958
        %v961 = vsel %vm945, %v953, %v960
        %v962 = vrot.slane %v957, 4
        %v964 = vshrl.u32 %v913, 16
        %v966 = vrot.slane %v964, 7
        %v967 = vshll.u32 %v913, 16
        %v969 = vor.u32 %v966, %v967
        %v970 = vrot.slane %v966, 4
        %v972 = vshrl.u32 %v914, 16
        %v974 = vrot.slane %v972, 7
        %v975 = vshll.u32 %v914, 16
        %v977 = vor.u32 %v974, %v975
        %v978 = vsel %vm945, %v970, %v977
        %v979 = vrot.slane %v974, 4
        %v981 = vshrl.u32 %v915, 16
        %v983 = vrot.slane %v981, 7
        %v984 = vshll.u32 %v915, 16
        %v986 = vor.u32 %v983, %v984
        %v987 = vrot.slane %v983, 4
        %v989 = vshrl.u32 %v916, 16
        %v991 = vrot.slane %v989, 7
        %v992 = vshll.u32 %v916, 16
        %v994 = vor.u32 %v991, %v992
        %v995 = vsel %vm945, %v987, %v994
        %v996 = vrot.slane %v991, 4
        %v998 = vshrl.u32 %v917, 16
        %v1000 = vrot.slane %v998, 7
        %v1001 = vshll.u32 %v917, 16
        %v1003 = vor.u32 %v1000, %v1001
        %v1004 = vrot.slane %v1000, 4
        %v1006 = vshrl.u32 %v918, 16
        %v1008 = vrot.slane %v1006, 7
        %v1009 = vshll.u32 %v918, 16
        %v1011 = vor.u32 %v1008, %v1009
        %v1012 = vsel %vm945, %v1004, %v1011
        %v1013 = vrot.slane %v1008, 4
        %v1015 = vshrl.u32 %v919, 16
        %v1017 = vrot.slane %v1015, 7
        %v1018 = vshll.u32 %v919, 16
        %v1020 = vor.u32 %v1017, %v1018
        %v1021 = vrot.slane %v1017, 4
        %v1023 = vshrl.u32 %v920, 16
        %v1025 = vrot.slane %v1023, 7
        %v1026 = vshll.u32 %v920, 16
        %v1028 = vor.u32 %v1025, %v1026
        %v1029 = vsel %vm945, %v1021, %v1028
        %v1030 = vrot.slane %v1025, 4
        %v1032 = vshrl.u32 %v921, 16
        %v1034 = vrot.slane %v1032, 7
        %v1035 = vshll.u32 %v921, 16
        %v1037 = vor.u32 %v1034, %v1035
        %v1038 = vrot.slane %v1034, 4
        %v1040 = vshrl.u32 %v922, 16
        %v1042 = vrot.slane %v1040, 7
        %v1043 = vshll.u32 %v922, 16
        %v1045 = vor.u32 %v1042, %v1043
        %v1046 = vsel %vm945, %v1038, %v1045
        %v1047 = vrot.slane %v1042, 4
        %v1049 = vshrl.u32 %v923, 16
        %v1051 = vrot.slane %v1049, 7
        %v1052 = vshll.u32 %v923, 16
        %v1054 = vor.u32 %v1051, %v1052
        %v1055 = vrot.slane %v1051, 4
        %v1057 = vshrl.u32 %v924, 16
        %v1059 = vrot.slane %v1057, 7
        %v1060 = vshll.u32 %v924, 16
        %v1062 = vor.u32 %v1059, %v1060
        %v1063 = vsel %vm945, %v1055, %v1062
        %v1064 = vrot.slane %v1059, 4
        %v1066 = vshrl.u32 %v925, 16
        %v1068 = vrot.slane %v1066, 7
        %v1069 = vshll.u32 %v925, 16
        %v1071 = vor.u32 %v1068, %v1069
        %v1072 = vrot.slane %v1068, 4
        %v1074 = vshrl.u32 %v926, 16
        %v1076 = vrot.slane %v1074, 7
        %v1077 = vshll.u32 %v926, 16
        %v1079 = vor.u32 %v1076, %v1077
        %v1080 = vsel %vm945, %v1072, %v1079
        %v1081 = vrot.slane %v1076, 4
        %v1083 = vshrl.u32 %v927, 16
        %v1085 = vrot.slane %v1083, 7
        %v1086 = vshll.u32 %v927, 16
        %v1088 = vor.u32 %v1085, %v1086
        %v1089 = vrot.slane %v1085, 4
        %v1091 = vshrl.u32 %v928, 16
        %v1093 = vrot.slane %v1091, 7
        %v1094 = vshll.u32 %v928, 16
        %v1096 = vor.u32 %v1093, %v1094
        %v1097 = vsel %vm945, %v1089, %v1096
        %v1098 = vrot.slane %v1093, 4
        %v1100 = vshrl.u32 %v929, 16
        %v1102 = vrot.slane %v1100, 7
        %v1103 = vshll.u32 %v929, 16
        %v1105 = vor.u32 %v1102, %v1103
        %v1106 = vrot.slane %v1102, 4
        %v1108 = vshrl.u32 %v930, 16
        %v1110 = vrot.slane %v1108, 7
        %v1111 = vshll.u32 %v930, 16
        %v1113 = vor.u32 %v1110, %v1111
        %v1114 = vsel %vm945, %v1106, %v1113
        %v1115 = vrot.slane %v1110, 4
        %v1117 = vshrl.u32 %v931, 16
        %v1119 = vrot.slane %v1117, 7
        %v1120 = vshll.u32 %v931, 16
        %v1122 = vor.u32 %v1119, %v1120
        %v1123 = vrot.slane %v1119, 4
        %v1125 = vshrl.u32 %v932, 16
        %v1127 = vrot.slane %v1125, 7
        %v1128 = vshll.u32 %v932, 16
        %v1130 = vor.u32 %v1127, %v1128
        %v1131 = vsel %vm945, %v1123, %v1130
        %v1132 = vrot.slane %v1127, 4
        %v1134 = vshrl.u32 %v933, 16
        %v1136 = vrot.slane %v1134, 7
        %v1137 = vshll.u32 %v933, 16
        %v1139 = vor.u32 %v1136, %v1137
        %v1140 = vrot.slane %v1136, 4
        %v1142 = vshrl.u32 %v934, 16
        %v1144 = vrot.slane %v1142, 7
        %v1145 = vshll.u32 %v934, 16
        %v1147 = vor.u32 %v1144, %v1145
        %v1148 = vsel %vm945, %v1140, %v1147
        %v1149 = vrot.slane %v1144, 4
        %v1151 = vshrl.u32 %v935, 16
        %v1153 = vrot.slane %v1151, 7
        %v1154 = vshll.u32 %v935, 16
        %v1156 = vor.u32 %v1153, %v1154
        %v1157 = vrot.slane %v1153, 4
        %v1159 = vshrl.u32 %v936, 16
        %v1161 = vrot.slane %v1159, 7
        %v1162 = vshll.u32 %v936, 16
        %v1164 = vor.u32 %v1161, %v1162
        %v1165 = vsel %vm945, %v1157, %v1164
        %v1166 = vrot.slane %v1161, 4
        %v1168 = vshrl.u32 %v937, 16
        %v1170 = vrot.slane %v1168, 7
        %v1171 = vshll.u32 %v937, 16
        %v1173 = vor.u32 %v1170, %v1171
        %v1174 = vrot.slane %v1170, 4
        %v1176 = vshrl.u32 %v938, 16
        %v1178 = vrot.slane %v1176, 7
        %v1179 = vshll.u32 %v938, 16
        %v1181 = vor.u32 %v1178, %v1179
        %v1182 = vsel %vm945, %v1174, %v1181
        %v1183 = vrot.slane %v1178, 4
        %v1185 = vshrl.u32 %v939, 16
        %v1187 = vrot.slane %v1185, 7
        %v1188 = vshll.u32 %v939, 16
        %v1190 = vor.u32 %v1187, %v1188
        %v1191 = vrot.slane %v1187, 4
        %v1193 = vshrl.u32 %v940, 16
        %v1195 = vrot.slane %v1193, 7
        %v1196 = vshll.u32 %v940, 16
        %v1198 = vor.u32 %v1195, %v1196
        %v1199 = vsel %vm945, %v1191, %v1198
        %v1200 = vrot.slane %v1195, 4
        %v1202 = vshrl.u32 %v941, 16
        %v1204 = vrot.slane %v1202, 7
        %v1205 = vshll.u32 %v941, 16
        %v1207 = vor.u32 %v1204, %v1205
        %v1208 = vrot.slane %v1204, 4
        %v1210 = vshrl.u32 %v942, 16
        %v1212 = vrot.slane %v1210, 7
        %v1213 = vshll.u32 %v942, 16
        %v1215 = vor.u32 %v1212, %v1213
        %v1216 = vsel %vm945, %v1208, %v1215
        %v1217 = vrot.slane %v1212, 4
        %s1266 = scalar_lea.vmem [#allocation2], 12
        %vm1267 = vcmask 1043456
        %vm1268 = vsmask.f32 7938
        %vm1269 = vmand %vm1267, %vm1268
        %v1270 = vld [vmem:[%s1266] sm:$0xf]
        %v1271 = vsel %vm1269, %v952, %v1270
        %1272 = vst [vmem:[%s1266] sm:$0xf] %v1271
        %1273 = vst [vmem:[%s1266 + $0x4] sm:$0xf] %v961
        %vm1274 = vcmask 1040384
        %vm1275 = vmand %vm1274, %vm943
        %v1276 = vld [vmem:[%s1266 + $0x8] sm:$0x1]
        %v1277 = vsel %vm1275, %v962, %v1276
        %1278 = vst [vmem:[%s1266 + $0x8] sm:$0x1] %v1277
        %v1279 = vld [vmem:[%s1266 + $0xc] sm:$0xf]
        %v1280 = vsel %vm1269, %v969, %v1279
        %1281 = vst [vmem:[%s1266 + $0xc] sm:$0xf] %v1280
        %1282 = vst [vmem:[%s1266 + $0x10] sm:$0xf] %v978
        %v1283 = vld [vmem:[%s1266 + $0x14] sm:$0x1]
        %v1284 = vsel %vm1275, %v979, %v1283
        %1285 = vst [vmem:[%s1266 + $0x14] sm:$0x1] %v1284
        %v1286 = vld [vmem:[%s1266 + $0x18] sm:$0xf]
        %v1287 = vsel %vm1269, %v986, %v1286
        %1288 = vst [vmem:[%s1266 + $0x18] sm:$0xf] %v1287
        %1289 = vst [vmem:[%s1266 + $0x1c] sm:$0xf] %v995
        %v1290 = vld [vmem:[%s1266 + $0x20] sm:$0x1]
        %v1291 = vsel %vm1275, %v996, %v1290
        %1292 = vst [vmem:[%s1266 + $0x20] sm:$0x1] %v1291
        %v1293 = vld [vmem:[%s1266 + $0x24] sm:$0xf]
        %v1294 = vsel %vm1269, %v1003, %v1293
        %1295 = vst [vmem:[%s1266 + $0x24] sm:$0xf] %v1294
        %1296 = vst [vmem:[%s1266 + $0x28] sm:$0xf] %v1012
        %v1297 = vld [vmem:[%s1266 + $0x2c] sm:$0x1]
        %v1298 = vsel %vm1275, %v1013, %v1297
        %1299 = vst [vmem:[%s1266 + $0x2c] sm:$0x1] %v1298
        %v1300 = vld [vmem:[%s1266 + $0x30] sm:$0xf]
        %v1301 = vsel %vm1269, %v1020, %v1300
        %1302 = vst [vmem:[%s1266 + $0x30] sm:$0xf] %v1301
        %1303 = vst [vmem:[%s1266 + $0x34] sm:$0xf] %v1029
        %v1304 = vld [vmem:[%s1266 + $0x38] sm:$0x1]
        %v1305 = vsel %vm1275, %v1030, %v1304
        %1306 = vst [vmem:[%s1266 + $0x38] sm:$0x1] %v1305
        %v1307 = vld [vmem:[%s1266 + $0x3c] sm:$0xf]
        %v1308 = vsel %vm1269, %v1037, %v1307
        %1309 = vst [vmem:[%s1266 + $0x3c] sm:$0xf] %v1308
        %1310 = vst [vmem:[%s1266 + $0x40] sm:$0xf] %v1046
        %v1311 = vld [vmem:[%s1266 + $0x44] sm:$0x1]
        %v1312 = vsel %vm1275, %v1047, %v1311
        %1313 = vst [vmem:[%s1266 + $0x44] sm:$0x1] %v1312
        %v1314 = vld [vmem:[%s1266 + $0x48] sm:$0xf]
        %v1315 = vsel %vm1269, %v1054, %v1314
        %1316 = vst [vmem:[%s1266 + $0x48] sm:$0xf] %v1315
        %1317 = vst [vmem:[%s1266 + $0x4c] sm:$0xf] %v1063
        %v1318 = vld [vmem:[%s1266 + $0x50] sm:$0x1]
        %v1319 = vsel %vm1275, %v1064, %v1318
        %1320 = vst [vmem:[%s1266 + $0x50] sm:$0x1] %v1319
        %v1321 = vld [vmem:[%s1266 + $0x54] sm:$0xf]
        %v1322 = vsel %vm1269, %v1071, %v1321
        %1323 = vst [vmem:[%s1266 + $0x54] sm:$0xf] %v1322
        %1324 = vst [vmem:[%s1266 + $0x58] sm:$0xf] %v1080
        %v1325 = vld [vmem:[%s1266 + $0x5c] sm:$0x1]
        %v1326 = vsel %vm1275, %v1081, %v1325
        %1327 = vst [vmem:[%s1266 + $0x5c] sm:$0x1] %v1326
        %v1328 = vld [vmem:[%s1266 + $0x60] sm:$0xf]
        %v1329 = vsel %vm1269, %v1088, %v1328
        %1330 = vst [vmem:[%s1266 + $0x60] sm:$0xf] %v1329
        %1331 = vst [vmem:[%s1266 + $0x64] sm:$0xf] %v1097
        %v1332 = vld [vmem:[%s1266 + $0x68] sm:$0x1]
        %v1333 = vsel %vm1275, %v1098, %v1332
        %1334 = vst [vmem:[%s1266 + $0x68] sm:$0x1] %v1333
        %v1335 = vld [vmem:[%s1266 + $0x6c] sm:$0xf]
        %v1336 = vsel %vm1269, %v1105, %v1335
        %1337 = vst [vmem:[%s1266 + $0x6c] sm:$0xf] %v1336
        %1338 = vst [vmem:[%s1266 + $0x70] sm:$0xf] %v1114
        %v1339 = vld [vmem:[%s1266 + $0x74] sm:$0x1]
        %v1340 = vsel %vm1275, %v1115, %v1339
        %1341 = vst [vmem:[%s1266 + $0x74] sm:$0x1] %v1340
        %v1342 = vld [vmem:[%s1266 + $0x78] sm:$0xf]
        %v1343 = vsel %vm1269, %v1122, %v1342
        %1344 = vst [vmem:[%s1266 + $0x78] sm:$0xf] %v1343
        %1345 = vst [vmem:[%s1266 + $0x7c] sm:$0xf] %v1131
        %v1346 = vld [vmem:[%s1266 + $0x80] sm:$0x1]
        %v1347 = vsel %vm1275, %v1132, %v1346
        %1348 = vst [vmem:[%s1266 + $0x80] sm:$0x1] %v1347
        %v1349 = vld [vmem:[%s1266 + $0x84] sm:$0xf]
        %v1350 = vsel %vm1269, %v1139, %v1349
        %1351 = vst [vmem:[%s1266 + $0x84] sm:$0xf] %v1350
        %1352 = vst [vmem:[%s1266 + $0x88] sm:$0xf] %v1148
        %v1353 = vld [vmem:[%s1266 + $0x8c] sm:$0x1]
        %v1354 = vsel %vm1275, %v1149, %v1353
        %1355 = vst [vmem:[%s1266 + $0x8c] sm:$0x1] %v1354
        %v1356 = vld [vmem:[%s1266 + $0x90] sm:$0xf]
        %v1357 = vsel %vm1269, %v1156, %v1356
        %1358 = vst [vmem:[%s1266 + $0x90] sm:$0xf] %v1357
        %1359 = vst [vmem:[%s1266 + $0x94] sm:$0xf] %v1165
        %v1360 = vld [vmem:[%s1266 + $0x98] sm:$0x1]
        %v1361 = vsel %vm1275, %v1166, %v1360
        %1362 = vst [vmem:[%s1266 + $0x98] sm:$0x1] %v1361
        %v1363 = vld [vmem:[%s1266 + $0x9c] sm:$0xf]
        %v1364 = vsel %vm1269, %v1173, %v1363
        %1365 = vst [vmem:[%s1266 + $0x9c] sm:$0xf] %v1364
        %1366 = vst [vmem:[%s1266 + $0xa0] sm:$0xf] %v1182
        %v1367 = vld [vmem:[%s1266 + $0xa4] sm:$0x1]
        %v1368 = vsel %vm1275, %v1183, %v1367
        %1369 = vst [vmem:[%s1266 + $0xa4] sm:$0x1] %v1368
        %v1370 = vld [vmem:[%s1266 + $0xa8] sm:$0xf]
        %v1371 = vsel %vm1269, %v1190, %v1370
        %1372 = vst [vmem:[%s1266 + $0xa8] sm:$0xf] %v1371
        %1373 = vst [vmem:[%s1266 + $0xac] sm:$0xf] %v1199
        %v1374 = vld [vmem:[%s1266 + $0xb0] sm:$0x1]
        %v1375 = vsel %vm1275, %v1200, %v1374
        %1376 = vst [vmem:[%s1266 + $0xb0] sm:$0x1] %v1375
        %v1377 = vld [vmem:[%s1266 + $0xb4] sm:$0xf]
        %v1378 = vsel %vm1269, %v1207, %v1377
        %1379 = vst [vmem:[%s1266 + $0xb4] sm:$0xf] %v1378
        %1380 = vst [vmem:[%s1266 + $0xb8] sm:$0xf] %v1216
        %v1381 = vld [vmem:[%s1266 + $0xbc] sm:$0x1]
        %v1382 = vsel %vm1275, %v1217, %v1381
        %1383 = vst [vmem:[%s1266 + $0xbc] sm:$0x1] %v1382
        %p1384 = scmp.ne.s32.totalorder %s36, 0
        // Predicated region
        $region81: #{tpu_custom_call.1} parent=55 // pred_check
          %p1385 = pneg %p1384
        $region82: #{tpu_custom_call.1} parent=55 // pred_check_branch
          %1387 = sbr.rel (%p1385) target = $region84
        $region83: #{tpu_custom_call.1} parent=55 // pred_region
          %v1388 = vld [vmem:[%s448] sm:$0xff]
          %v1389 = vld [vmem:[%s448 + $0x8] sm:$0xff]
          %v1390 = vpack.c.bf16 %v1389, %v1388
          %1391 = vmatprep.subr.bf16.mxu0 0
          %1392 = vmatpush1.bf16.msra.mxu0 %v638
          %1393 = vmatprep.subr.bf16.mxu0 0
          %1394 = vmatpush1.bf16.msra.mxu0 %v639
          %1395 = vmatprep.subr.bf16.mxu0 0
          %1396 = vmatpush1.bf16.msra.mxu0 %v640
          %1397 = vmatprep.subr.bf16.mxu0 0
          %1398 = vmatpush1.bf16.msra.mxu0 %v641
          %1399 = vmatprep.subr.bf16.mxu0 0
          %1400 = vmatpush1.bf16.msra.mxu0 %v642
          %1401 = vmatprep.subr.bf16.mxu0 0
          %1402 = vmatpush1.bf16.msra.mxu0 %v643
          %1403 = vmatprep.subr.bf16.mxu0 0
          %1404 = vmatpush1.bf16.msra.mxu0 %v644
          %1405 = vmatprep.subr.bf16.mxu0 0
          %1406 = vmatpush1.bf16.msra.mxu0 %v645
          %1407 = vmatprep.subr.bf16.mxu0 0
          %1408 = vmatpush1.bf16.msra.mxu0 0
          %1409 = vmatprep.subr.bf16.mxu0 0
          %1410 = vmatpush1.bf16.msra.mxu0 0
          %1411 = vmatprep.subr.bf16.mxu0 0
          %1412 = vmatpush1.bf16.msra.mxu0 0
          %1413 = vmatprep.subr.bf16.mxu0 0
          %1414 = vmatpush1.bf16.msra.mxu0 0
          %1415 = vmatprep.subr.bf16.mxu0 0
          %1416 = vmatpush1.bf16.msra.mxu0 0
          %1417 = vmatprep.subr.bf16.mxu0 0
          %1418 = vmatpush1.bf16.msra.mxu0 0
          %1419 = vmatprep.subr.bf16.mxu0 0
          %1420 = vmatpush1.bf16.msra.mxu0 0
          %1421 = vmatprep.subr.bf16.mxu0 0
          %1422 = vmatpush1.bf16.msra.mxu0 0
          %1423 = vmatprep.mubr.bf16.mxu0 0
          %1424 = vmatmul.mubr.bf16.gmra.mrb[0].mxu0 %v1390
          %v1425 = vpop.f32.mrb[0].mxu0
          %v1426 = vadd.f32 %v604, %v1425
          %v1427 = vpop.f32.mrb[0].mxu0
          %v1428 = vpop.f32.mrb[0].mxu0
          %v1429 = vadd.f32 %v604, %v1428
          %v1430 = vpop.f32.mrb[0].mxu0
          %1431 = vdwg.mxu0
          %v1432 = vmax.f32 %v1426, 0.0
          %v1433 = vmax.f32 %v1429, 0.0
          %v1434 = vpack.c.bf16 %v1433, %v1432
          %v1436 = vunpack.c.l.b16 %v1434
          %v1437 = vunpack.c.h.b16 %v1434
          %v1438 = vpack.c.b16 %v1436, %v1436
          %v1439 = vpack.c.b16 %v1437, %v1437
          %v1441 = vshrl.u32 %v1438, 16
          %v1443 = vrot.slane %v1441, 7
          %v1444 = vshll.u32 %v1438, 16
          %v1446 = vor.u32 %v1443, %v1444
          %v1447 = vrot.slane %v1443, 4
          %v1449 = vshrl.u32 %v1439, 16
          %v1451 = vrot.slane %v1449, 7
          %v1452 = vshll.u32 %v1439, 16
          %v1454 = vor.u32 %v1451, %v1452
          %v1455 = vsel %vm945, %v1447, %v1454
          %v1456 = vrot.slane %v1451, 4
          %v1460 = vld [vmem:[#allocation2] sm:$0xf]
          %v1461 = vsel %vm1269, %v1446, %v1460
          %1462 = vst [vmem:[#allocation2] sm:$0xf] %v1461
          %1463 = vst [vmem:[#allocation2 + $0x4] sm:$0xf] %v1455
          %v1464 = vld [vmem:[#allocation2 + $0x8] sm:$0x1]
          %v1465 = vsel %vm1275, %v1456, %v1464
          %1466 = vst [vmem:[#allocation2 + $0x8] sm:$0x1] %v1465
        $region84: #{tpu_custom_call.1} parent=55 // pred_fallthru
          _
        // Predicated region
        $region85: #{tpu_custom_call.1} parent=55 // pred_check
          %p1467 = pneg %p534
        $region86: #{tpu_custom_call.1} parent=55 // pred_check_branch
          %1469 = sbr.rel (%p1467) target = $region88
        $region87: #{tpu_custom_call.1} parent=55 // pred_region
          %1470 = vst [vmem:[#allocation2] sm:$0xf] 0
          %1471 = vst [vmem:[#allocation2 + $0x4] sm:$0xf] 0
          %1472 = vst [vmem:[#allocation2 + $0x8] sm:$0x1] 0
        $region88: #{tpu_custom_call.1} parent=55 // pred_fallthru
          _
        // Predicated region
        $region89: #{tpu_custom_call.1} parent=55 // pred_check
          %p1473 = pneg %p1384
        $region90: #{tpu_custom_call.1} parent=55 // pred_check_branch
          %1475 = sbr.rel (%p1473) target = $region92
        $region91: #{tpu_custom_call.1} parent=55 // pred_region
          %v1476 = vld [vmem:[%s466] sm:$0xff]
          %v1477 = vld [vmem:[%s466 + $0x8] sm:$0xff]
          %v1478 = vpack.c.bf16 %v1477, %v1476
          %1479 = vmatprep.subr.bf16.mxu0 0
          %1480 = vmatpush1.bf16.msra.mxu0 %v638
          %1481 = vmatprep.subr.bf16.mxu0 0
          %1482 = vmatpush1.bf16.msra.mxu0 %v639
          %1483 = vmatprep.subr.bf16.mxu0 0
          %1484 = vmatpush1.bf16.msra.mxu0 %v640
          %1485 = vmatprep.subr.bf16.mxu0 0
          %1486 = vmatpush1.bf16.msra.mxu0 %v641
          %1487 = vmatprep.subr.bf16.mxu0 0
          %1488 = vmatpush1.bf16.msra.mxu0 %v642
          %1489 = vmatprep.subr.bf16.mxu0 0
          %1490 = vmatpush1.bf16.msra.mxu0 %v643
          %1491 = vmatprep.subr.bf16.mxu0 0
          %1492 = vmatpush1.bf16.msra.mxu0 %v644
          %1493 = vmatprep.subr.bf16.mxu0 0
          %1494 = vmatpush1.bf16.msra.mxu0 %v645
          %1495 = vmatprep.subr.bf16.mxu0 0
          %1496 = vmatpush1.bf16.msra.mxu0 0
          %1497 = vmatprep.subr.bf16.mxu0 0
          %1498 = vmatpush1.bf16.msra.mxu0 0
          %1499 = vmatprep.subr.bf16.mxu0 0
          %1500 = vmatpush1.bf16.msra.mxu0 0
          %1501 = vmatprep.subr.bf16.mxu0 0
          %1502 = vmatpush1.bf16.msra.mxu0 0
          %1503 = vmatprep.subr.bf16.mxu0 0
          %1504 = vmatpush1.bf16.msra.mxu0 0
          %1505 = vmatprep.subr.bf16.mxu0 0
          %1506 = vmatpush1.bf16.msra.mxu0 0
          %1507 = vmatprep.subr.bf16.mxu0 0
          %1508 = vmatpush1.bf16.msra.mxu0 0
          %1509 = vmatprep.subr.bf16.mxu0 0
          %1510 = vmatpush1.bf16.msra.mxu0 0
          %1511 = vmatprep.mubr.bf16.mxu0 0
          %1512 = vmatmul.mubr.bf16.gmra.mrb[0].mxu0 %v1478
          %v1513 = vpop.f32.mrb[0].mxu0
          %v1514 = vadd.f32 %v604, %v1513
          %v1515 = vpop.f32.mrb[0].mxu0
          %v1516 = vpop.f32.mrb[0].mxu0
          %v1517 = vadd.f32 %v604, %v1516
          %v1518 = vpop.f32.mrb[0].mxu0
          %1519 = vdwg.mxu0
          %v1520 = vmax.f32 %v1514, 0.0
          %v1521 = vmax.f32 %v1517, 0.0
          %v1522 = vpack.c.bf16 %v1521, %v1520
          %v1524 = vunpack.c.l.b16 %v1522
          %v1525 = vunpack.c.h.b16 %v1522
          %v1526 = vpack.c.b16 %v1524, %v1524
          %v1527 = vpack.c.b16 %v1525, %v1525
          %v1529 = vshrl.u32 %v1526, 16
          %v1531 = vrot.slane %v1529, 7
          %v1532 = vshll.u32 %v1526, 16
          %v1534 = vor.u32 %v1531, %v1532
          %v1535 = vrot.slane %v1531, 4
          %v1537 = vshrl.u32 %v1527, 16
          %v1539 = vrot.slane %v1537, 7
          %v1540 = vshll.u32 %v1527, 16
          %v1542 = vor.u32 %v1539, %v1540
          %v1543 = vsel %vm945, %v1535, %v1542
          %v1544 = vrot.slane %v1539, 4
          %s1548 = scalar_lea.vmem [#allocation2], 204
          %v1549 = vld [vmem:[%s1548] sm:$0xf]
          %v1550 = vsel %vm1269, %v1534, %v1549
          %1551 = vst [vmem:[%s1548] sm:$0xf] %v1550
          %1552 = vst [vmem:[%s1548 + $0x4] sm:$0xf] %v1543
          %v1553 = vld [vmem:[%s1548 + $0x8] sm:$0x1]
          %v1554 = vsel %vm1275, %v1544, %v1553
          %1555 = vst [vmem:[%s1548 + $0x8] sm:$0x1] %v1554
        $region92: #{tpu_custom_call.1} parent=55 // pred_fallthru
          _
        // Predicated region
        $region93: #{tpu_custom_call.1} parent=55 // pred_check
          %p1556 = pneg %p534
        $region94: #{tpu_custom_call.1} parent=55 // pred_check_branch
          %1558 = sbr.rel (%p1556) target = $region96
        $region95: #{tpu_custom_call.1} parent=55 // pred_region
          %s1559 = scalar_lea.vmem [#allocation2], 204
          %1560 = vst [vmem:[%s1559] sm:$0xf] 0
          %1561 = vst [vmem:[%s1559 + $0x4] sm:$0xf] 0
          %1562 = vst [vmem:[%s1559 + $0x8] sm:$0x1] 0
        $region96: #{tpu_custom_call.1} parent=55 // pred_fallthru
          _
        %v1563 = vld [vmem:[#allocation2] sm:$0x1]
        %v1564 = vsel %vm1275, 0, %v1563
        %1565 = vst [vmem:[#allocation2] sm:$0x1] %v1564
        %v1566 = vld [vmem:[#allocation2 + $0xc] sm:$0x1]
        %v1567 = vsel %vm1275, 0, %v1566
        %1568 = vst [vmem:[#allocation2 + $0xc] sm:$0x1] %v1567
        %v1569 = vld [vmem:[#allocation2 + $0x18] sm:$0x1]
        %v1570 = vsel %vm1275, 0, %v1569
        %1571 = vst [vmem:[#allocation2 + $0x18] sm:$0x1] %v1570
        %v1572 = vld [vmem:[#allocation2 + $0x24] sm:$0x1]
        %v1573 = vsel %vm1275, 0, %v1572
        %1574 = vst [vmem:[#allocation2 + $0x24] sm:$0x1] %v1573
        %v1575 = vld [vmem:[#allocation2 + $0x30] sm:$0x1]
        %v1576 = vsel %vm1275, 0, %v1575
        %1577 = vst [vmem:[#allocation2 + $0x30] sm:$0x1] %v1576
        %v1578 = vld [vmem:[#allocation2 + $0x3c] sm:$0x1]
        %v1579 = vsel %vm1275, 0, %v1578
        %1580 = vst [vmem:[#allocation2 + $0x3c] sm:$0x1] %v1579
        %v1581 = vld [vmem:[#allocation2 + $0x48] sm:$0x1]
        %v1582 = vsel %vm1275, 0, %v1581
        %1583 = vst [vmem:[#allocation2 + $0x48] sm:$0x1] %v1582
        %v1584 = vld [vmem:[#allocation2 + $0x54] sm:$0x1]
        %v1585 = vsel %vm1275, 0, %v1584
        %1586 = vst [vmem:[#allocation2 + $0x54] sm:$0x1] %v1585
        %v1587 = vld [vmem:[#allocation2 + $0x60] sm:$0x1]
        %v1588 = vsel %vm1275, 0, %v1587
        %1589 = vst [vmem:[#allocation2 + $0x60] sm:$0x1] %v1588
        %v1590 = vld [vmem:[#allocation2 + $0x6c] sm:$0x1]
        %v1591 = vsel %vm1275, 0, %v1590
        %1592 = vst [vmem:[#allocation2 + $0x6c] sm:$0x1] %v1591
        %v1593 = vld [vmem:[#allocation2 + $0x78] sm:$0x1]
        %v1594 = vsel %vm1275, 0, %v1593
        %1595 = vst [vmem:[#allocation2 + $0x78] sm:$0x1] %v1594
        %v1596 = vld [vmem:[#allocation2 + $0x84] sm:$0x1]
        %v1597 = vsel %vm1275, 0, %v1596
        %1598 = vst [vmem:[#allocation2 + $0x84] sm:$0x1] %v1597
        %v1599 = vld [vmem:[#allocation2 + $0x90] sm:$0x1]
        %v1600 = vsel %vm1275, 0, %v1599
        %1601 = vst [vmem:[#allocation2 + $0x90] sm:$0x1] %v1600
        %v1602 = vld [vmem:[#allocation2 + $0x9c] sm:$0x1]
        %v1603 = vsel %vm1275, 0, %v1602
        %1604 = vst [vmem:[#allocation2 + $0x9c] sm:$0x1] %v1603
        %v1605 = vld [vmem:[#allocation2 + $0xa8] sm:$0x1]
        %v1606 = vsel %vm1275, 0, %v1605
        %1607 = vst [vmem:[#allocation2 + $0xa8] sm:$0x1] %v1606
        %v1608 = vld [vmem:[#allocation2 + $0xb4] sm:$0x1]
        %v1609 = vsel %vm1275, 0, %v1608
        %1610 = vst [vmem:[#allocation2 + $0xb4] sm:$0x1] %v1609
        %v1611 = vld [vmem:[#allocation2 + $0xc0] sm:$0x1]
        %v1612 = vsel %vm1275, 0, %v1611
        %1613 = vst [vmem:[#allocation2 + $0xc0] sm:$0x1] %v1612
        %v1614 = vld [vmem:[#allocation2 + $0xcc] sm:$0x1]
        %v1615 = vsel %vm1275, 0, %v1614
        %1616 = vst [vmem:[#allocation2 + $0xcc] sm:$0x1] %v1615
        %vm1617 = vmand %vm1274, %vm1268
        %v1618 = vld [vmem:[#allocation2 + $0x8] sm:$0x1]
        %v1619 = vsel %vm1617, 0, %v1618
        %1620 = vst [vmem:[#allocation2 + $0x8] sm:$0x1] %v1619
        %v1621 = vld [vmem:[#allocation2 + $0x14] sm:$0x1]
        %v1622 = vsel %vm1617, 0, %v1621
        %1623 = vst [vmem:[#allocation2 + $0x14] sm:$0x1] %v1622
        %v1624 = vld [vmem:[#allocation2 + $0x20] sm:$0x1]
        %v1625 = vsel %vm1617, 0, %v1624
        %1626 = vst [vmem:[#allocation2 + $0x20] sm:$0x1] %v1625
        %v1627 = vld [vmem:[#allocation2 + $0x2c] sm:$0x1]
        %v1628 = vsel %vm1617, 0, %v1627
        %1629 = vst [vmem:[#allocation2 + $0x2c] sm:$0x1] %v1628
        %v1630 = vld [vmem:[#allocation2 + $0x38] sm:$0x1]
        %v1631 = vsel %vm1617, 0, %v1630
        %1632 = vst [vmem:[#allocation2 + $0x38] sm:$0x1] %v1631
        %v1633 = vld [vmem:[#allocation2 + $0x44] sm:$0x1]
        %v1634 = vsel %vm1617, 0, %v1633
        %1635 = vst [vmem:[#allocation2 + $0x44] sm:$0x1] %v1634
        %v1636 = vld [vmem:[#allocation2 + $0x50] sm:$0x1]
        %v1637 = vsel %vm1617, 0, %v1636
        %1638 = vst [vmem:[#allocation2 + $0x50] sm:$0x1] %v1637
        %v1639 = vld [vmem:[#allocation2 + $0x5c] sm:$0x1]
        %v1640 = vsel %vm1617, 0, %v1639
        %1641 = vst [vmem:[#allocation2 + $0x5c] sm:$0x1] %v1640
        %v1642 = vld [vmem:[#allocation2 + $0x68] sm:$0x1]
        %v1643 = vsel %vm1617, 0, %v1642
        %1644 = vst [vmem:[#allocation2 + $0x68] sm:$0x1] %v1643
        %v1645 = vld [vmem:[#allocation2 + $0x74] sm:$0x1]
        %v1646 = vsel %vm1617, 0, %v1645
        %1647 = vst [vmem:[#allocation2 + $0x74] sm:$0x1] %v1646
        %v1648 = vld [vmem:[#allocation2 + $0x80] sm:$0x1]
        %v1649 = vsel %vm1617, 0, %v1648
        %1650 = vst [vmem:[#allocation2 + $0x80] sm:$0x1] %v1649
        %v1651 = vld [vmem:[#allocation2 + $0x8c] sm:$0x1]
        %v1652 = vsel %vm1617, 0, %v1651
        %1653 = vst [vmem:[#allocation2 + $0x8c] sm:$0x1] %v1652
        %v1654 = vld [vmem:[#allocation2 + $0x98] sm:$0x1]
        %v1655 = vsel %vm1617, 0, %v1654
        %1656 = vst [vmem:[#allocation2 + $0x98] sm:$0x1] %v1655
        %v1657 = vld [vmem:[#allocation2 + $0xa4] sm:$0x1]
        %v1658 = vsel %vm1617, 0, %v1657
        %1659 = vst [vmem:[#allocation2 + $0xa4] sm:$0x1] %v1658
        %v1660 = vld [vmem:[#allocation2 + $0xb0] sm:$0x1]
        %v1661 = vsel %vm1617, 0, %v1660
        %1662 = vst [vmem:[#allocation2 + $0xb0] sm:$0x1] %v1661
        %v1663 = vld [vmem:[#allocation2 + $0xbc] sm:$0x1]
        %v1664 = vsel %vm1617, 0, %v1663
        %1665 = vst [vmem:[#allocation2 + $0xbc] sm:$0x1] %v1664
        %v1666 = vld [vmem:[#allocation2 + $0xc8] sm:$0x1]
        %v1667 = vsel %vm1617, 0, %v1666
        %1668 = vst [vmem:[#allocation2 + $0xc8] sm:$0x1] %v1667
        %v1669 = vld [vmem:[#allocation2 + $0xd4] sm:$0x1]
        %v1670 = vsel %vm1617, 0, %v1669
        %1671 = vst [vmem:[#allocation2 + $0xd4] sm:$0x1] %v1670
        %v1672 = vld [vmem:[#allocation2] sm:$0xf]
        %v1673 = vld [vmem:[#allocation2 + $0x4] sm:$0xf]
        %v1674 = vld [vmem:[#allocation2 + $0xc] sm:$0xf]
        %v1675 = vld [vmem:[#allocation2 + $0x10] sm:$0xf]
        %v1676 = vld [vmem:[#allocation2 + $0x18] sm:$0xf]
        %v1677 = vld [vmem:[#allocation2 + $0x1c] sm:$0xf]
        %v1678 = vld [vmem:[#allocation2 + $0x24] sm:$0xf]
        %v1679 = vld [vmem:[#allocation2 + $0x28] sm:$0xf]
        %v1680 = vld [vmem:[#allocation2 + $0x30] sm:$0xf]
        %v1681 = vld [vmem:[#allocation2 + $0x34] sm:$0xf]
        %v1682 = vld [vmem:[#allocation2 + $0x3c] sm:$0xf]
        %v1683 = vld [vmem:[#allocation2 + $0x40] sm:$0xf]
        %v1684 = vld [vmem:[#allocation2 + $0x48] sm:$0xf]
        %v1685 = vld [vmem:[#allocation2 + $0x4c] sm:$0xf]
        %v1686 = vld [vmem:[#allocation2 + $0x54] sm:$0xf]
        %v1687 = vld [vmem:[#allocation2 + $0x58] sm:$0xf]
        %v1688 = vld [vmem:[#allocation2 + $0x60] sm:$0xf]
        %v1689 = vld [vmem:[#allocation2 + $0x64] sm:$0xf]
        %v1690 = vld [vmem:[#allocation2 + $0x6c] sm:$0xf]
        %v1691 = vld [vmem:[#allocation2 + $0x70] sm:$0xf]
        %v1692 = vld [vmem:[#allocation2 + $0x78] sm:$0xf]
        %v1693 = vld [vmem:[#allocation2 + $0x7c] sm:$0xf]
        %v1694 = vld [vmem:[#allocation2 + $0x84] sm:$0xf]
        %v1695 = vld [vmem:[#allocation2 + $0x88] sm:$0xf]
        %v1696 = vld [vmem:[#allocation2 + $0x90] sm:$0xf]
        %v1697 = vld [vmem:[#allocation2 + $0x94] sm:$0xf]
        %v1698 = vld [vmem:[#allocation2 + $0x9c] sm:$0xf]
        %v1699 = vld [vmem:[#allocation2 + $0xa0] sm:$0xf]
        %v1700 = vld [vmem:[#allocation2 + $0xa8] sm:$0xf]
        %v1701 = vld [vmem:[#allocation2 + $0xac] sm:$0xf]
        %v1702 = vld [vmem:[#allocation2 + $0xb4] sm:$0xf]
        %v1703 = vld [vmem:[#allocation2 + $0xb8] sm:$0xf]
        %v1704 = vld [vmem:[#allocation2 + $0x8] sm:$0x1]
        %v1705 = vld [vmem:[#allocation2 + $0x14] sm:$0x1]
        %v1706 = vld [vmem:[#allocation2 + $0x20] sm:$0x1]
        %v1707 = vld [vmem:[#allocation2 + $0x2c] sm:$0x1]
        %v1708 = vld [vmem:[#allocation2 + $0x38] sm:$0x1]
        %v1709 = vld [vmem:[#allocation2 + $0x44] sm:$0x1]
        %v1710 = vld [vmem:[#allocation2 + $0x50] sm:$0x1]
        %v1711 = vld [vmem:[#allocation2 + $0x5c] sm:$0x1]
        %v1712 = vld [vmem:[#allocation2 + $0x68] sm:$0x1]
        %v1713 = vld [vmem:[#allocation2 + $0x74] sm:$0x1]
        %v1714 = vld [vmem:[#allocation2 + $0x80] sm:$0x1]
        %v1715 = vld [vmem:[#allocation2 + $0x8c] sm:$0x1]
        %v1716 = vld [vmem:[#allocation2 + $0x98] sm:$0x1]
        %v1717 = vld [vmem:[#allocation2 + $0xa4] sm:$0x1]
        %v1718 = vld [vmem:[#allocation2 + $0xb0] sm:$0x1]
        %v1719 = vld [vmem:[#allocation2 + $0xbc] sm:$0x1]
        %v1720 = vld [vmem:[#allocation2] sm:$0xe]
        %v1721 = vld [vmem:[#allocation2 + $0xc] sm:$0xe]
        %v1722 = vld [vmem:[#allocation2 + $0x18] sm:$0xe]
        %v1723 = vld [vmem:[#allocation2 + $0x24] sm:$0xe]
        %v1724 = vld [vmem:[#allocation2 + $0x30] sm:$0xe]
        %v1725 = vld [vmem:[#allocation2 + $0x3c] sm:$0xe]
        %v1726 = vld [vmem:[#allocation2 + $0x48] sm:$0xe]
        %v1727 = vld [vmem:[#allocation2 + $0x54] sm:$0xe]
        %v1728 = vld [vmem:[#allocation2 + $0x60] sm:$0xe]
        %v1729 = vld [vmem:[#allocation2 + $0x6c] sm:$0xe]
        %v1730 = vld [vmem:[#allocation2 + $0x78] sm:$0xe]
        %v1731 = vld [vmem:[#allocation2 + $0x84] sm:$0xe]
        %v1732 = vld [vmem:[#allocation2 + $0x90] sm:$0xe]
        %v1733 = vld [vmem:[#allocation2 + $0x9c] sm:$0xe]
        %v1734 = vld [vmem:[#allocation2 + $0xa8] sm:$0xe]
        %v1735 = vld [vmem:[#allocation2 + $0xb4] sm:$0xe]
        %v1736 = vld [vmem:[%s1266] sm:$0xf]
        %v1737 = vld [vmem:[%s1266 + $0x4] sm:$0xf]
        %v1738 = vld [vmem:[%s1266 + $0xc] sm:$0xf]
        %v1739 = vld [vmem:[%s1266 + $0x10] sm:$0xf]
        %v1740 = vld [vmem:[%s1266 + $0x18] sm:$0xf]
        %v1741 = vld [vmem:[%s1266 + $0x1c] sm:$0xf]
        %v1742 = vld [vmem:[%s1266 + $0x24] sm:$0xf]
        %v1743 = vld [vmem:[%s1266 + $0x28] sm:$0xf]
        %v1744 = vld [vmem:[%s1266 + $0x30] sm:$0xf]
        %v1745 = vld [vmem:[%s1266 + $0x34] sm:$0xf]
        %v1746 = vld [vmem:[%s1266 + $0x3c] sm:$0xf]
        %v1747 = vld [vmem:[%s1266 + $0x40] sm:$0xf]
        %v1748 = vld [vmem:[%s1266 + $0x48] sm:$0xf]
        %v1749 = vld [vmem:[%s1266 + $0x4c] sm:$0xf]
        %v1750 = vld [vmem:[%s1266 + $0x54] sm:$0xf]
        %v1751 = vld [vmem:[%s1266 + $0x58] sm:$0xf]
        %v1752 = vld [vmem:[%s1266 + $0x60] sm:$0xf]
        %v1753 = vld [vmem:[%s1266 + $0x64] sm:$0xf]
        %v1754 = vld [vmem:[%s1266 + $0x6c] sm:$0xf]
        %v1755 = vld [vmem:[%s1266 + $0x70] sm:$0xf]
        %v1756 = vld [vmem:[%s1266 + $0x78] sm:$0xf]
        %v1757 = vld [vmem:[%s1266 + $0x7c] sm:$0xf]
        %v1758 = vld [vmem:[%s1266 + $0x84] sm:$0xf]
        %v1759 = vld [vmem:[%s1266 + $0x88] sm:$0xf]
        %v1760 = vld [vmem:[%s1266 + $0x90] sm:$0xf]
        %v1761 = vld [vmem:[%s1266 + $0x94] sm:$0xf]
        %v1762 = vld [vmem:[%s1266 + $0x9c] sm:$0xf]
        %v1763 = vld [vmem:[%s1266 + $0xa0] sm:$0xf]
        %v1764 = vld [vmem:[%s1266 + $0xa8] sm:$0xf]
        %v1765 = vld [vmem:[%s1266 + $0xac] sm:$0xf]
        %v1766 = vld [vmem:[%s1266 + $0xb4] sm:$0xf]
        %v1767 = vld [vmem:[%s1266 + $0xb8] sm:$0xf]
        %v1768 = vld [vmem:[%s1266 + $0x8] sm:$0x1]
        %v1769 = vld [vmem:[%s1266 + $0x14] sm:$0x1]
        %v1770 = vld [vmem:[%s1266 + $0x20] sm:$0x1]
        %v1771 = vld [vmem:[%s1266 + $0x2c] sm:$0x1]
        %v1772 = vld [vmem:[%s1266 + $0x38] sm:$0x1]
        %v1773 = vld [vmem:[%s1266 + $0x44] sm:$0x1]
        %v1774 = vld [vmem:[%s1266 + $0x50] sm:$0x1]
        %v1775 = vld [vmem:[%s1266 + $0x5c] sm:$0x1]
        %v1776 = vld [vmem:[%s1266 + $0x68] sm:$0x1]
        %v1777 = vld [vmem:[%s1266 + $0x74] sm:$0x1]
        %v1778 = vld [vmem:[%s1266 + $0x80] sm:$0x1]
        %v1779 = vld [vmem:[%s1266 + $0x8c] sm:$0x1]
        %v1780 = vld [vmem:[%s1266 + $0x98] sm:$0x1]
        %v1781 = vld [vmem:[%s1266 + $0xa4] sm:$0x1]
        %v1782 = vld [vmem:[%s1266 + $0xb0] sm:$0x1]
        %v1783 = vld [vmem:[%s1266 + $0xbc] sm:$0x1]
        %v1784 = vld [vmem:[%s1266] sm:$0xe]
        %v1785 = vld [vmem:[%s1266 + $0xc] sm:$0xe]
        %v1786 = vld [vmem:[%s1266 + $0x18] sm:$0xe]
        %v1787 = vld [vmem:[%s1266 + $0x24] sm:$0xe]
        %v1788 = vld [vmem:[%s1266 + $0x30] sm:$0xe]
        %v1789 = vld [vmem:[%s1266 + $0x3c] sm:$0xe]
        %v1790 = vld [vmem:[%s1266 + $0x48] sm:$0xe]
        %v1791 = vld [vmem:[%s1266 + $0x54] sm:$0xe]
        %v1792 = vld [vmem:[%s1266 + $0x60] sm:$0xe]
        %v1793 = vld [vmem:[%s1266 + $0x6c] sm:$0xe]
        %v1794 = vld [vmem:[%s1266 + $0x78] sm:$0xe]
        %v1795 = vld [vmem:[%s1266 + $0x84] sm:$0xe]
        %v1796 = vld [vmem:[%s1266 + $0x90] sm:$0xe]
        %v1797 = vld [vmem:[%s1266 + $0x9c] sm:$0xe]
        %v1798 = vld [vmem:[%s1266 + $0xa8] sm:$0xe]
        %v1799 = vld [vmem:[%s1266 + $0xb4] sm:$0xe]
        %s1800 = scalar_lea.vmem [#allocation2], 24
        %v1801 = vld [vmem:[%s1800] sm:$0xf]
        %v1802 = vld [vmem:[%s1800 + $0x4] sm:$0xf]
        %v1803 = vld [vmem:[%s1800 + $0xc] sm:$0xf]
        %v1804 = vld [vmem:[%s1800 + $0x10] sm:$0xf]
        %v1805 = vld [vmem:[%s1800 + $0x18] sm:$0xf]
        %v1806 = vld [vmem:[%s1800 + $0x1c] sm:$0xf]
        %v1807 = vld [vmem:[%s1800 + $0x24] sm:$0xf]
        %v1808 = vld [vmem:[%s1800 + $0x28] sm:$0xf]
        %v1809 = vld [vmem:[%s1800 + $0x30] sm:$0xf]
        %v1810 = vld [vmem:[%s1800 + $0x34] sm:$0xf]
        %v1811 = vld [vmem:[%s1800 + $0x3c] sm:$0xf]
        %v1812 = vld [vmem:[%s1800 + $0x40] sm:$0xf]
        %v1813 = vld [vmem:[%s1800 + $0x48] sm:$0xf]
        %v1814 = vld [vmem:[%s1800 + $0x4c] sm:$0xf]
        %v1815 = vld [vmem:[%s1800 + $0x54] sm:$0xf]
        %v1816 = vld [vmem:[%s1800 + $0x58] sm:$0xf]
        %v1817 = vld [vmem:[%s1800 + $0x60] sm:$0xf]
        %v1818 = vld [vmem:[%s1800 + $0x64] sm:$0xf]
        %v1819 = vld [vmem:[%s1800 + $0x6c] sm:$0xf]
        %v1820 = vld [vmem:[%s1800 + $0x70] sm:$0xf]
        %v1821 = vld [vmem:[%s1800 + $0x78] sm:$0xf]
        %v1822 = vld [vmem:[%s1800 + $0x7c] sm:$0xf]
        %v1823 = vld [vmem:[%s1800 + $0x84] sm:$0xf]
        %v1824 = vld [vmem:[%s1800 + $0x88] sm:$0xf]
        %v1825 = vld [vmem:[%s1800 + $0x90] sm:$0xf]
        %v1826 = vld [vmem:[%s1800 + $0x94] sm:$0xf]
        %v1827 = vld [vmem:[%s1800 + $0x9c] sm:$0xf]
        %v1828 = vld [vmem:[%s1800 + $0xa0] sm:$0xf]
        %v1829 = vld [vmem:[%s1800 + $0xa8] sm:$0xf]
        %v1830 = vld [vmem:[%s1800 + $0xac] sm:$0xf]
        %v1831 = vld [vmem:[%s1800 + $0xb4] sm:$0xf]
        %v1832 = vld [vmem:[%s1800 + $0xb8] sm:$0xf]
        %v1833 = vld [vmem:[%s1800 + $0x8] sm:$0x1]
        %v1834 = vld [vmem:[%s1800 + $0x14] sm:$0x1]
        %v1835 = vld [vmem:[%s1800 + $0x20] sm:$0x1]
        %v1836 = vld [vmem:[%s1800 + $0x2c] sm:$0x1]
        %v1837 = vld [vmem:[%s1800 + $0x38] sm:$0x1]
        %v1838 = vld [vmem:[%s1800 + $0x44] sm:$0x1]
        %v1839 = vld [vmem:[%s1800 + $0x50] sm:$0x1]
        %v1840 = vld [vmem:[%s1800 + $0x5c] sm:$0x1]
        %v1841 = vld [vmem:[%s1800 + $0x68] sm:$0x1]
        %v1842 = vld [vmem:[%s1800 + $0x74] sm:$0x1]
        %v1843 = vld [vmem:[%s1800 + $0x80] sm:$0x1]
        %v1844 = vld [vmem:[%s1800 + $0x8c] sm:$0x1]
        %v1845 = vld [vmem:[%s1800 + $0x98] sm:$0x1]
        %v1846 = vld [vmem:[%s1800 + $0xa4] sm:$0x1]
        %v1847 = vld [vmem:[%s1800 + $0xb0] sm:$0x1]
        %v1848 = vld [vmem:[%s1800 + $0xbc] sm:$0x1]
        %v1849 = vld [vmem:[%s1800] sm:$0xe]
        %v1850 = vld [vmem:[%s1800 + $0xc] sm:$0xe]
        %v1851 = vld [vmem:[%s1800 + $0x18] sm:$0xe]
        %v1852 = vld [vmem:[%s1800 + $0x24] sm:$0xe]
        %v1853 = vld [vmem:[%s1800 + $0x30] sm:$0xe]
        %v1854 = vld [vmem:[%s1800 + $0x3c] sm:$0xe]
        %v1855 = vld [vmem:[%s1800 + $0x48] sm:$0xe]
        %v1856 = vld [vmem:[%s1800 + $0x54] sm:$0xe]
        %v1857 = vld [vmem:[%s1800 + $0x60] sm:$0xe]
        %v1858 = vld [vmem:[%s1800 + $0x6c] sm:$0xe]
        %v1859 = vld [vmem:[%s1800 + $0x78] sm:$0xe]
        %v1860 = vld [vmem:[%s1800 + $0x84] sm:$0xe]
        %v1861 = vld [vmem:[%s1800 + $0x90] sm:$0xe]
        %v1862 = vld [vmem:[%s1800 + $0x9c] sm:$0xe]
        %v1863 = vld [vmem:[%s1800 + $0xa8] sm:$0xe]
        %v1864 = vld [vmem:[%s1800 + $0xb4] sm:$0xe]
        %v1897 = vunpack.c.l.b16 %v1672
        %v1898 = vunpack.c.l.b16 %v1673
        %v1899 = vunpack.c.l.b16 %v1674
        %v1900 = vunpack.c.l.b16 %v1675
        %v1901 = vunpack.c.l.b16 %v1676
        %v1902 = vunpack.c.l.b16 %v1677
        %v1903 = vunpack.c.l.b16 %v1678
        %v1904 = vunpack.c.l.b16 %v1679
        %v1905 = vunpack.c.l.b16 %v1680
        %v1906 = vunpack.c.l.b16 %v1681
        %v1907 = vunpack.c.l.b16 %v1682
        %v1908 = vunpack.c.l.b16 %v1683
        %v1909 = vunpack.c.l.b16 %v1684
        %v1910 = vunpack.c.l.b16 %v1685
        %v1911 = vunpack.c.l.b16 %v1686
        %v1912 = vunpack.c.l.b16 %v1687
        %v1913 = vunpack.c.l.b16 %v1688
        %v1914 = vunpack.c.l.b16 %v1689
        %v1915 = vunpack.c.l.b16 %v1690
        %v1916 = vunpack.c.l.b16 %v1691
        %v1917 = vunpack.c.l.b16 %v1692
        %v1918 = vunpack.c.l.b16 %v1693
        %v1919 = vunpack.c.l.b16 %v1694
        %v1920 = vunpack.c.l.b16 %v1695
        %v1921 = vunpack.c.l.b16 %v1696
        %v1922 = vunpack.c.l.b16 %v1697
        %v1923 = vunpack.c.l.b16 %v1698
        %v1924 = vunpack.c.l.b16 %v1699
        %v1925 = vunpack.c.l.b16 %v1700
        %v1926 = vunpack.c.l.b16 %v1701
        %v1927 = vunpack.c.l.b16 %v1702
        %v1928 = vunpack.c.l.b16 %v1703
        %v1929 = vpack.c.b16 %v1898, %v1897
        %v1930 = vpack.c.b16 %v1900, %v1899
        %v1931 = vpack.c.b16 %v1902, %v1901
        %v1932 = vpack.c.b16 %v1904, %v1903
        %v1933 = vpack.c.b16 %v1906, %v1905
        %v1934 = vpack.c.b16 %v1908, %v1907
        %v1935 = vpack.c.b16 %v1910, %v1909
        %v1936 = vpack.c.b16 %v1912, %v1911
        %v1937 = vpack.c.b16 %v1914, %v1913
        %v1938 = vpack.c.b16 %v1916, %v1915
        %v1939 = vpack.c.b16 %v1918, %v1917
        %v1940 = vpack.c.b16 %v1920, %v1919
        %v1941 = vpack.c.b16 %v1922, %v1921
        %v1942 = vpack.c.b16 %v1924, %v1923
        %v1943 = vpack.c.b16 %v1926, %v1925
        %v1944 = vpack.c.b16 %v1928, %v1927
        %v1977 = vunpack.c.l.b16 %v1704
        %v1978 = vunpack.c.l.b16 %v1705
        %v1979 = vunpack.c.l.b16 %v1706
        %v1980 = vunpack.c.l.b16 %v1707
        %v1981 = vunpack.c.l.b16 %v1708
        %v1982 = vunpack.c.l.b16 %v1709
        %v1983 = vunpack.c.l.b16 %v1710
        %v1984 = vunpack.c.l.b16 %v1711
        %v1985 = vunpack.c.l.b16 %v1712
        %v1986 = vunpack.c.l.b16 %v1713
        %v1987 = vunpack.c.l.b16 %v1714
        %v1988 = vunpack.c.l.b16 %v1715
        %v1989 = vunpack.c.l.b16 %v1716
        %v1990 = vunpack.c.l.b16 %v1717
        %v1991 = vunpack.c.l.b16 %v1718
        %v1992 = vunpack.c.l.b16 %v1719
        %v1993 = vpack.c.b16 %v1977, %v1977
        %v1994 = vpack.c.b16 %v1978, %v1978
        %v1995 = vpack.c.b16 %v1979, %v1979
        %v1996 = vpack.c.b16 %v1980, %v1980
        %v1997 = vpack.c.b16 %v1981, %v1981
        %v1998 = vpack.c.b16 %v1982, %v1982
        %v1999 = vpack.c.b16 %v1983, %v1983
        %v2000 = vpack.c.b16 %v1984, %v1984
        %v2001 = vpack.c.b16 %v1985, %v1985
        %v2002 = vpack.c.b16 %v1986, %v1986
        %v2003 = vpack.c.b16 %v1987, %v1987
        %v2004 = vpack.c.b16 %v1988, %v1988
        %v2005 = vpack.c.b16 %v1989, %v1989
        %v2006 = vpack.c.b16 %v1990, %v1990
        %v2007 = vpack.c.b16 %v1991, %v1991
        %v2008 = vpack.c.b16 %v1992, %v1992
        %vm2009 = vsmask.f32 7424
        %v2011 = vshrl.u32 %v1929, 16
        %v2013 = vshll.u32 %v1929, 16
        %v2015 = vrot.slane %v2013, 1
        %v2016 = vor.u32 %v2011, %v2015
        %v2018 = vshll.u32 %v1993, 16
        %v2020 = vrot.slane %v2018, 1
        %v2021 = vsel %vm2009, %v2016, %v2020
        %v2023 = vshrl.u32 %v1930, 16
        %v2025 = vshll.u32 %v1930, 16
        %v2027 = vrot.slane %v2025, 1
        %v2028 = vor.u32 %v2023, %v2027
        %v2030 = vshll.u32 %v1994, 16
        %v2032 = vrot.slane %v2030, 1
        %v2033 = vsel %vm2009, %v2028, %v2032
        %v2035 = vshrl.u32 %v1931, 16
        %v2037 = vshll.u32 %v1931, 16
        %v2039 = vrot.slane %v2037, 1
        %v2040 = vor.u32 %v2035, %v2039
        %v2042 = vshll.u32 %v1995, 16
        %v2044 = vrot.slane %v2042, 1
        %v2045 = vsel %vm2009, %v2040, %v2044
        %v2047 = vshrl.u32 %v1932, 16
        %v2049 = vshll.u32 %v1932, 16
        %v2051 = vrot.slane %v2049, 1
        %v2052 = vor.u32 %v2047, %v2051
        %v2054 = vshll.u32 %v1996, 16
        %v2056 = vrot.slane %v2054, 1
        %v2057 = vsel %vm2009, %v2052, %v2056
        %v2059 = vshrl.u32 %v1933, 16
        %v2061 = vshll.u32 %v1933, 16
        %v2063 = vrot.slane %v2061, 1
        %v2064 = vor.u32 %v2059, %v2063
        %v2066 = vshll.u32 %v1997, 16
        %v2068 = vrot.slane %v2066, 1
        %v2069 = vsel %vm2009, %v2064, %v2068
        %v2071 = vshrl.u32 %v1934, 16
        %v2073 = vshll.u32 %v1934, 16
        %v2075 = vrot.slane %v2073, 1
        %v2076 = vor.u32 %v2071, %v2075
        %v2078 = vshll.u32 %v1998, 16
        %v2080 = vrot.slane %v2078, 1
        %v2081 = vsel %vm2009, %v2076, %v2080
        %v2083 = vshrl.u32 %v1935, 16
        %v2085 = vshll.u32 %v1935, 16
        %v2087 = vrot.slane %v2085, 1
        %v2088 = vor.u32 %v2083, %v2087
        %v2090 = vshll.u32 %v1999, 16
        %v2092 = vrot.slane %v2090, 1
        %v2093 = vsel %vm2009, %v2088, %v2092
        %v2095 = vshrl.u32 %v1936, 16
        %v2097 = vshll.u32 %v1936, 16
        %v2099 = vrot.slane %v2097, 1
        %v2100 = vor.u32 %v2095, %v2099
        %v2102 = vshll.u32 %v2000, 16
        %v2104 = vrot.slane %v2102, 1
        %v2105 = vsel %vm2009, %v2100, %v2104
        %v2107 = vshrl.u32 %v1937, 16
        %v2109 = vshll.u32 %v1937, 16
        %v2111 = vrot.slane %v2109, 1
        %v2112 = vor.u32 %v2107, %v2111
        %v2114 = vshll.u32 %v2001, 16
        %v2116 = vrot.slane %v2114, 1
        %v2117 = vsel %vm2009, %v2112, %v2116
        %v2119 = vshrl.u32 %v1938, 16
        %v2121 = vshll.u32 %v1938, 16
        %v2123 = vrot.slane %v2121, 1
        %v2124 = vor.u32 %v2119, %v2123
        %v2126 = vshll.u32 %v2002, 16
        %v2128 = vrot.slane %v2126, 1
        %v2129 = vsel %vm2009, %v2124, %v2128
        %v2131 = vshrl.u32 %v1939, 16
        %v2133 = vshll.u32 %v1939, 16
        %v2135 = vrot.slane %v2133, 1
        %v2136 = vor.u32 %v2131, %v2135
        %v2138 = vshll.u32 %v2003, 16
        %v2140 = vrot.slane %v2138, 1
        %v2141 = vsel %vm2009, %v2136, %v2140
        %v2143 = vshrl.u32 %v1940, 16
        %v2145 = vshll.u32 %v1940, 16
        %v2147 = vrot.slane %v2145, 1
        %v2148 = vor.u32 %v2143, %v2147
        %v2150 = vshll.u32 %v2004, 16
        %v2152 = vrot.slane %v2150, 1
        %v2153 = vsel %vm2009, %v2148, %v2152
        %v2155 = vshrl.u32 %v1941, 16
        %v2157 = vshll.u32 %v1941, 16
        %v2159 = vrot.slane %v2157, 1
        %v2160 = vor.u32 %v2155, %v2159
        %v2162 = vshll.u32 %v2005, 16
        %v2164 = vrot.slane %v2162, 1
        %v2165 = vsel %vm2009, %v2160, %v2164
        %v2167 = vshrl.u32 %v1942, 16
        %v2169 = vshll.u32 %v1942, 16
        %v2171 = vrot.slane %v2169, 1
        %v2172 = vor.u32 %v2167, %v2171
        %v2174 = vshll.u32 %v2006, 16
        %v2176 = vrot.slane %v2174, 1
        %v2177 = vsel %vm2009, %v2172, %v2176
        %v2179 = vshrl.u32 %v1943, 16
        %v2181 = vshll.u32 %v1943, 16
        %v2183 = vrot.slane %v2181, 1
        %v2184 = vor.u32 %v2179, %v2183
        %v2186 = vshll.u32 %v2007, 16
        %v2188 = vrot.slane %v2186, 1
        %v2189 = vsel %vm2009, %v2184, %v2188
        %v2191 = vshrl.u32 %v1944, 16
        %v2193 = vshll.u32 %v1944, 16
        %v2195 = vrot.slane %v2193, 1
        %v2196 = vor.u32 %v2191, %v2195
        %v2198 = vshll.u32 %v2008, 16
        %v2200 = vrot.slane %v2198, 1
        %v2201 = vsel %vm2009, %v2196, %v2200
        %v2234 = vunpack.c.l.b16 %v1720
        %v2235 = vunpack.c.l.b16 %v1721
        %v2236 = vunpack.c.l.b16 %v1722
        %v2237 = vunpack.c.l.b16 %v1723
        %v2238 = vunpack.c.l.b16 %v1724
        %v2239 = vunpack.c.l.b16 %v1725
        %v2240 = vunpack.c.l.b16 %v1726
        %v2241 = vunpack.c.l.b16 %v1727
        %v2242 = vunpack.c.l.b16 %v1728
        %v2243 = vunpack.c.l.b16 %v1729
        %v2244 = vunpack.c.l.b16 %v1730
        %v2245 = vunpack.c.l.b16 %v1731
        %v2246 = vunpack.c.l.b16 %v1732
        %v2247 = vunpack.c.l.b16 %v1733
        %v2248 = vunpack.c.l.b16 %v1734
        %v2249 = vunpack.c.l.b16 %v1735
        %v2250 = vpack.c.b16 %v1898, %v2234
        %v2251 = vpack.c.b16 %v1900, %v2235
        %v2252 = vpack.c.b16 %v1902, %v2236
        %v2253 = vpack.c.b16 %v1904, %v2237
        %v2254 = vpack.c.b16 %v1906, %v2238
        %v2255 = vpack.c.b16 %v1908, %v2239
        %v2256 = vpack.c.b16 %v1910, %v2240
        %v2257 = vpack.c.b16 %v1912, %v2241
        %v2258 = vpack.c.b16 %v1914, %v2242
        %v2259 = vpack.c.b16 %v1916, %v2243
        %v2260 = vpack.c.b16 %v1918, %v2244
        %v2261 = vpack.c.b16 %v1920, %v2245
        %v2262 = vpack.c.b16 %v1922, %v2246
        %v2263 = vpack.c.b16 %v1924, %v2247
        %v2264 = vpack.c.b16 %v1926, %v2248
        %v2265 = vpack.c.b16 %v1928, %v2249
        %vm2266 = vcmask 1046528
        %v2267 = vrot.slane %v2250, 1
        %v2268 = vrot.slane %v1993, 1
        %v2269 = vsel %vm2266, %v2267, %v2268
        %v2270 = vrot.slane %v2251, 1
        %v2271 = vrot.slane %v1994, 1
        %v2272 = vsel %vm2266, %v2270, %v2271
        %v2273 = vrot.slane %v2252, 1
        %v2274 = vrot.slane %v1995, 1
        %v2275 = vsel %vm2266, %v2273, %v2274
        %v2276 = vrot.slane %v2253, 1
        %v2277 = vrot.slane %v1996, 1
        %v2278 = vsel %vm2266, %v2276, %v2277
        %v2279 = vrot.slane %v2254, 1
        %v2280 = vrot.slane %v1997, 1
        %v2281 = vsel %vm2266, %v2279, %v2280
        %v2282 = vrot.slane %v2255, 1
        %v2283 = vrot.slane %v1998, 1
        %v2284 = vsel %vm2266, %v2282, %v2283
        %v2285 = vrot.slane %v2256, 1
        %v2286 = vrot.slane %v1999, 1
        %v2287 = vsel %vm2266, %v2285, %v2286
        %v2288 = vrot.slane %v2257, 1
        %v2289 = vrot.slane %v2000, 1
        %v2290 = vsel %vm2266, %v2288, %v2289
        %v2291 = vrot.slane %v2258, 1
        %v2292 = vrot.slane %v2001, 1
        %v2293 = vsel %vm2266, %v2291, %v2292
        %v2294 = vrot.slane %v2259, 1
        %v2295 = vrot.slane %v2002, 1
        %v2296 = vsel %vm2266, %v2294, %v2295
        %v2297 = vrot.slane %v2260, 1
        %v2298 = vrot.slane %v2003, 1
        %v2299 = vsel %vm2266, %v2297, %v2298
        %v2300 = vrot.slane %v2261, 1
        %v2301 = vrot.slane %v2004, 1
        %v2302 = vsel %vm2266, %v2300, %v2301
        %v2303 = vrot.slane %v2262, 1
        %v2304 = vrot.slane %v2005, 1
        %v2305 = vsel %vm2266, %v2303, %v2304
        %v2306 = vrot.slane %v2263, 1
        %v2307 = vrot.slane %v2006, 1
        %v2308 = vsel %vm2266, %v2306, %v2307
        %v2309 = vrot.slane %v2264, 1
        %v2310 = vrot.slane %v2007, 1
        %v2311 = vsel %vm2266, %v2309, %v2310
        %v2312 = vrot.slane %v2265, 1
        %v2313 = vrot.slane %v2008, 1
        %v2314 = vsel %vm2266, %v2312, %v2313
        %v2363 = vunpack.c.l.b16 %v1736
        %v2364 = vunpack.c.l.b16 %v1737
        %v2365 = vunpack.c.l.b16 %v1738
        %v2366 = vunpack.c.l.b16 %v1739
        %v2367 = vunpack.c.l.b16 %v1740
        %v2368 = vunpack.c.l.b16 %v1741
        %v2369 = vunpack.c.l.b16 %v1742
        %v2370 = vunpack.c.l.b16 %v1743
        %v2371 = vunpack.c.l.b16 %v1744
        %v2372 = vunpack.c.l.b16 %v1745
        %v2373 = vunpack.c.l.b16 %v1746
        %v2374 = vunpack.c.l.b16 %v1747
        %v2375 = vunpack.c.l.b16 %v1748
        %v2376 = vunpack.c.l.b16 %v1749
        %v2377 = vunpack.c.l.b16 %v1750
        %v2378 = vunpack.c.l.b16 %v1751
        %v2379 = vunpack.c.l.b16 %v1752
        %v2380 = vunpack.c.l.b16 %v1753
        %v2381 = vunpack.c.l.b16 %v1754
        %v2382 = vunpack.c.l.b16 %v1755
        %v2383 = vunpack.c.l.b16 %v1756
        %v2384 = vunpack.c.l.b16 %v1757
        %v2385 = vunpack.c.l.b16 %v1758
        %v2386 = vunpack.c.l.b16 %v1759
        %v2387 = vunpack.c.l.b16 %v1760
        %v2388 = vunpack.c.l.b16 %v1761
        %v2389 = vunpack.c.l.b16 %v1762
        %v2390 = vunpack.c.l.b16 %v1763
        %v2391 = vunpack.c.l.b16 %v1764
        %v2392 = vunpack.c.l.b16 %v1765
        %v2393 = vunpack.c.l.b16 %v1766
        %v2394 = vunpack.c.l.b16 %v1767
        %v2395 = vpack.c.b16 %v2364, %v2363
        %v2396 = vpack.c.b16 %v2366, %v2365
        %v2397 = vpack.c.b16 %v2368, %v2367
        %v2398 = vpack.c.b16 %v2370, %v2369
        %v2399 = vpack.c.b16 %v2372, %v2371
        %v2400 = vpack.c.b16 %v2374, %v2373
        %v2401 = vpack.c.b16 %v2376, %v2375
        %v2402 = vpack.c.b16 %v2378, %v2377
        %v2403 = vpack.c.b16 %v2380, %v2379
        %v2404 = vpack.c.b16 %v2382, %v2381
        %v2405 = vpack.c.b16 %v2384, %v2383
        %v2406 = vpack.c.b16 %v2386, %v2385
        %v2407 = vpack.c.b16 %v2388, %v2387
        %v2408 = vpack.c.b16 %v2390, %v2389
        %v2409 = vpack.c.b16 %v2392, %v2391
        %v2410 = vpack.c.b16 %v2394, %v2393
        %v2443 = vunpack.c.l.b16 %v1768
        %v2444 = vunpack.c.l.b16 %v1769
        %v2445 = vunpack.c.l.b16 %v1770
        %v2446 = vunpack.c.l.b16 %v1771
        %v2447 = vunpack.c.l.b16 %v1772
        %v2448 = vunpack.c.l.b16 %v1773
        %v2449 = vunpack.c.l.b16 %v1774
        %v2450 = vunpack.c.l.b16 %v1775
        %v2451 = vunpack.c.l.b16 %v1776
        %v2452 = vunpack.c.l.b16 %v1777
        %v2453 = vunpack.c.l.b16 %v1778
        %v2454 = vunpack.c.l.b16 %v1779
        %v2455 = vunpack.c.l.b16 %v1780
        %v2456 = vunpack.c.l.b16 %v1781
        %v2457 = vunpack.c.l.b16 %v1782
        %v2458 = vunpack.c.l.b16 %v1783
        %v2459 = vpack.c.b16 %v2443, %v2443
        %v2460 = vpack.c.b16 %v2444, %v2444
        %v2461 = vpack.c.b16 %v2445, %v2445
        %v2462 = vpack.c.b16 %v2446, %v2446
        %v2463 = vpack.c.b16 %v2447, %v2447
        %v2464 = vpack.c.b16 %v2448, %v2448
        %v2465 = vpack.c.b16 %v2449, %v2449
        %v2466 = vpack.c.b16 %v2450, %v2450
        %v2467 = vpack.c.b16 %v2451, %v2451
        %v2468 = vpack.c.b16 %v2452, %v2452
        %v2469 = vpack.c.b16 %v2453, %v2453
        %v2470 = vpack.c.b16 %v2454, %v2454
        %v2471 = vpack.c.b16 %v2455, %v2455
        %v2472 = vpack.c.b16 %v2456, %v2456
        %v2473 = vpack.c.b16 %v2457, %v2457
        %v2474 = vpack.c.b16 %v2458, %v2458
        %v2476 = vshrl.u32 %v2395, 16
        %v2478 = vshll.u32 %v2395, 16
        %v2480 = vrot.slane %v2478, 1
        %v2481 = vor.u32 %v2476, %v2480
        %v2483 = vshll.u32 %v2459, 16
        %v2485 = vrot.slane %v2483, 1
        %v2486 = vsel %vm2009, %v2481, %v2485
        %v2488 = vshrl.u32 %v2396, 16
        %v2490 = vshll.u32 %v2396, 16
        %v2492 = vrot.slane %v2490, 1
        %v2493 = vor.u32 %v2488, %v2492
        %v2495 = vshll.u32 %v2460, 16
        %v2497 = vrot.slane %v2495, 1
        %v2498 = vsel %vm2009, %v2493, %v2497
        %v2500 = vshrl.u32 %v2397, 16
        %v2502 = vshll.u32 %v2397, 16
        %v2504 = vrot.slane %v2502, 1
        %v2505 = vor.u32 %v2500, %v2504
        %v2507 = vshll.u32 %v2461, 16
        %v2509 = vrot.slane %v2507, 1
        %v2510 = vsel %vm2009, %v2505, %v2509
        %v2512 = vshrl.u32 %v2398, 16
        %v2514 = vshll.u32 %v2398, 16
        %v2516 = vrot.slane %v2514, 1
        %v2517 = vor.u32 %v2512, %v2516
        %v2519 = vshll.u32 %v2462, 16
        %v2521 = vrot.slane %v2519, 1
        %v2522 = vsel %vm2009, %v2517, %v2521
        %v2524 = vshrl.u32 %v2399, 16
        %v2526 = vshll.u32 %v2399, 16
        %v2528 = vrot.slane %v2526, 1
        %v2529 = vor.u32 %v2524, %v2528
        %v2531 = vshll.u32 %v2463, 16
        %v2533 = vrot.slane %v2531, 1
        %v2534 = vsel %vm2009, %v2529, %v2533
        %v2536 = vshrl.u32 %v2400, 16
        %v2538 = vshll.u32 %v2400, 16
        %v2540 = vrot.slane %v2538, 1
        %v2541 = vor.u32 %v2536, %v2540
        %v2543 = vshll.u32 %v2464, 16
        %v2545 = vrot.slane %v2543, 1
        %v2546 = vsel %vm2009, %v2541, %v2545
        %v2548 = vshrl.u32 %v2401, 16
        %v2550 = vshll.u32 %v2401, 16
        %v2552 = vrot.slane %v2550, 1
        %v2553 = vor.u32 %v2548, %v2552
        %v2555 = vshll.u32 %v2465, 16
        %v2557 = vrot.slane %v2555, 1
        %v2558 = vsel %vm2009, %v2553, %v2557
        %v2560 = vshrl.u32 %v2402, 16
        %v2562 = vshll.u32 %v2402, 16
        %v2564 = vrot.slane %v2562, 1
        %v2565 = vor.u32 %v2560, %v2564
        %v2567 = vshll.u32 %v2466, 16
        %v2569 = vrot.slane %v2567, 1
        %v2570 = vsel %vm2009, %v2565, %v2569
        %v2572 = vshrl.u32 %v2403, 16
        %v2574 = vshll.u32 %v2403, 16
        %v2576 = vrot.slane %v2574, 1
        %v2577 = vor.u32 %v2572, %v2576
        %v2579 = vshll.u32 %v2467, 16
        %v2581 = vrot.slane %v2579, 1
        %v2582 = vsel %vm2009, %v2577, %v2581
        %v2584 = vshrl.u32 %v2404, 16
        %v2586 = vshll.u32 %v2404, 16
        %v2588 = vrot.slane %v2586, 1
        %v2589 = vor.u32 %v2584, %v2588
        %v2591 = vshll.u32 %v2468, 16
        %v2593 = vrot.slane %v2591, 1
        %v2594 = vsel %vm2009, %v2589, %v2593
        %v2596 = vshrl.u32 %v2405, 16
        %v2598 = vshll.u32 %v2405, 16
        %v2600 = vrot.slane %v2598, 1
        %v2601 = vor.u32 %v2596, %v2600
        %v2603 = vshll.u32 %v2469, 16
        %v2605 = vrot.slane %v2603, 1
        %v2606 = vsel %vm2009, %v2601, %v2605
        %v2608 = vshrl.u32 %v2406, 16
        %v2610 = vshll.u32 %v2406, 16
        %v2612 = vrot.slane %v2610, 1
        %v2613 = vor.u32 %v2608, %v2612
        %v2615 = vshll.u32 %v2470, 16
        %v2617 = vrot.slane %v2615, 1
        %v2618 = vsel %vm2009, %v2613, %v2617
        %v2620 = vshrl.u32 %v2407, 16
        %v2622 = vshll.u32 %v2407, 16
        %v2624 = vrot.slane %v2622, 1
        %v2625 = vor.u32 %v2620, %v2624
        %v2627 = vshll.u32 %v2471, 16
        %v2629 = vrot.slane %v2627, 1
        %v2630 = vsel %vm2009, %v2625, %v2629
        %v2632 = vshrl.u32 %v2408, 16
        %v2634 = vshll.u32 %v2408, 16
        %v2636 = vrot.slane %v2634, 1
        %v2637 = vor.u32 %v2632, %v2636
        %v2639 = vshll.u32 %v2472, 16
        %v2641 = vrot.slane %v2639, 1
        %v2642 = vsel %vm2009, %v2637, %v2641
        %v2644 = vshrl.u32 %v2409, 16
        %v2646 = vshll.u32 %v2409, 16
        %v2648 = vrot.slane %v2646, 1
        %v2649 = vor.u32 %v2644, %v2648
        %v2651 = vshll.u32 %v2473, 16
        %v2653 = vrot.slane %v2651, 1
        %v2654 = vsel %vm2009, %v2649, %v2653
        %v2656 = vshrl.u32 %v2410, 16
        %v2658 = vshll.u32 %v2410, 16
        %v2660 = vrot.slane %v2658, 1
        %v2661 = vor.u32 %v2656, %v2660
        %v2663 = vshll.u32 %v2474, 16
        %v2665 = vrot.slane %v2663, 1
        %v2666 = vsel %vm2009, %v2661, %v2665
        %v2699 = vunpack.c.l.b16 %v1784
        %v2700 = vunpack.c.l.b16 %v1785
        %v2701 = vunpack.c.l.b16 %v1786
        %v2702 = vunpack.c.l.b16 %v1787
        %v2703 = vunpack.c.l.b16 %v1788
        %v2704 = vunpack.c.l.b16 %v1789
        %v2705 = vunpack.c.l.b16 %v1790
        %v2706 = vunpack.c.l.b16 %v1791
        %v2707 = vunpack.c.l.b16 %v1792
        %v2708 = vunpack.c.l.b16 %v1793
        %v2709 = vunpack.c.l.b16 %v1794
        %v2710 = vunpack.c.l.b16 %v1795
        %v2711 = vunpack.c.l.b16 %v1796
        %v2712 = vunpack.c.l.b16 %v1797
        %v2713 = vunpack.c.l.b16 %v1798
        %v2714 = vunpack.c.l.b16 %v1799
        %v2715 = vpack.c.b16 %v2364, %v2699
        %v2716 = vpack.c.b16 %v2366, %v2700
        %v2717 = vpack.c.b16 %v2368, %v2701
        %v2718 = vpack.c.b16 %v2370, %v2702
        %v2719 = vpack.c.b16 %v2372, %v2703
        %v2720 = vpack.c.b16 %v2374, %v2704
        %v2721 = vpack.c.b16 %v2376, %v2705
        %v2722 = vpack.c.b16 %v2378, %v2706
        %v2723 = vpack.c.b16 %v2380, %v2707
        %v2724 = vpack.c.b16 %v2382, %v2708
        %v2725 = vpack.c.b16 %v2384, %v2709
        %v2726 = vpack.c.b16 %v2386, %v2710
        %v2727 = vpack.c.b16 %v2388, %v2711
        %v2728 = vpack.c.b16 %v2390, %v2712
        %v2729 = vpack.c.b16 %v2392, %v2713
        %v2730 = vpack.c.b16 %v2394, %v2714
        %v2731 = vrot.slane %v2715, 1
        %v2732 = vrot.slane %v2459, 1
        %v2733 = vsel %vm2266, %v2731, %v2732
        %v2734 = vrot.slane %v2716, 1
        %v2735 = vrot.slane %v2460, 1
        %v2736 = vsel %vm2266, %v2734, %v2735
        %v2737 = vrot.slane %v2717, 1
        %v2738 = vrot.slane %v2461, 1
        %v2739 = vsel %vm2266, %v2737, %v2738
        %v2740 = vrot.slane %v2718, 1
        %v2741 = vrot.slane %v2462, 1
        %v2742 = vsel %vm2266, %v2740, %v2741
        %v2743 = vrot.slane %v2719, 1
        %v2744 = vrot.slane %v2463, 1
        %v2745 = vsel %vm2266, %v2743, %v2744
        %v2746 = vrot.slane %v2720, 1
        %v2747 = vrot.slane %v2464, 1
        %v2748 = vsel %vm2266, %v2746, %v2747
        %v2749 = vrot.slane %v2721, 1
        %v2750 = vrot.slane %v2465, 1
        %v2751 = vsel %vm2266, %v2749, %v2750
        %v2752 = vrot.slane %v2722, 1
        %v2753 = vrot.slane %v2466, 1
        %v2754 = vsel %vm2266, %v2752, %v2753
        %v2755 = vrot.slane %v2723, 1
        %v2756 = vrot.slane %v2467, 1
        %v2757 = vsel %vm2266, %v2755, %v2756
        %v2758 = vrot.slane %v2724, 1
        %v2759 = vrot.slane %v2468, 1
        %v2760 = vsel %vm2266, %v2758, %v2759
        %v2761 = vrot.slane %v2725, 1
        %v2762 = vrot.slane %v2469, 1
        %v2763 = vsel %vm2266, %v2761, %v2762
        %v2764 = vrot.slane %v2726, 1
        %v2765 = vrot.slane %v2470, 1
        %v2766 = vsel %vm2266, %v2764, %v2765
        %v2767 = vrot.slane %v2727, 1
        %v2768 = vrot.slane %v2471, 1
        %v2769 = vsel %vm2266, %v2767, %v2768
        %v2770 = vrot.slane %v2728, 1
        %v2771 = vrot.slane %v2472, 1
        %v2772 = vsel %vm2266, %v2770, %v2771
        %v2773 = vrot.slane %v2729, 1
        %v2774 = vrot.slane %v2473, 1
        %v2775 = vsel %vm2266, %v2773, %v2774
        %v2776 = vrot.slane %v2730, 1
        %v2777 = vrot.slane %v2474, 1
        %v2778 = vsel %vm2266, %v2776, %v2777
        %v2827 = vunpack.c.l.b16 %v1801
        %v2828 = vunpack.c.l.b16 %v1802
        %v2829 = vunpack.c.l.b16 %v1803
        %v2830 = vunpack.c.l.b16 %v1804
        %v2831 = vunpack.c.l.b16 %v1805
        %v2832 = vunpack.c.l.b16 %v1806
        %v2833 = vunpack.c.l.b16 %v1807
        %v2834 = vunpack.c.l.b16 %v1808
        %v2835 = vunpack.c.l.b16 %v1809
        %v2836 = vunpack.c.l.b16 %v1810
        %v2837 = vunpack.c.l.b16 %v1811
        %v2838 = vunpack.c.l.b16 %v1812
        %v2839 = vunpack.c.l.b16 %v1813
        %v2840 = vunpack.c.l.b16 %v1814
        %v2841 = vunpack.c.l.b16 %v1815
        %v2842 = vunpack.c.l.b16 %v1816
        %v2843 = vunpack.c.l.b16 %v1817
        %v2844 = vunpack.c.l.b16 %v1818
        %v2845 = vunpack.c.l.b16 %v1819
        %v2846 = vunpack.c.l.b16 %v1820
        %v2847 = vunpack.c.l.b16 %v1821
        %v2848 = vunpack.c.l.b16 %v1822
        %v2849 = vunpack.c.l.b16 %v1823
        %v2850 = vunpack.c.l.b16 %v1824
        %v2851 = vunpack.c.l.b16 %v1825
        %v2852 = vunpack.c.l.b16 %v1826
        %v2853 = vunpack.c.l.b16 %v1827
        %v2854 = vunpack.c.l.b16 %v1828
        %v2855 = vunpack.c.l.b16 %v1829
        %v2856 = vunpack.c.l.b16 %v1830
        %v2857 = vunpack.c.l.b16 %v1831
        %v2858 = vunpack.c.l.b16 %v1832
        %v2859 = vpack.c.b16 %v2828, %v2827
        %v2860 = vpack.c.b16 %v2830, %v2829
        %v2861 = vpack.c.b16 %v2832, %v2831
        %v2862 = vpack.c.b16 %v2834, %v2833
        %v2863 = vpack.c.b16 %v2836, %v2835
        %v2864 = vpack.c.b16 %v2838, %v2837
        %v2865 = vpack.c.b16 %v2840, %v2839
        %v2866 = vpack.c.b16 %v2842, %v2841
        %v2867 = vpack.c.b16 %v2844, %v2843
        %v2868 = vpack.c.b16 %v2846, %v2845
        %v2869 = vpack.c.b16 %v2848, %v2847
        %v2870 = vpack.c.b16 %v2850, %v2849
        %v2871 = vpack.c.b16 %v2852, %v2851
        %v2872 = vpack.c.b16 %v2854, %v2853
        %v2873 = vpack.c.b16 %v2856, %v2855
        %v2874 = vpack.c.b16 %v2858, %v2857
        %v2907 = vunpack.c.l.b16 %v1833
        %v2908 = vunpack.c.l.b16 %v1834
        %v2909 = vunpack.c.l.b16 %v1835
        %v2910 = vunpack.c.l.b16 %v1836
        %v2911 = vunpack.c.l.b16 %v1837
        %v2912 = vunpack.c.l.b16 %v1838
        %v2913 = vunpack.c.l.b16 %v1839
        %v2914 = vunpack.c.l.b16 %v1840
        %v2915 = vunpack.c.l.b16 %v1841
        %v2916 = vunpack.c.l.b16 %v1842
        %v2917 = vunpack.c.l.b16 %v1843
        %v2918 = vunpack.c.l.b16 %v1844
        %v2919 = vunpack.c.l.b16 %v1845
        %v2920 = vunpack.c.l.b16 %v1846
        %v2921 = vunpack.c.l.b16 %v1847
        %v2922 = vunpack.c.l.b16 %v1848
        %v2923 = vpack.c.b16 %v2907, %v2907
        %v2924 = vpack.c.b16 %v2908, %v2908
        %v2925 = vpack.c.b16 %v2909, %v2909
        %v2926 = vpack.c.b16 %v2910, %v2910
        %v2927 = vpack.c.b16 %v2911, %v2911
        %v2928 = vpack.c.b16 %v2912, %v2912
        %v2929 = vpack.c.b16 %v2913, %v2913
        %v2930 = vpack.c.b16 %v2914, %v2914
        %v2931 = vpack.c.b16 %v2915, %v2915
        %v2932 = vpack.c.b16 %v2916, %v2916
        %v2933 = vpack.c.b16 %v2917, %v2917
        %v2934 = vpack.c.b16 %v2918, %v2918
        %v2935 = vpack.c.b16 %v2919, %v2919
        %v2936 = vpack.c.b16 %v2920, %v2920
        %v2937 = vpack.c.b16 %v2921, %v2921
        %v2938 = vpack.c.b16 %v2922, %v2922
        %v2940 = vshrl.u32 %v2859, 16
        %v2942 = vshll.u32 %v2859, 16
        %v2944 = vrot.slane %v2942, 1
        %v2945 = vor.u32 %v2940, %v2944
        %v2947 = vshll.u32 %v2923, 16
        %v2949 = vrot.slane %v2947, 1
        %v2950 = vsel %vm2009, %v2945, %v2949
        %v2952 = vshrl.u32 %v2860, 16
        %v2954 = vshll.u32 %v2860, 16
        %v2956 = vrot.slane %v2954, 1
        %v2957 = vor.u32 %v2952, %v2956
        %v2959 = vshll.u32 %v2924, 16
        %v2961 = vrot.slane %v2959, 1
        %v2962 = vsel %vm2009, %v2957, %v2961
        %v2964 = vshrl.u32 %v2861, 16
        %v2966 = vshll.u32 %v2861, 16
        %v2968 = vrot.slane %v2966, 1
        %v2969 = vor.u32 %v2964, %v2968
        %v2971 = vshll.u32 %v2925, 16
        %v2973 = vrot.slane %v2971, 1
        %v2974 = vsel %vm2009, %v2969, %v2973
        %v2976 = vshrl.u32 %v2862, 16
        %v2978 = vshll.u32 %v2862, 16
        %v2980 = vrot.slane %v2978, 1
        %v2981 = vor.u32 %v2976, %v2980
        %v2983 = vshll.u32 %v2926, 16
        %v2985 = vrot.slane %v2983, 1
        %v2986 = vsel %vm2009, %v2981, %v2985
        %v2988 = vshrl.u32 %v2863, 16
        %v2990 = vshll.u32 %v2863, 16
        %v2992 = vrot.slane %v2990, 1
        %v2993 = vor.u32 %v2988, %v2992
        %v2995 = vshll.u32 %v2927, 16
        %v2997 = vrot.slane %v2995, 1
        %v2998 = vsel %vm2009, %v2993, %v2997
        %v3000 = vshrl.u32 %v2864, 16
        %v3002 = vshll.u32 %v2864, 16
        %v3004 = vrot.slane %v3002, 1
        %v3005 = vor.u32 %v3000, %v3004
        %v3007 = vshll.u32 %v2928, 16
        %v3009 = vrot.slane %v3007, 1
        %v3010 = vsel %vm2009, %v3005, %v3009
        %v3012 = vshrl.u32 %v2865, 16
        %v3014 = vshll.u32 %v2865, 16
        %v3016 = vrot.slane %v3014, 1
        %v3017 = vor.u32 %v3012, %v3016
        %v3019 = vshll.u32 %v2929, 16
        %v3021 = vrot.slane %v3019, 1
        %v3022 = vsel %vm2009, %v3017, %v3021
        %v3024 = vshrl.u32 %v2866, 16
        %v3026 = vshll.u32 %v2866, 16
        %v3028 = vrot.slane %v3026, 1
        %v3029 = vor.u32 %v3024, %v3028
        %v3031 = vshll.u32 %v2930, 16
        %v3033 = vrot.slane %v3031, 1
        %v3034 = vsel %vm2009, %v3029, %v3033
        %v3036 = vshrl.u32 %v2867, 16
        %v3038 = vshll.u32 %v2867, 16
        %v3040 = vrot.slane %v3038, 1
        %v3041 = vor.u32 %v3036, %v3040
        %v3043 = vshll.u32 %v2931, 16
        %v3045 = vrot.slane %v3043, 1
        %v3046 = vsel %vm2009, %v3041, %v3045
        %v3048 = vshrl.u32 %v2868, 16
        %v3050 = vshll.u32 %v2868, 16
        %v3052 = vrot.slane %v3050, 1
        %v3053 = vor.u32 %v3048, %v3052
        %v3055 = vshll.u32 %v2932, 16
        %v3057 = vrot.slane %v3055, 1
        %v3058 = vsel %vm2009, %v3053, %v3057
        %v3060 = vshrl.u32 %v2869, 16
        %v3062 = vshll.u32 %v2869, 16
        %v3064 = vrot.slane %v3062, 1
        %v3065 = vor.u32 %v3060, %v3064
        %v3067 = vshll.u32 %v2933, 16
        %v3069 = vrot.slane %v3067, 1
        %v3070 = vsel %vm2009, %v3065, %v3069
        %v3072 = vshrl.u32 %v2870, 16
        %v3074 = vshll.u32 %v2870, 16
        %v3076 = vrot.slane %v3074, 1
        %v3077 = vor.u32 %v3072, %v3076
        %v3079 = vshll.u32 %v2934, 16
        %v3081 = vrot.slane %v3079, 1
        %v3082 = vsel %vm2009, %v3077, %v3081
        %v3084 = vshrl.u32 %v2871, 16
        %v3086 = vshll.u32 %v2871, 16
        %v3088 = vrot.slane %v3086, 1
        %v3089 = vor.u32 %v3084, %v3088
        %v3091 = vshll.u32 %v2935, 16
        %v3093 = vrot.slane %v3091, 1
        %v3094 = vsel %vm2009, %v3089, %v3093
        %v3096 = vshrl.u32 %v2872, 16
        %v3098 = vshll.u32 %v2872, 16
        %v3100 = vrot.slane %v3098, 1
        %v3101 = vor.u32 %v3096, %v3100
        %v3103 = vshll.u32 %v2936, 16
        %v3105 = vrot.slane %v3103, 1
        %v3106 = vsel %vm2009, %v3101, %v3105
        %v3108 = vshrl.u32 %v2873, 16
        %v3110 = vshll.u32 %v2873, 16
        %v3112 = vrot.slane %v3110, 1
        %v3113 = vor.u32 %v3108, %v3112
        %v3115 = vshll.u32 %v2937, 16
        %v3117 = vrot.slane %v3115, 1
        %v3118 = vsel %vm2009, %v3113, %v3117
        %v3120 = vshrl.u32 %v2874, 16
        %v3122 = vshll.u32 %v2874, 16
        %v3124 = vrot.slane %v3122, 1
        %v3125 = vor.u32 %v3120, %v3124
        %v3127 = vshll.u32 %v2938, 16
        %v3129 = vrot.slane %v3127, 1
        %v3130 = vsel %vm2009, %v3125, %v3129
        %v3163 = vunpack.c.l.b16 %v1849
        %v3164 = vunpack.c.l.b16 %v1850
        %v3165 = vunpack.c.l.b16 %v1851
        %v3166 = vunpack.c.l.b16 %v1852
        %v3167 = vunpack.c.l.b16 %v1853
        %v3168 = vunpack.c.l.b16 %v1854
        %v3169 = vunpack.c.l.b16 %v1855
        %v3170 = vunpack.c.l.b16 %v1856
        %v3171 = vunpack.c.l.b16 %v1857
        %v3172 = vunpack.c.l.b16 %v1858
        %v3173 = vunpack.c.l.b16 %v1859
        %v3174 = vunpack.c.l.b16 %v1860
        %v3175 = vunpack.c.l.b16 %v1861
        %v3176 = vunpack.c.l.b16 %v1862
        %v3177 = vunpack.c.l.b16 %v1863
        %v3178 = vunpack.c.l.b16 %v1864
        %v3179 = vpack.c.b16 %v2828, %v3163
        %v3180 = vpack.c.b16 %v2830, %v3164
        %v3181 = vpack.c.b16 %v2832, %v3165
        %v3182 = vpack.c.b16 %v2834, %v3166
        %v3183 = vpack.c.b16 %v2836, %v3167
        %v3184 = vpack.c.b16 %v2838, %v3168
        %v3185 = vpack.c.b16 %v2840, %v3169
        %v3186 = vpack.c.b16 %v2842, %v3170
        %v3187 = vpack.c.b16 %v2844, %v3171
        %v3188 = vpack.c.b16 %v2846, %v3172
        %v3189 = vpack.c.b16 %v2848, %v3173
        %v3190 = vpack.c.b16 %v2850, %v3174
        %v3191 = vpack.c.b16 %v2852, %v3175
        %v3192 = vpack.c.b16 %v2854, %v3176
        %v3193 = vpack.c.b16 %v2856, %v3177
        %v3194 = vpack.c.b16 %v2858, %v3178
        %v3195 = vrot.slane %v3179, 1
        %v3196 = vrot.slane %v2923, 1
        %v3197 = vsel %vm2266, %v3195, %v3196
        %v3198 = vrot.slane %v3180, 1
        %v3199 = vrot.slane %v2924, 1
        %v3200 = vsel %vm2266, %v3198, %v3199
        %v3201 = vrot.slane %v3181, 1
        %v3202 = vrot.slane %v2925, 1
        %v3203 = vsel %vm2266, %v3201, %v3202
        %v3204 = vrot.slane %v3182, 1
        %v3205 = vrot.slane %v2926, 1
        %v3206 = vsel %vm2266, %v3204, %v3205
        %v3207 = vrot.slane %v3183, 1
        %v3208 = vrot.slane %v2927, 1
        %v3209 = vsel %vm2266, %v3207, %v3208
        %v3210 = vrot.slane %v3184, 1
        %v3211 = vrot.slane %v2928, 1
        %v3212 = vsel %vm2266, %v3210, %v3211
        %v3213 = vrot.slane %v3185, 1
        %v3214 = vrot.slane %v2929, 1
        %v3215 = vsel %vm2266, %v3213, %v3214
        %v3216 = vrot.slane %v3186, 1
        %v3217 = vrot.slane %v2930, 1
        %v3218 = vsel %vm2266, %v3216, %v3217
        %v3219 = vrot.slane %v3187, 1
        %v3220 = vrot.slane %v2931, 1
        %v3221 = vsel %vm2266, %v3219, %v3220
        %v3222 = vrot.slane %v3188, 1
        %v3223 = vrot.slane %v2932, 1
        %v3224 = vsel %vm2266, %v3222, %v3223
        %v3225 = vrot.slane %v3189, 1
        %v3226 = vrot.slane %v2933, 1
        %v3227 = vsel %vm2266, %v3225, %v3226
        %v3228 = vrot.slane %v3190, 1
        %v3229 = vrot.slane %v2934, 1
        %v3230 = vsel %vm2266, %v3228, %v3229
        %v3231 = vrot.slane %v3191, 1
        %v3232 = vrot.slane %v2935, 1
        %v3233 = vsel %vm2266, %v3231, %v3232
        %v3234 = vrot.slane %v3192, 1
        %v3235 = vrot.slane %v2936, 1
        %v3236 = vsel %vm2266, %v3234, %v3235
        %v3237 = vrot.slane %v3193, 1
        %v3238 = vrot.slane %v2937, 1
        %v3239 = vsel %vm2266, %v3237, %v3238
        %v3240 = vrot.slane %v3194, 1
        %v3241 = vrot.slane %v2938, 1
        %v3242 = vsel %vm2266, %v3240, %v3241
        %v3259 = vld [vmem:[#allocation11] sm:$0xf]
        %v3260 = vld [vmem:[#allocation11 + $0x4] sm:$0xf]
        %v3261 = vld [vmem:[#allocation11 + $0x8] sm:$0xf]
        %v3262 = vld [vmem:[#allocation11 + $0xc] sm:$0xf]
        %v3263 = vld [vmem:[#allocation11 + $0x10] sm:$0xf]
        %v3264 = vld [vmem:[#allocation11 + $0x14] sm:$0xf]
        %v3265 = vld [vmem:[#allocation11 + $0x18] sm:$0xf]
        %v3266 = vld [vmem:[#allocation11 + $0x1c] sm:$0xf]
        %v3267 = vld [vmem:[#allocation11 + $0x20] sm:$0xf]
        %v3268 = vld [vmem:[#allocation11 + $0x24] sm:$0xf]
        %v3269 = vld [vmem:[#allocation11 + $0x28] sm:$0xf]
        %v3270 = vld [vmem:[#allocation11 + $0x2c] sm:$0xf]
        %v3271 = vld [vmem:[#allocation11 + $0x30] sm:$0xf]
        %v3272 = vld [vmem:[#allocation11 + $0x34] sm:$0xf]
        %v3273 = vld [vmem:[#allocation11 + $0x38] sm:$0xf]
        %v3274 = vld [vmem:[#allocation11 + $0x3c] sm:$0xf]
        %v3275 = vld [vmem:[#allocation11 + $0x40] sm:$0xf]
        %v3276 = vld [vmem:[#allocation11 + $0x44] sm:$0xf]
        %v3277 = vld [vmem:[#allocation11 + $0x48] sm:$0xf]
        %v3278 = vld [vmem:[#allocation11 + $0x4c] sm:$0xf]
        %v3279 = vld [vmem:[#allocation11 + $0x50] sm:$0xf]
        %v3280 = vld [vmem:[#allocation11 + $0x54] sm:$0xf]
        %v3281 = vld [vmem:[#allocation11 + $0x58] sm:$0xf]
        %v3282 = vld [vmem:[#allocation11 + $0x5c] sm:$0xf]
        %v3283 = vld [vmem:[#allocation11 + $0x60] sm:$0xf]
        %v3284 = vld [vmem:[#allocation11 + $0x64] sm:$0xf]
        %v3285 = vld [vmem:[#allocation11 + $0x68] sm:$0xf]
        %v3286 = vld [vmem:[#allocation11 + $0x6c] sm:$0xf]
        %v3287 = vld [vmem:[#allocation11 + $0x70] sm:$0xf]
        %v3288 = vld [vmem:[#allocation11 + $0x74] sm:$0xf]
        %v3289 = vld [vmem:[#allocation11 + $0x78] sm:$0xf]
        %v3290 = vld [vmem:[#allocation11 + $0x7c] sm:$0xf]
        %v3291 = vld [vmem:[#allocation11 + $0x80] sm:$0xf]
        %v3292 = vld [vmem:[#allocation11 + $0x84] sm:$0xf]
        %v3293 = vld [vmem:[#allocation11 + $0x88] sm:$0xf]
        %v3294 = vld [vmem:[#allocation11 + $0x8c] sm:$0xf]
        %v3295 = vld [vmem:[#allocation11 + $0x90] sm:$0xf]
        %v3296 = vld [vmem:[#allocation11 + $0x94] sm:$0xf]
        %v3297 = vld [vmem:[#allocation11 + $0x98] sm:$0xf]
        %v3298 = vld [vmem:[#allocation11 + $0x9c] sm:$0xf]
        %v3299 = vld [vmem:[#allocation11 + $0xa0] sm:$0xf]
        %v3300 = vld [vmem:[#allocation11 + $0xa4] sm:$0xf]
        %v3301 = vld [vmem:[#allocation11 + $0xa8] sm:$0xf]
        %v3302 = vld [vmem:[#allocation11 + $0xac] sm:$0xf]
        %v3303 = vld [vmem:[#allocation11 + $0xb0] sm:$0xf]
        %v3304 = vld [vmem:[#allocation11 + $0xb4] sm:$0xf]
        %v3305 = vld [vmem:[#allocation11 + $0xb8] sm:$0xf]
        %v3306 = vld [vmem:[#allocation11 + $0xbc] sm:$0xf]
        %v3307 = vld [vmem:[#allocation11 + $0xc0] sm:$0xf]
        %v3308 = vld [vmem:[#allocation11 + $0xc4] sm:$0xf]
        %v3309 = vld [vmem:[#allocation11 + $0xc8] sm:$0xf]
        %v3310 = vld [vmem:[#allocation11 + $0xcc] sm:$0xf]
        %v3311 = vld [vmem:[#allocation11 + $0xd0] sm:$0xf]
        %v3312 = vld [vmem:[#allocation11 + $0xd4] sm:$0xf]
        %v3313 = vld [vmem:[#allocation11 + $0xd8] sm:$0xf]
        %v3314 = vld [vmem:[#allocation11 + $0xdc] sm:$0xf]
        %v3315 = vld [vmem:[#allocation11 + $0xe0] sm:$0xf]
        %v3316 = vld [vmem:[#allocation11 + $0xe4] sm:$0xf]
        %v3317 = vld [vmem:[#allocation11 + $0xe8] sm:$0xf]
        %v3318 = vld [vmem:[#allocation11 + $0xec] sm:$0xf]
        %v3319 = vld [vmem:[#allocation11 + $0xf0] sm:$0xf]
        %v3320 = vld [vmem:[#allocation11 + $0xf4] sm:$0xf]
        %v3321 = vld [vmem:[#allocation11 + $0xf8] sm:$0xf]
        %v3322 = vld [vmem:[#allocation11 + $0xfc] sm:$0xf]
        %v3323 = vld [vmem:[#allocation11 + $0x100] sm:$0xf]
        %v3324 = vld [vmem:[#allocation11 + $0x104] sm:$0xf]
        %v3325 = vld [vmem:[#allocation11 + $0x108] sm:$0xf]
        %v3326 = vld [vmem:[#allocation11 + $0x10c] sm:$0xf]
        %v3327 = vld [vmem:[#allocation11 + $0x110] sm:$0xf]
        %v3328 = vld [vmem:[#allocation11 + $0x114] sm:$0xf]
        %v3329 = vld [vmem:[#allocation11 + $0x118] sm:$0xf]
        %v3330 = vld [vmem:[#allocation11 + $0x11c] sm:$0xf]
        %v3331 = vld [vmem:[#allocation11 + $0x120] sm:$0xf]
        %v3332 = vld [vmem:[#allocation11 + $0x124] sm:$0xf]
        %v3333 = vld [vmem:[#allocation11 + $0x128] sm:$0xf]
        %v3334 = vld [vmem:[#allocation11 + $0x12c] sm:$0xf]
        %v3335 = vld [vmem:[#allocation11 + $0x130] sm:$0xf]
        %v3336 = vld [vmem:[#allocation11 + $0x134] sm:$0xf]
        %v3337 = vld [vmem:[#allocation11 + $0x138] sm:$0xf]
        %v3338 = vld [vmem:[#allocation11 + $0x13c] sm:$0xf]
        %v3339 = vld [vmem:[#allocation11 + $0x140] sm:$0xf]
        %v3340 = vld [vmem:[#allocation11 + $0x144] sm:$0xf]
        %v3341 = vld [vmem:[#allocation11 + $0x148] sm:$0xf]
        %v3342 = vld [vmem:[#allocation11 + $0x14c] sm:$0xf]
        %v3343 = vld [vmem:[#allocation11 + $0x150] sm:$0xf]
        %v3344 = vld [vmem:[#allocation11 + $0x154] sm:$0xf]
        %v3345 = vld [vmem:[#allocation11 + $0x158] sm:$0xf]
        %v3346 = vld [vmem:[#allocation11 + $0x15c] sm:$0xf]
        %v3347 = vld [vmem:[#allocation11 + $0x160] sm:$0xf]
        %v3348 = vld [vmem:[#allocation11 + $0x164] sm:$0xf]
        %v3349 = vld [vmem:[#allocation11 + $0x168] sm:$0xf]
        %v3350 = vld [vmem:[#allocation11 + $0x16c] sm:$0xf]
        %v3351 = vld [vmem:[#allocation11 + $0x170] sm:$0xf]
        %v3352 = vld [vmem:[#allocation11 + $0x174] sm:$0xf]
        %v3353 = vld [vmem:[#allocation11 + $0x178] sm:$0xf]
        %v3354 = vld [vmem:[#allocation11 + $0x17c] sm:$0xf]
        %v3355 = vld [vmem:[#allocation11 + $0x180] sm:$0xf]
        %v3356 = vld [vmem:[#allocation11 + $0x184] sm:$0xf]
        %v3357 = vld [vmem:[#allocation11 + $0x188] sm:$0xf]
        %v3358 = vld [vmem:[#allocation11 + $0x18c] sm:$0xf]
        %v3359 = vld [vmem:[#allocation11 + $0x190] sm:$0xf]
        %v3360 = vld [vmem:[#allocation11 + $0x194] sm:$0xf]
        %v3361 = vld [vmem:[#allocation11 + $0x198] sm:$0xf]
        %v3362 = vld [vmem:[#allocation11 + $0x19c] sm:$0xf]
        %v3363 = vld [vmem:[#allocation11 + $0x1a0] sm:$0xf]
        %v3364 = vld [vmem:[#allocation11 + $0x1a4] sm:$0xf]
        %v3365 = vld [vmem:[#allocation11 + $0x1a8] sm:$0xf]
        %v3366 = vld [vmem:[#allocation11 + $0x1ac] sm:$0xf]
        %v3367 = vld [vmem:[#allocation11 + $0x1b0] sm:$0xf]
        %v3368 = vld [vmem:[#allocation11 + $0x1b4] sm:$0xf]
        %v3369 = vld [vmem:[#allocation11 + $0x1b8] sm:$0xf]
        %v3370 = vld [vmem:[#allocation11 + $0x1bc] sm:$0xf]
        %v3371 = vld [vmem:[#allocation11 + $0x1c0] sm:$0xf]
        %v3372 = vld [vmem:[#allocation11 + $0x1c4] sm:$0xf]
        %v3373 = vld [vmem:[#allocation11 + $0x1c8] sm:$0xf]
        %v3374 = vld [vmem:[#allocation11 + $0x1cc] sm:$0xf]
        %v3375 = vld [vmem:[#allocation11 + $0x1d0] sm:$0xf]
        %v3376 = vld [vmem:[#allocation11 + $0x1d4] sm:$0xf]
        %v3377 = vld [vmem:[#allocation11 + $0x1d8] sm:$0xf]
        %v3378 = vld [vmem:[#allocation11 + $0x1dc] sm:$0xf]
        %v3379 = vld [vmem:[#allocation11 + $0x1e0] sm:$0xf]
        %v3380 = vld [vmem:[#allocation11 + $0x1e4] sm:$0xf]
        %v3381 = vld [vmem:[#allocation11 + $0x1e8] sm:$0xf]
        %v3382 = vld [vmem:[#allocation11 + $0x1ec] sm:$0xf]
        %v3383 = vld [vmem:[#allocation11 + $0x1f0] sm:$0xf]
        %v3384 = vld [vmem:[#allocation11 + $0x1f4] sm:$0xf]
        %v3385 = vld [vmem:[#allocation11 + $0x1f8] sm:$0xf]
        %v3386 = vld [vmem:[#allocation11 + $0x1fc] sm:$0xf]
        %v3387 = vld [vmem:[#allocation11 + $0x200] sm:$0xf]
        %v3388 = vld [vmem:[#allocation11 + $0x204] sm:$0xf]
        %v3389 = vld [vmem:[#allocation11 + $0x208] sm:$0xf]
        %v3390 = vld [vmem:[#allocation11 + $0x20c] sm:$0xf]
        %v3391 = vld [vmem:[#allocation11 + $0x210] sm:$0xf]
        %v3392 = vld [vmem:[#allocation11 + $0x214] sm:$0xf]
        %v3393 = vld [vmem:[#allocation11 + $0x218] sm:$0xf]
        %v3394 = vld [vmem:[#allocation11 + $0x21c] sm:$0xf]
        %v3395 = vld [vmem:[#allocation11 + $0x220] sm:$0xf]
        %v3396 = vld [vmem:[#allocation11 + $0x224] sm:$0xf]
        %v3397 = vld [vmem:[#allocation11 + $0x228] sm:$0xf]
        %v3398 = vld [vmem:[#allocation11 + $0x22c] sm:$0xf]
        %v3399 = vld [vmem:[#allocation11 + $0x230] sm:$0xf]
        %v3400 = vld [vmem:[#allocation11 + $0x234] sm:$0xf]
        %v3401 = vld [vmem:[#allocation11 + $0x238] sm:$0xf]
        %v3402 = vld [vmem:[#allocation11 + $0x23c] sm:$0xf]
        %v3403 = vld [vmem:[%s7] sm:$0x1]
        %v3405 = vlaneseq
        %v3406 = vshrl.u32 %v3405, 7
        %v3407 = vsub.s32 0, %v3406
        %v3408 = vrot.slane %v3403, %v3407
        %v3554 = vunpack.c.l.b16 %v3259
        %v3555 = vunpack.c.l.b16 %v3260
        %v3556 = vunpack.c.l.b16 %v3261
        %v3557 = vunpack.c.l.b16 %v3262
        %v3558 = vunpack.c.l.b16 %v3263
        %v3559 = vunpack.c.l.b16 %v3264
        %v3560 = vunpack.c.l.b16 %v3265
        %v3561 = vunpack.c.l.b16 %v3266
        %v3562 = vunpack.c.l.b16 %v3267
        %v3563 = vunpack.c.l.b16 %v3268
        %v3564 = vunpack.c.l.b16 %v3269
        %v3565 = vunpack.c.l.b16 %v3270
        %v3566 = vunpack.c.l.b16 %v3271
        %v3567 = vunpack.c.l.b16 %v3272
        %v3568 = vunpack.c.l.b16 %v3273
        %v3569 = vunpack.c.l.b16 %v3274
        %v3570 = vunpack.c.l.b16 %v3275
        %v3571 = vunpack.c.l.b16 %v3276
        %v3572 = vunpack.c.l.b16 %v3277
        %v3573 = vunpack.c.l.b16 %v3278
        %v3574 = vunpack.c.l.b16 %v3279
        %v3575 = vunpack.c.l.b16 %v3280
        %v3576 = vunpack.c.l.b16 %v3281
        %v3577 = vunpack.c.l.b16 %v3282
        %v3578 = vunpack.c.l.b16 %v3283
        %v3579 = vunpack.c.l.b16 %v3284
        %v3580 = vunpack.c.l.b16 %v3285
        %v3581 = vunpack.c.l.b16 %v3286
        %v3582 = vunpack.c.l.b16 %v3287
        %v3583 = vunpack.c.l.b16 %v3288
        %v3584 = vunpack.c.l.b16 %v3289
        %v3585 = vunpack.c.l.b16 %v3290
        %v3586 = vunpack.c.l.b16 %v3291
        %v3587 = vunpack.c.l.b16 %v3292
        %v3588 = vunpack.c.l.b16 %v3293
        %v3589 = vunpack.c.l.b16 %v3294
        %v3590 = vunpack.c.l.b16 %v3295
        %v3591 = vunpack.c.l.b16 %v3296
        %v3592 = vunpack.c.l.b16 %v3297
        %v3593 = vunpack.c.l.b16 %v3298
        %v3594 = vunpack.c.l.b16 %v3299
        %v3595 = vunpack.c.l.b16 %v3300
        %v3596 = vunpack.c.l.b16 %v3301
        %v3597 = vunpack.c.l.b16 %v3302
        %v3598 = vunpack.c.l.b16 %v3303
        %v3599 = vunpack.c.l.b16 %v3304
        %v3600 = vunpack.c.l.b16 %v3305
        %v3601 = vunpack.c.l.b16 %v3306
        %v3602 = vunpack.c.l.b16 %v3307
        %v3603 = vunpack.c.l.b16 %v3308
        %v3604 = vunpack.c.l.b16 %v3309
        %v3605 = vunpack.c.l.b16 %v3310
        %v3606 = vunpack.c.l.b16 %v3311
        %v3607 = vunpack.c.l.b16 %v3312
        %v3608 = vunpack.c.l.b16 %v3313
        %v3609 = vunpack.c.l.b16 %v3314
        %v3610 = vunpack.c.l.b16 %v3315
        %v3611 = vunpack.c.l.b16 %v3316
        %v3612 = vunpack.c.l.b16 %v3317
        %v3613 = vunpack.c.l.b16 %v3318
        %v3614 = vunpack.c.l.b16 %v3319
        %v3615 = vunpack.c.l.b16 %v3320
        %v3616 = vunpack.c.l.b16 %v3321
        %v3617 = vunpack.c.l.b16 %v3322
        %v3618 = vunpack.c.l.b16 %v3323
        %v3619 = vunpack.c.l.b16 %v3324
        %v3620 = vunpack.c.l.b16 %v3325
        %v3621 = vunpack.c.l.b16 %v3326
        %v3622 = vunpack.c.l.b16 %v3327
        %v3623 = vunpack.c.l.b16 %v3328
        %v3624 = vunpack.c.l.b16 %v3329
        %v3625 = vunpack.c.l.b16 %v3330
        %v3626 = vunpack.c.l.b16 %v3331
        %v3627 = vunpack.c.l.b16 %v3332
        %v3628 = vunpack.c.l.b16 %v3333
        %v3629 = vunpack.c.l.b16 %v3334
        %v3630 = vunpack.c.l.b16 %v3335
        %v3631 = vunpack.c.l.b16 %v3336
        %v3632 = vunpack.c.l.b16 %v3337
        %v3633 = vunpack.c.l.b16 %v3338
        %v3634 = vunpack.c.l.b16 %v3339
        %v3635 = vunpack.c.l.b16 %v3340
        %v3636 = vunpack.c.l.b16 %v3341
        %v3637 = vunpack.c.l.b16 %v3342
        %v3638 = vunpack.c.l.b16 %v3343
        %v3639 = vunpack.c.l.b16 %v3344
        %v3640 = vunpack.c.l.b16 %v3345
        %v3641 = vunpack.c.l.b16 %v3346
        %v3642 = vunpack.c.l.b16 %v3347
        %v3643 = vunpack.c.l.b16 %v3348
        %v3644 = vunpack.c.l.b16 %v3349
        %v3645 = vunpack.c.l.b16 %v3350
        %v3646 = vunpack.c.l.b16 %v3351
        %v3647 = vunpack.c.l.b16 %v3352
        %v3648 = vunpack.c.l.b16 %v3353
        %v3649 = vunpack.c.l.b16 %v3354
        %v3650 = vunpack.c.l.b16 %v3355
        %v3651 = vunpack.c.l.b16 %v3356
        %v3652 = vunpack.c.l.b16 %v3357
        %v3653 = vunpack.c.l.b16 %v3358
        %v3654 = vunpack.c.l.b16 %v3359
        %v3655 = vunpack.c.l.b16 %v3360
        %v3656 = vunpack.c.l.b16 %v3361
        %v3657 = vunpack.c.l.b16 %v3362
        %v3658 = vunpack.c.l.b16 %v3363
        %v3659 = vunpack.c.l.b16 %v3364
        %v3660 = vunpack.c.l.b16 %v3365
        %v3661 = vunpack.c.l.b16 %v3366
        %v3662 = vunpack.c.l.b16 %v3367
        %v3663 = vunpack.c.l.b16 %v3368
        %v3664 = vunpack.c.l.b16 %v3369
        %v3665 = vunpack.c.l.b16 %v3370
        %v3666 = vunpack.c.l.b16 %v3371
        %v3667 = vunpack.c.l.b16 %v3372
        %v3668 = vunpack.c.l.b16 %v3373
        %v3669 = vunpack.c.l.b16 %v3374
        %v3670 = vunpack.c.l.b16 %v3375
        %v3671 = vunpack.c.l.b16 %v3376
        %v3672 = vunpack.c.l.b16 %v3377
        %v3673 = vunpack.c.l.b16 %v3378
        %v3674 = vunpack.c.l.b16 %v3379
        %v3675 = vunpack.c.l.b16 %v3380
        %v3676 = vunpack.c.l.b16 %v3381
        %v3677 = vunpack.c.l.b16 %v3382
        %v3678 = vunpack.c.l.b16 %v3383
        %v3679 = vunpack.c.l.b16 %v3384
        %v3680 = vunpack.c.l.b16 %v3385
        %v3681 = vunpack.c.l.b16 %v3386
        %v3682 = vunpack.c.l.b16 %v3387
        %v3683 = vunpack.c.l.b16 %v3388
        %v3684 = vunpack.c.l.b16 %v3389
        %v3685 = vunpack.c.l.b16 %v3390
        %v3686 = vunpack.c.l.b16 %v3391
        %v3687 = vunpack.c.l.b16 %v3392
        %v3688 = vunpack.c.l.b16 %v3393
        %v3689 = vunpack.c.l.b16 %v3394
        %v3690 = vunpack.c.l.b16 %v3395
        %v3691 = vunpack.c.l.b16 %v3396
        %v3692 = vunpack.c.l.b16 %v3397
        %v3693 = vunpack.c.l.b16 %v3398
        %v3694 = vunpack.c.l.b16 %v3399
        %v3695 = vunpack.c.l.b16 %v3400
        %v3696 = vunpack.c.l.b16 %v3401
        %v3697 = vunpack.c.l.b16 %v3402
        %v3698 = vpack.c.b16 %v3555, %v3554
        %v3699 = vpack.c.b16 %v3557, %v3556
        %v3700 = vpack.c.b16 %v3559, %v3558
        %v3701 = vpack.c.b16 %v3561, %v3560
        %v3702 = vpack.c.b16 %v3563, %v3562
        %v3703 = vpack.c.b16 %v3565, %v3564
        %v3704 = vpack.c.b16 %v3567, %v3566
        %v3705 = vpack.c.b16 %v3569, %v3568
        %v3706 = vpack.c.b16 %v3571, %v3570
        %v3707 = vpack.c.b16 %v3573, %v3572
        %v3708 = vpack.c.b16 %v3575, %v3574
        %v3709 = vpack.c.b16 %v3577, %v3576
        %v3710 = vpack.c.b16 %v3579, %v3578
        %v3711 = vpack.c.b16 %v3581, %v3580
        %v3712 = vpack.c.b16 %v3583, %v3582
        %v3713 = vpack.c.b16 %v3585, %v3584
        %v3714 = vpack.c.b16 %v3587, %v3586
        %v3715 = vpack.c.b16 %v3589, %v3588
        %v3716 = vpack.c.b16 %v3591, %v3590
        %v3717 = vpack.c.b16 %v3593, %v3592
        %v3718 = vpack.c.b16 %v3595, %v3594
        %v3719 = vpack.c.b16 %v3597, %v3596
        %v3720 = vpack.c.b16 %v3599, %v3598
        %v3721 = vpack.c.b16 %v3601, %v3600
        %v3722 = vpack.c.b16 %v3603, %v3602
        %v3723 = vpack.c.b16 %v3605, %v3604
        %v3724 = vpack.c.b16 %v3607, %v3606
        %v3725 = vpack.c.b16 %v3609, %v3608
        %v3726 = vpack.c.b16 %v3611, %v3610
        %v3727 = vpack.c.b16 %v3613, %v3612
        %v3728 = vpack.c.b16 %v3615, %v3614
        %v3729 = vpack.c.b16 %v3617, %v3616
        %v3730 = vpack.c.b16 %v3619, %v3618
        %v3731 = vpack.c.b16 %v3621, %v3620
        %v3732 = vpack.c.b16 %v3623, %v3622
        %v3733 = vpack.c.b16 %v3625, %v3624
        %v3734 = vpack.c.b16 %v3627, %v3626
        %v3735 = vpack.c.b16 %v3629, %v3628
        %v3736 = vpack.c.b16 %v3631, %v3630
        %v3737 = vpack.c.b16 %v3633, %v3632
        %v3738 = vpack.c.b16 %v3635, %v3634
        %v3739 = vpack.c.b16 %v3637, %v3636
        %v3740 = vpack.c.b16 %v3639, %v3638
        %v3741 = vpack.c.b16 %v3641, %v3640
        %v3742 = vpack.c.b16 %v3643, %v3642
        %v3743 = vpack.c.b16 %v3645, %v3644
        %v3744 = vpack.c.b16 %v3647, %v3646
        %v3745 = vpack.c.b16 %v3649, %v3648
        %v3746 = vpack.c.b16 %v3651, %v3650
        %v3747 = vpack.c.b16 %v3653, %v3652
        %v3748 = vpack.c.b16 %v3655, %v3654
        %v3749 = vpack.c.b16 %v3657, %v3656
        %v3750 = vpack.c.b16 %v3659, %v3658
        %v3751 = vpack.c.b16 %v3661, %v3660
        %v3752 = vpack.c.b16 %v3663, %v3662
        %v3753 = vpack.c.b16 %v3665, %v3664
        %v3754 = vpack.c.b16 %v3667, %v3666
        %v3755 = vpack.c.b16 %v3669, %v3668
        %v3756 = vpack.c.b16 %v3671, %v3670
        %v3757 = vpack.c.b16 %v3673, %v3672
        %v3758 = vpack.c.b16 %v3675, %v3674
        %v3759 = vpack.c.b16 %v3677, %v3676
        %v3760 = vpack.c.b16 %v3679, %v3678
        %v3761 = vpack.c.b16 %v3681, %v3680
        %v3762 = vpack.c.b16 %v3683, %v3682
        %v3763 = vpack.c.b16 %v3685, %v3684
        %v3764 = vpack.c.b16 %v3687, %v3686
        %v3765 = vpack.c.b16 %v3689, %v3688
        %v3766 = vpack.c.b16 %v3691, %v3690
        %v3767 = vpack.c.b16 %v3693, %v3692
        %v3768 = vpack.c.b16 %v3695, %v3694
        %v3769 = vpack.c.b16 %v3697, %v3696
        %3842 = vmatprep.subr.bf16.mxu0 0
        %3843 = vmatpush1.bf16.msra.mxu0 %v3698
        %3844 = vmatprep.subr.bf16.mxu0 0
        %3845 = vmatpush1.bf16.msra.mxu0 %v3699
        %3846 = vmatprep.subr.bf16.mxu0 0
        %3847 = vmatpush1.bf16.msra.mxu0 %v3700
        %3848 = vmatprep.subr.bf16.mxu0 0
        %3849 = vmatpush1.bf16.msra.mxu0 %v3701
        %3850 = vmatprep.subr.bf16.mxu0 0
        %3851 = vmatpush1.bf16.msra.mxu0 %v3702
        %3852 = vmatprep.subr.bf16.mxu0 0
        %3853 = vmatpush1.bf16.msra.mxu0 %v3703
        %3854 = vmatprep.subr.bf16.mxu0 0
        %3855 = vmatpush1.bf16.msra.mxu0 %v3704
        %3856 = vmatprep.subr.bf16.mxu0 0
        %3857 = vmatpush1.bf16.msra.mxu0 %v3705
        %3858 = vmatprep.subr.bf16.mxu0 0
        %3859 = vmatpush1.bf16.msra.mxu0 %v3706
        %3860 = vmatprep.subr.bf16.mxu0 0
        %3861 = vmatpush1.bf16.msra.mxu0 %v3707
        %3862 = vmatprep.subr.bf16.mxu0 0
        %3863 = vmatpush1.bf16.msra.mxu0 %v3708
        %3864 = vmatprep.subr.bf16.mxu0 0
        %3865 = vmatpush1.bf16.msra.mxu0 %v3709
        %3866 = vmatprep.subr.bf16.mxu0 0
        %3867 = vmatpush1.bf16.msra.mxu0 %v3710
        %3868 = vmatprep.subr.bf16.mxu0 0
        %3869 = vmatpush1.bf16.msra.mxu0 %v3711
        %3870 = vmatprep.subr.bf16.mxu0 0
        %3871 = vmatpush1.bf16.msra.mxu0 %v3712
        %3872 = vmatprep.subr.bf16.mxu0 0
        %3873 = vmatpush1.bf16.msra.mxu0 %v3713
        %3874 = vmatprep.mubr.bf16.mxu0 %v2021
        %3875 = vmatmul.mubr.bf16.gmra.mrb[0].mxu0 %v1929
        %v3876 = vpop.f32.mrb[0].mxu0
        %v3877 = vadd.f32 %v3408, %v3876
        %v3878 = vpop.f32.mrb[0].mxu0
        %v3879 = vpop.f32.mrb[0].mxu0
        %v3880 = vadd.f32 %v3408, %v3879
        %v3881 = vpop.f32.mrb[0].mxu0
        %3882 = vmatprep.mubr.bf16.mxu0 %v2033
        %3883 = vmatmul.mubr.bf16.gmra.mrb[0].mxu0 %v1930
        %v3884 = vpop.f32.mrb[0].mxu0
        %v3885 = vadd.f32 %v3408, %v3884
        %v3886 = vpop.f32.mrb[0].mxu0
        %v3887 = vpop.f32.mrb[0].mxu0
        %v3888 = vadd.f32 %v3408, %v3887
        %v3889 = vpop.f32.mrb[0].mxu0
        %3890 = vmatprep.mubr.bf16.mxu0 %v2045
        %3891 = vmatmul.mubr.bf16.gmra.mrb[0].mxu0 %v1931
        %v3892 = vpop.f32.mrb[0].mxu0
        %v3893 = vadd.f32 %v3408, %v3892
        %v3894 = vpop.f32.mrb[0].mxu0
        %v3895 = vpop.f32.mrb[0].mxu0
        %v3896 = vadd.f32 %v3408, %v3895
        %v3897 = vpop.f32.mrb[0].mxu0
        %3898 = vmatprep.mubr.bf16.mxu0 %v2057
        %3899 = vmatmul.mubr.bf16.gmra.mrb[0].mxu0 %v1932
        %v3900 = vpop.f32.mrb[0].mxu0
        %v3901 = vadd.f32 %v3408, %v3900
        %v3902 = vpop.f32.mrb[0].mxu0
        %v3903 = vpop.f32.mrb[0].mxu0
        %v3904 = vadd.f32 %v3408, %v3903
        %v3905 = vpop.f32.mrb[0].mxu0
        %3906 = vmatprep.mubr.bf16.mxu0 %v2069
        %3907 = vmatmul.mubr.bf16.gmra.mrb[0].mxu0 %v1933
        %v3908 = vpop.f32.mrb[0].mxu0
        %v3909 = vadd.f32 %v3408, %v3908
        %v3910 = vpop.f32.mrb[0].mxu0
        %v3911 = vpop.f32.mrb[0].mxu0
        %v3912 = vadd.f32 %v3408, %v3911
        %v3913 = vpop.f32.mrb[0].mxu0
        %3914 = vmatprep.mubr.bf16.mxu0 %v2081
        %3915 = vmatmul.mubr.bf16.gmra.mrb[0].mxu0 %v1934
        %v3916 = vpop.f32.mrb[0].mxu0
        %v3917 = vadd.f32 %v3408, %v3916
        %v3918 = vpop.f32.mrb[0].mxu0
        %v3919 = vpop.f32.mrb[0].mxu0
        %v3920 = vadd.f32 %v3408, %v3919
        %v3921 = vpop.f32.mrb[0].mxu0
        %3922 = vmatprep.mubr.bf16.mxu0 %v2093
        %3923 = vmatmul.mubr.bf16.gmra.mrb[0].mxu0 %v1935
        %v3924 = vpop.f32.mrb[0].mxu0
        %v3925 = vadd.f32 %v3408, %v3924
        %v3926 = vpop.f32.mrb[0].mxu0
        %v3927 = vpop.f32.mrb[0].mxu0
        %v3928 = vadd.f32 %v3408, %v3927
        %v3929 = vpop.f32.mrb[0].mxu0
        %3930 = vmatprep.mubr.bf16.mxu0 %v2105
        %3931 = vmatmul.mubr.bf16.gmra.mrb[0].mxu0 %v1936
        %v3932 = vpop.f32.mrb[0].mxu0
        %v3933 = vadd.f32 %v3408, %v3932
        %v3934 = vpop.f32.mrb[0].mxu0
        %v3935 = vpop.f32.mrb[0].mxu0
        %v3936 = vadd.f32 %v3408, %v3935
        %v3937 = vpop.f32.mrb[0].mxu0
        %3938 = vmatprep.mubr.bf16.mxu0 %v2117
        %3939 = vmatmul.mubr.bf16.gmra.mrb[0].mxu0 %v1937
        %v3940 = vpop.f32.mrb[0].mxu0
        %v3941 = vadd.f32 %v3408, %v3940
        %v3942 = vpop.f32.mrb[0].mxu0
        %v3943 = vpop.f32.mrb[0].mxu0
        %v3944 = vadd.f32 %v3408, %v3943
        %v3945 = vpop.f32.mrb[0].mxu0
        %3946 = vmatprep.mubr.bf16.mxu0 %v2129
        %3947 = vmatmul.mubr.bf16.gmra.mrb[0].mxu0 %v1938
        %v3948 = vpop.f32.mrb[0].mxu0
        %v3949 = vadd.f32 %v3408, %v3948
        %v3950 = vpop.f32.mrb[0].mxu0
        %v3951 = vpop.f32.mrb[0].mxu0
        %v3952 = vadd.f32 %v3408, %v3951
        %v3953 = vpop.f32.mrb[0].mxu0
        %3954 = vmatprep.mubr.bf16.mxu0 %v2141
        %3955 = vmatmul.mubr.bf16.gmra.mrb[0].mxu0 %v1939
        %v3956 = vpop.f32.mrb[0].mxu0
        %v3957 = vadd.f32 %v3408, %v3956
        %v3958 = vpop.f32.mrb[0].mxu0
        %v3959 = vpop.f32.mrb[0].mxu0
        %v3960 = vadd.f32 %v3408, %v3959
        %v3961 = vpop.f32.mrb[0].mxu0
        %3962 = vmatprep.mubr.bf16.mxu0 %v2153
        %3963 = vmatmul.mubr.bf16.gmra.mrb[0].mxu0 %v1940
        %v3964 = vpop.f32.mrb[0].mxu0
        %v3965 = vadd.f32 %v3408, %v3964
        %v3966 = vpop.f32.mrb[0].mxu0
        %v3967 = vpop.f32.mrb[0].mxu0
        %v3968 = vadd.f32 %v3408, %v3967
        %v3969 = vpop.f32.mrb[0].mxu0
        %3970 = vmatprep.mubr.bf16.mxu0 %v2165
        %3971 = vmatmul.mubr.bf16.gmra.mrb[0].mxu0 %v1941
        %v3972 = vpop.f32.mrb[0].mxu0
        %v3973 = vadd.f32 %v3408, %v3972
        %v3974 = vpop.f32.mrb[0].mxu0
        %v3975 = vpop.f32.mrb[0].mxu0
        %v3976 = vadd.f32 %v3408, %v3975
        %v3977 = vpop.f32.mrb[0].mxu0
        %3978 = vmatprep.mubr.bf16.mxu0 %v2177
        %3979 = vmatmul.mubr.bf16.gmra.mrb[0].mxu0 %v1942
        %v3980 = vpop.f32.mrb[0].mxu0
        %v3981 = vadd.f32 %v3408, %v3980
        %v3982 = vpop.f32.mrb[0].mxu0
        %v3983 = vpop.f32.mrb[0].mxu0
        %v3984 = vadd.f32 %v3408, %v3983
        %v3985 = vpop.f32.mrb[0].mxu0
        %3986 = vmatprep.mubr.bf16.mxu0 %v2189
        %3987 = vmatmul.mubr.bf16.gmra.mrb[0].mxu0 %v1943
        %v3988 = vpop.f32.mrb[0].mxu0
        %v3989 = vadd.f32 %v3408, %v3988
        %v3990 = vpop.f32.mrb[0].mxu0
        %v3991 = vpop.f32.mrb[0].mxu0
        %v3992 = vadd.f32 %v3408, %v3991
        %v3993 = vpop.f32.mrb[0].mxu0
        %3994 = vmatprep.mubr.bf16.mxu0 %v2201
        %3995 = vmatmul.mubr.bf16.gmra.mrb[0].mxu0 %v1944
        %v3996 = vpop.f32.mrb[0].mxu0
        %v3997 = vadd.f32 %v3408, %v3996
        %v3998 = vpop.f32.mrb[0].mxu0
        %v3999 = vpop.f32.mrb[0].mxu0
        %v4000 = vadd.f32 %v3408, %v3999
        %v4001 = vpop.f32.mrb[0].mxu0
        %4002 = vdwg.mxu0
        %4003 = vmatprep.subr.bf16.mxu0 0
        %4004 = vmatpush1.bf16.msra.mxu0 %v3714
        %4005 = vmatprep.subr.bf16.mxu0 0
        %4006 = vmatpush1.bf16.msra.mxu0 %v3715
        %4007 = vmatprep.subr.bf16.mxu0 0
        %4008 = vmatpush1.bf16.msra.mxu0 %v3716
        %4009 = vmatprep.subr.bf16.mxu0 0
        %4010 = vmatpush1.bf16.msra.mxu0 %v3717
        %4011 = vmatprep.subr.bf16.mxu0 0
        %4012 = vmatpush1.bf16.msra.mxu0 %v3718
        %4013 = vmatprep.subr.bf16.mxu0 0
        %4014 = vmatpush1.bf16.msra.mxu0 %v3719
        %4015 = vmatprep.subr.bf16.mxu0 0
        %4016 = vmatpush1.bf16.msra.mxu0 %v3720
        %4017 = vmatprep.subr.bf16.mxu0 0
        %4018 = vmatpush1.bf16.msra.mxu0 %v3721
        %4019 = vmatprep.subr.bf16.mxu0 0
        %4020 = vmatpush1.bf16.msra.mxu0 %v3722
        %4021 = vmatprep.subr.bf16.mxu0 0
        %4022 = vmatpush1.bf16.msra.mxu0 %v3723
        %4023 = vmatprep.subr.bf16.mxu0 0
        %4024 = vmatpush1.bf16.msra.mxu0 %v3724
        %4025 = vmatprep.subr.bf16.mxu0 0
        %4026 = vmatpush1.bf16.msra.mxu0 %v3725
        %4027 = vmatprep.subr.bf16.mxu0 0
        %4028 = vmatpush1.bf16.msra.mxu0 %v3726
        %4029 = vmatprep.subr.bf16.mxu0 0
        %4030 = vmatpush1.bf16.msra.mxu0 %v3727
        %4031 = vmatprep.subr.bf16.mxu0 0
        %4032 = vmatpush1.bf16.msra.mxu0 %v3728
        %4033 = vmatprep.subr.bf16.mxu0 0
        %4034 = vmatpush1.bf16.msra.mxu0 %v3729
        %4035 = vmatprep.mubr.bf16.mxu0 %v2395
        %4036 = vmatmul.mubr.bf16.gmra.mrb[0].mxu0 %v2269
        %v4037 = vpop.f32.mrb[0].mxu0
        %v4038 = vadd.f32 %v3877, %v4037
        %v4039 = vpop.f32.mrb[0].mxu0
        %v4040 = vpop.f32.mrb[0].mxu0
        %v4041 = vadd.f32 %v3880, %v4040
        %v4042 = vpop.f32.mrb[0].mxu0
        %4043 = vmatprep.mubr.bf16.mxu0 %v2396
        %4044 = vmatmul.mubr.bf16.gmra.mrb[0].mxu0 %v2272
        %v4045 = vpop.f32.mrb[0].mxu0
        %v4046 = vadd.f32 %v3885, %v4045
        %v4047 = vpop.f32.mrb[0].mxu0
        %v4048 = vpop.f32.mrb[0].mxu0
        %v4049 = vadd.f32 %v3888, %v4048
        %v4050 = vpop.f32.mrb[0].mxu0
        %4051 = vmatprep.mubr.bf16.mxu0 %v2397
        %4052 = vmatmul.mubr.bf16.gmra.mrb[0].mxu0 %v2275
        %v4053 = vpop.f32.mrb[0].mxu0
        %v4054 = vadd.f32 %v3893, %v4053
        %v4055 = vpop.f32.mrb[0].mxu0
        %v4056 = vpop.f32.mrb[0].mxu0
        %v4057 = vadd.f32 %v3896, %v4056
        %v4058 = vpop.f32.mrb[0].mxu0
        %4059 = vmatprep.mubr.bf16.mxu0 %v2398
        %4060 = vmatmul.mubr.bf16.gmra.mrb[0].mxu0 %v2278
        %v4061 = vpop.f32.mrb[0].mxu0
        %v4062 = vadd.f32 %v3901, %v4061
        %v4063 = vpop.f32.mrb[0].mxu0
        %v4064 = vpop.f32.mrb[0].mxu0
        %v4065 = vadd.f32 %v3904, %v4064
        %v4066 = vpop.f32.mrb[0].mxu0
        %4067 = vmatprep.mubr.bf16.mxu0 %v2399
        %4068 = vmatmul.mubr.bf16.gmra.mrb[0].mxu0 %v2281
        %v4069 = vpop.f32.mrb[0].mxu0
        %v4070 = vadd.f32 %v3909, %v4069
        %v4071 = vpop.f32.mrb[0].mxu0
        %v4072 = vpop.f32.mrb[0].mxu0
        %v4073 = vadd.f32 %v3912, %v4072
        %v4074 = vpop.f32.mrb[0].mxu0
        %4075 = vmatprep.mubr.bf16.mxu0 %v2400
        %4076 = vmatmul.mubr.bf16.gmra.mrb[0].mxu0 %v2284
        %v4077 = vpop.f32.mrb[0].mxu0
        %v4078 = vadd.f32 %v3917, %v4077
        %v4079 = vpop.f32.mrb[0].mxu0
        %v4080 = vpop.f32.mrb[0].mxu0
        %v4081 = vadd.f32 %v3920, %v4080
        %v4082 = vpop.f32.mrb[0].mxu0
        %4083 = vmatprep.mubr.bf16.mxu0 %v2401
        %4084 = vmatmul.mubr.bf16.gmra.mrb[0].mxu0 %v2287
        %v4085 = vpop.f32.mrb[0].mxu0
        %v4086 = vadd.f32 %v3925, %v4085
        %v4087 = vpop.f32.mrb[0].mxu0
        %v4088 = vpop.f32.mrb[0].mxu0
        %v4089 = vadd.f32 %v3928, %v4088
        %v4090 = vpop.f32.mrb[0].mxu0
        %4091 = vmatprep.mubr.bf16.mxu0 %v2402
        %4092 = vmatmul.mubr.bf16.gmra.mrb[0].mxu0 %v2290
        %v4093 = vpop.f32.mrb[0].mxu0
        %v4094 = vadd.f32 %v3933, %v4093
        %v4095 = vpop.f32.mrb[0].mxu0
        %v4096 = vpop.f32.mrb[0].mxu0
        %v4097 = vadd.f32 %v3936, %v4096
        %v4098 = vpop.f32.mrb[0].mxu0
        %4099 = vmatprep.mubr.bf16.mxu0 %v2403
        %4100 = vmatmul.mubr.bf16.gmra.mrb[0].mxu0 %v2293
        %v4101 = vpop.f32.mrb[0].mxu0
        %v4102 = vadd.f32 %v3941, %v4101
        %v4103 = vpop.f32.mrb[0].mxu0
        %v4104 = vpop.f32.mrb[0].mxu0
        %v4105 = vadd.f32 %v3944, %v4104
        %v4106 = vpop.f32.mrb[0].mxu0
        %4107 = vmatprep.mubr.bf16.mxu0 %v2404
        %4108 = vmatmul.mubr.bf16.gmra.mrb[0].mxu0 %v2296
        %v4109 = vpop.f32.mrb[0].mxu0
        %v4110 = vadd.f32 %v3949, %v4109
        %v4111 = vpop.f32.mrb[0].mxu0
        %v4112 = vpop.f32.mrb[0].mxu0
        %v4113 = vadd.f32 %v3952, %v4112
        %v4114 = vpop.f32.mrb[0].mxu0
        %4115 = vmatprep.mubr.bf16.mxu0 %v2405
        %4116 = vmatmul.mubr.bf16.gmra.mrb[0].mxu0 %v2299
        %v4117 = vpop.f32.mrb[0].mxu0
        %v4118 = vadd.f32 %v3957, %v4117
        %v4119 = vpop.f32.mrb[0].mxu0
        %v4120 = vpop.f32.mrb[0].mxu0
        %v4121 = vadd.f32 %v3960, %v4120
        %v4122 = vpop.f32.mrb[0].mxu0
        %4123 = vmatprep.mubr.bf16.mxu0 %v2406
        %4124 = vmatmul.mubr.bf16.gmra.mrb[0].mxu0 %v2302
        %v4125 = vpop.f32.mrb[0].mxu0
        %v4126 = vadd.f32 %v3965, %v4125
        %v4127 = vpop.f32.mrb[0].mxu0
        %v4128 = vpop.f32.mrb[0].mxu0
        %v4129 = vadd.f32 %v3968, %v4128
        %v4130 = vpop.f32.mrb[0].mxu0
        %4131 = vmatprep.mubr.bf16.mxu0 %v2407
        %4132 = vmatmul.mubr.bf16.gmra.mrb[0].mxu0 %v2305
        %v4133 = vpop.f32.mrb[0].mxu0
        %v4134 = vadd.f32 %v3973, %v4133
        %v4135 = vpop.f32.mrb[0].mxu0
        %v4136 = vpop.f32.mrb[0].mxu0
        %v4137 = vadd.f32 %v3976, %v4136
        %v4138 = vpop.f32.mrb[0].mxu0
        %4139 = vmatprep.mubr.bf16.mxu0 %v2408
        %4140 = vmatmul.mubr.bf16.gmra.mrb[0].mxu0 %v2308
        %v4141 = vpop.f32.mrb[0].mxu0
        %v4142 = vadd.f32 %v3981, %v4141
        %v4143 = vpop.f32.mrb[0].mxu0
        %v4144 = vpop.f32.mrb[0].mxu0
        %v4145 = vadd.f32 %v3984, %v4144
        %v4146 = vpop.f32.mrb[0].mxu0
        %4147 = vmatprep.mubr.bf16.mxu0 %v2409
        %4148 = vmatmul.mubr.bf16.gmra.mrb[0].mxu0 %v2311
        %v4149 = vpop.f32.mrb[0].mxu0
        %v4150 = vadd.f32 %v3989, %v4149
        %v4151 = vpop.f32.mrb[0].mxu0
        %v4152 = vpop.f32.mrb[0].mxu0
        %v4153 = vadd.f32 %v3992, %v4152
        %v4154 = vpop.f32.mrb[0].mxu0
        %4155 = vmatprep.mubr.bf16.mxu0 %v2410
        %4156 = vmatmul.mubr.bf16.gmra.mrb[0].mxu0 %v2314
        %v4157 = vpop.f32.mrb[0].mxu0
        %v4158 = vadd.f32 %v3997, %v4157
        %v4159 = vpop.f32.mrb[0].mxu0
        %v4160 = vpop.f32.mrb[0].mxu0
        %v4161 = vadd.f32 %v4000, %v4160
        %v4162 = vpop.f32.mrb[0].mxu0
        %4163 = vdwg.mxu0
        %4164 = vmatprep.subr.bf16.mxu0 0
        %4165 = vmatpush1.bf16.msra.mxu0 %v3730
        %4166 = vmatprep.subr.bf16.mxu0 0
        %4167 = vmatpush1.bf16.msra.mxu0 %v3731
        %4168 = vmatprep.subr.bf16.mxu0 0
        %4169 = vmatpush1.bf16.msra.mxu0 %v3732
        %4170 = vmatprep.subr.bf16.mxu0 0
        %4171 = vmatpush1.bf16.msra.mxu0 %v3733
        %4172 = vmatprep.subr.bf16.mxu0 0
        %4173 = vmatpush1.bf16.msra.mxu0 %v3734
        %4174 = vmatprep.subr.bf16.mxu0 0
        %4175 = vmatpush1.bf16.msra.mxu0 %v3735
        %4176 = vmatprep.subr.bf16.mxu0 0
        %4177 = vmatpush1.bf16.msra.mxu0 %v3736
        %4178 = vmatprep.subr.bf16.mxu0 0
        %4179 = vmatpush1.bf16.msra.mxu0 %v3737
        %4180 = vmatprep.subr.bf16.mxu0 0
        %4181 = vmatpush1.bf16.msra.mxu0 %v3738
        %4182 = vmatprep.subr.bf16.mxu0 0
        %4183 = vmatpush1.bf16.msra.mxu0 %v3739
        %4184 = vmatprep.subr.bf16.mxu0 0
        %4185 = vmatpush1.bf16.msra.mxu0 %v3740
        %4186 = vmatprep.subr.bf16.mxu0 0
        %4187 = vmatpush1.bf16.msra.mxu0 %v3741
        %4188 = vmatprep.subr.bf16.mxu0 0
        %4189 = vmatpush1.bf16.msra.mxu0 %v3742
        %4190 = vmatprep.subr.bf16.mxu0 0
        %4191 = vmatpush1.bf16.msra.mxu0 %v3743
        %4192 = vmatprep.subr.bf16.mxu0 0
        %4193 = vmatpush1.bf16.msra.mxu0 %v3744
        %4194 = vmatprep.subr.bf16.mxu0 0
        %4195 = vmatpush1.bf16.msra.mxu0 %v3745
        %4196 = vmatprep.mubr.bf16.mxu0 %v2733
        %4197 = vmatmul.mubr.bf16.gmra.mrb[0].mxu0 %v2486
        %v4198 = vpop.f32.mrb[0].mxu0
        %v4199 = vadd.f32 %v4038, %v4198
        %v4200 = vpop.f32.mrb[0].mxu0
        %v4201 = vpop.f32.mrb[0].mxu0
        %v4202 = vadd.f32 %v4041, %v4201
        %v4203 = vpop.f32.mrb[0].mxu0
        %4204 = vmatprep.mubr.bf16.mxu0 %v2736
        %4205 = vmatmul.mubr.bf16.gmra.mrb[0].mxu0 %v2498
        %v4206 = vpop.f32.mrb[0].mxu0
        %v4207 = vadd.f32 %v4046, %v4206
        %v4208 = vpop.f32.mrb[0].mxu0
        %v4209 = vpop.f32.mrb[0].mxu0
        %v4210 = vadd.f32 %v4049, %v4209
        %v4211 = vpop.f32.mrb[0].mxu0
        %4212 = vmatprep.mubr.bf16.mxu0 %v2739
        %4213 = vmatmul.mubr.bf16.gmra.mrb[0].mxu0 %v2510
        %v4214 = vpop.f32.mrb[0].mxu0
        %v4215 = vadd.f32 %v4054, %v4214
        %v4216 = vpop.f32.mrb[0].mxu0
        %v4217 = vpop.f32.mrb[0].mxu0
        %v4218 = vadd.f32 %v4057, %v4217
        %v4219 = vpop.f32.mrb[0].mxu0
        %4220 = vmatprep.mubr.bf16.mxu0 %v2742
        %4221 = vmatmul.mubr.bf16.gmra.mrb[0].mxu0 %v2522
        %v4222 = vpop.f32.mrb[0].mxu0
        %v4223 = vadd.f32 %v4062, %v4222
        %v4224 = vpop.f32.mrb[0].mxu0
        %v4225 = vpop.f32.mrb[0].mxu0
        %v4226 = vadd.f32 %v4065, %v4225
        %v4227 = vpop.f32.mrb[0].mxu0
        %4228 = vmatprep.mubr.bf16.mxu0 %v2745
        %4229 = vmatmul.mubr.bf16.gmra.mrb[0].mxu0 %v2534
        %v4230 = vpop.f32.mrb[0].mxu0
        %v4231 = vadd.f32 %v4070, %v4230
        %v4232 = vpop.f32.mrb[0].mxu0
        %v4233 = vpop.f32.mrb[0].mxu0
        %v4234 = vadd.f32 %v4073, %v4233
        %v4235 = vpop.f32.mrb[0].mxu0
        %4236 = vmatprep.mubr.bf16.mxu0 %v2748
        %4237 = vmatmul.mubr.bf16.gmra.mrb[0].mxu0 %v2546
        %v4238 = vpop.f32.mrb[0].mxu0
        %v4239 = vadd.f32 %v4078, %v4238
        %v4240 = vpop.f32.mrb[0].mxu0
        %v4241 = vpop.f32.mrb[0].mxu0
        %v4242 = vadd.f32 %v4081, %v4241
        %v4243 = vpop.f32.mrb[0].mxu0
        %4244 = vmatprep.mubr.bf16.mxu0 %v2751
        %4245 = vmatmul.mubr.bf16.gmra.mrb[0].mxu0 %v2558
        %v4246 = vpop.f32.mrb[0].mxu0
        %v4247 = vadd.f32 %v4086, %v4246
        %v4248 = vpop.f32.mrb[0].mxu0
        %v4249 = vpop.f32.mrb[0].mxu0
        %v4250 = vadd.f32 %v4089, %v4249
        %v4251 = vpop.f32.mrb[0].mxu0
        %4252 = vmatprep.mubr.bf16.mxu0 %v2754
        %4253 = vmatmul.mubr.bf16.gmra.mrb[0].mxu0 %v2570
        %v4254 = vpop.f32.mrb[0].mxu0
        %v4255 = vadd.f32 %v4094, %v4254
        %v4256 = vpop.f32.mrb[0].mxu0
        %v4257 = vpop.f32.mrb[0].mxu0
        %v4258 = vadd.f32 %v4097, %v4257
        %v4259 = vpop.f32.mrb[0].mxu0
        %4260 = vmatprep.mubr.bf16.mxu0 %v2757
        %4261 = vmatmul.mubr.bf16.gmra.mrb[0].mxu0 %v2582
        %v4262 = vpop.f32.mrb[0].mxu0
        %v4263 = vadd.f32 %v4102, %v4262
        %v4264 = vpop.f32.mrb[0].mxu0
        %v4265 = vpop.f32.mrb[0].mxu0
        %v4266 = vadd.f32 %v4105, %v4265
        %v4267 = vpop.f32.mrb[0].mxu0
        %4268 = vmatprep.mubr.bf16.mxu0 %v2760
        %4269 = vmatmul.mubr.bf16.gmra.mrb[0].mxu0 %v2594
        %v4270 = vpop.f32.mrb[0].mxu0
        %v4271 = vadd.f32 %v4110, %v4270
        %v4272 = vpop.f32.mrb[0].mxu0
        %v4273 = vpop.f32.mrb[0].mxu0
        %v4274 = vadd.f32 %v4113, %v4273
        %v4275 = vpop.f32.mrb[0].mxu0
        %4276 = vmatprep.mubr.bf16.mxu0 %v2763
        %4277 = vmatmul.mubr.bf16.gmra.mrb[0].mxu0 %v2606
        %v4278 = vpop.f32.mrb[0].mxu0
        %v4279 = vadd.f32 %v4118, %v4278
        %v4280 = vpop.f32.mrb[0].mxu0
        %v4281 = vpop.f32.mrb[0].mxu0
        %v4282 = vadd.f32 %v4121, %v4281
        %v4283 = vpop.f32.mrb[0].mxu0
        %4284 = vmatprep.mubr.bf16.mxu0 %v2766
        %4285 = vmatmul.mubr.bf16.gmra.mrb[0].mxu0 %v2618
        %v4286 = vpop.f32.mrb[0].mxu0
        %v4287 = vadd.f32 %v4126, %v4286
        %v4288 = vpop.f32.mrb[0].mxu0
        %v4289 = vpop.f32.mrb[0].mxu0
        %v4290 = vadd.f32 %v4129, %v4289
        %v4291 = vpop.f32.mrb[0].mxu0
        %4292 = vmatprep.mubr.bf16.mxu0 %v2769
        %4293 = vmatmul.mubr.bf16.gmra.mrb[0].mxu0 %v2630
        %v4294 = vpop.f32.mrb[0].mxu0
        %v4295 = vadd.f32 %v4134, %v4294
        %v4296 = vpop.f32.mrb[0].mxu0
        %v4297 = vpop.f32.mrb[0].mxu0
        %v4298 = vadd.f32 %v4137, %v4297
        %v4299 = vpop.f32.mrb[0].mxu0
        %4300 = vmatprep.mubr.bf16.mxu0 %v2772
        %4301 = vmatmul.mubr.bf16.gmra.mrb[0].mxu0 %v2642
        %v4302 = vpop.f32.mrb[0].mxu0
        %v4303 = vadd.f32 %v4142, %v4302
        %v4304 = vpop.f32.mrb[0].mxu0
        %v4305 = vpop.f32.mrb[0].mxu0
        %v4306 = vadd.f32 %v4145, %v4305
        %v4307 = vpop.f32.mrb[0].mxu0
        %4308 = vmatprep.mubr.bf16.mxu0 %v2775
        %4309 = vmatmul.mubr.bf16.gmra.mrb[0].mxu0 %v2654
        %v4310 = vpop.f32.mrb[0].mxu0
        %v4311 = vadd.f32 %v4150, %v4310
        %v4312 = vpop.f32.mrb[0].mxu0
        %v4313 = vpop.f32.mrb[0].mxu0
        %v4314 = vadd.f32 %v4153, %v4313
        %v4315 = vpop.f32.mrb[0].mxu0
        %4316 = vmatprep.mubr.bf16.mxu0 %v2778
        %4317 = vmatmul.mubr.bf16.gmra.mrb[0].mxu0 %v2666
        %v4318 = vpop.f32.mrb[0].mxu0
        %v4319 = vadd.f32 %v4158, %v4318
        %v4320 = vpop.f32.mrb[0].mxu0
        %v4321 = vpop.f32.mrb[0].mxu0
        %v4322 = vadd.f32 %v4161, %v4321
        %v4323 = vpop.f32.mrb[0].mxu0
        %4324 = vdwg.mxu0
        %4325 = vmatprep.subr.bf16.mxu0 0
        %4326 = vmatpush1.bf16.msra.mxu0 %v3746
        %4327 = vmatprep.subr.bf16.mxu0 0
        %4328 = vmatpush1.bf16.msra.mxu0 %v3747
        %4329 = vmatprep.subr.bf16.mxu0 0
        %4330 = vmatpush1.bf16.msra.mxu0 %v3748
        %4331 = vmatprep.subr.bf16.mxu0 0
        %4332 = vmatpush1.bf16.msra.mxu0 %v3749
        %4333 = vmatprep.subr.bf16.mxu0 0
        %4334 = vmatpush1.bf16.msra.mxu0 %v3750
        %4335 = vmatprep.subr.bf16.mxu0 0
        %4336 = vmatpush1.bf16.msra.mxu0 %v3751
        %4337 = vmatprep.subr.bf16.mxu0 0
        %4338 = vmatpush1.bf16.msra.mxu0 %v3752
        %4339 = vmatprep.subr.bf16.mxu0 0
        %4340 = vmatpush1.bf16.msra.mxu0 %v3753
        %4341 = vmatprep.subr.bf16.mxu0 0
        %4342 = vmatpush1.bf16.msra.mxu0 %v3754
        %4343 = vmatprep.subr.bf16.mxu0 0
        %4344 = vmatpush1.bf16.msra.mxu0 %v3755
        %4345 = vmatprep.subr.bf16.mxu0 0
        %4346 = vmatpush1.bf16.msra.mxu0 %v3756
        %4347 = vmatprep.subr.bf16.mxu0 0
        %4348 = vmatpush1.bf16.msra.mxu0 %v3757
        %4349 = vmatprep.subr.bf16.mxu0 0
        %4350 = vmatpush1.bf16.msra.mxu0 %v3758
        %4351 = vmatprep.subr.bf16.mxu0 0
        %4352 = vmatpush1.bf16.msra.mxu0 %v3759
        %4353 = vmatprep.subr.bf16.mxu0 0
        %4354 = vmatpush1.bf16.msra.mxu0 %v3760
        %4355 = vmatprep.subr.bf16.mxu0 0
        %4356 = vmatpush1.bf16.msra.mxu0 %v3761
        %4357 = vmatprep.mubr.bf16.mxu0 %v2950
        %4358 = vmatmul.mubr.bf16.gmra.mrb[0].mxu0 %v2859
        %v4359 = vpop.f32.mrb[0].mxu0
        %v4360 = vadd.f32 %v4199, %v4359
        %v4361 = vpop.f32.mrb[0].mxu0
        %v4362 = vpop.f32.mrb[0].mxu0
        %v4363 = vadd.f32 %v4202, %v4362
        %v4364 = vpop.f32.mrb[0].mxu0
        %4365 = vmatprep.mubr.bf16.mxu0 %v2962
        %4366 = vmatmul.mubr.bf16.gmra.mrb[0].mxu0 %v2860
        %v4367 = vpop.f32.mrb[0].mxu0
        %v4368 = vadd.f32 %v4207, %v4367
        %v4369 = vpop.f32.mrb[0].mxu0
        %v4370 = vpop.f32.mrb[0].mxu0
        %v4371 = vadd.f32 %v4210, %v4370
        %v4372 = vpop.f32.mrb[0].mxu0
        %4373 = vmatprep.mubr.bf16.mxu0 %v2974
        %4374 = vmatmul.mubr.bf16.gmra.mrb[0].mxu0 %v2861
        %v4375 = vpop.f32.mrb[0].mxu0
        %v4376 = vadd.f32 %v4215, %v4375
        %v4377 = vpop.f32.mrb[0].mxu0
        %v4378 = vpop.f32.mrb[0].mxu0
        %v4379 = vadd.f32 %v4218, %v4378
        %v4380 = vpop.f32.mrb[0].mxu0
        %4381 = vmatprep.mubr.bf16.mxu0 %v2986
        %4382 = vmatmul.mubr.bf16.gmra.mrb[0].mxu0 %v2862
        %v4383 = vpop.f32.mrb[0].mxu0
        %v4384 = vadd.f32 %v4223, %v4383
        %v4385 = vpop.f32.mrb[0].mxu0
        %v4386 = vpop.f32.mrb[0].mxu0
        %v4387 = vadd.f32 %v4226, %v4386
        %v4388 = vpop.f32.mrb[0].mxu0
        %4389 = vmatprep.mubr.bf16.mxu0 %v2998
        %4390 = vmatmul.mubr.bf16.gmra.mrb[0].mxu0 %v2863
        %v4391 = vpop.f32.mrb[0].mxu0
        %v4392 = vadd.f32 %v4231, %v4391
        %v4393 = vpop.f32.mrb[0].mxu0
        %v4394 = vpop.f32.mrb[0].mxu0
        %v4395 = vadd.f32 %v4234, %v4394
        %v4396 = vpop.f32.mrb[0].mxu0
        %4397 = vmatprep.mubr.bf16.mxu0 %v3010
        %4398 = vmatmul.mubr.bf16.gmra.mrb[0].mxu0 %v2864
        %v4399 = vpop.f32.mrb[0].mxu0
        %v4400 = vadd.f32 %v4239, %v4399
        %v4401 = vpop.f32.mrb[0].mxu0
        %v4402 = vpop.f32.mrb[0].mxu0
        %v4403 = vadd.f32 %v4242, %v4402
        %v4404 = vpop.f32.mrb[0].mxu0
        %4405 = vmatprep.mubr.bf16.mxu0 %v3022
        %4406 = vmatmul.mubr.bf16.gmra.mrb[0].mxu0 %v2865
        %v4407 = vpop.f32.mrb[0].mxu0
        %v4408 = vadd.f32 %v4247, %v4407
        %v4409 = vpop.f32.mrb[0].mxu0
        %v4410 = vpop.f32.mrb[0].mxu0
        %v4411 = vadd.f32 %v4250, %v4410
        %v4412 = vpop.f32.mrb[0].mxu0
        %4413 = vmatprep.mubr.bf16.mxu0 %v3034
        %4414 = vmatmul.mubr.bf16.gmra.mrb[0].mxu0 %v2866
        %v4415 = vpop.f32.mrb[0].mxu0
        %v4416 = vadd.f32 %v4255, %v4415
        %v4417 = vpop.f32.mrb[0].mxu0
        %v4418 = vpop.f32.mrb[0].mxu0
        %v4419 = vadd.f32 %v4258, %v4418
        %v4420 = vpop.f32.mrb[0].mxu0
        %4421 = vmatprep.mubr.bf16.mxu0 %v3046
        %4422 = vmatmul.mubr.bf16.gmra.mrb[0].mxu0 %v2867
        %v4423 = vpop.f32.mrb[0].mxu0
        %v4424 = vadd.f32 %v4263, %v4423
        %v4425 = vpop.f32.mrb[0].mxu0
        %v4426 = vpop.f32.mrb[0].mxu0
        %v4427 = vadd.f32 %v4266, %v4426
        %v4428 = vpop.f32.mrb[0].mxu0
        %4429 = vmatprep.mubr.bf16.mxu0 %v3058
        %4430 = vmatmul.mubr.bf16.gmra.mrb[0].mxu0 %v2868
        %v4431 = vpop.f32.mrb[0].mxu0
        %v4432 = vadd.f32 %v4271, %v4431
        %v4433 = vpop.f32.mrb[0].mxu0
        %v4434 = vpop.f32.mrb[0].mxu0
        %v4435 = vadd.f32 %v4274, %v4434
        %v4436 = vpop.f32.mrb[0].mxu0
        %4437 = vmatprep.mubr.bf16.mxu0 %v3070
        %4438 = vmatmul.mubr.bf16.gmra.mrb[0].mxu0 %v2869
        %v4439 = vpop.f32.mrb[0].mxu0
        %v4440 = vadd.f32 %v4279, %v4439
        %v4441 = vpop.f32.mrb[0].mxu0
        %v4442 = vpop.f32.mrb[0].mxu0
        %v4443 = vadd.f32 %v4282, %v4442
        %v4444 = vpop.f32.mrb[0].mxu0
        %4445 = vmatprep.mubr.bf16.mxu0 %v3082
        %4446 = vmatmul.mubr.bf16.gmra.mrb[0].mxu0 %v2870
        %v4447 = vpop.f32.mrb[0].mxu0
        %v4448 = vadd.f32 %v4287, %v4447
        %v4449 = vpop.f32.mrb[0].mxu0
        %v4450 = vpop.f32.mrb[0].mxu0
        %v4451 = vadd.f32 %v4290, %v4450
        %v4452 = vpop.f32.mrb[0].mxu0
        %4453 = vmatprep.mubr.bf16.mxu0 %v3094
        %4454 = vmatmul.mubr.bf16.gmra.mrb[0].mxu0 %v2871
        %v4455 = vpop.f32.mrb[0].mxu0
        %v4456 = vadd.f32 %v4295, %v4455
        %v4457 = vpop.f32.mrb[0].mxu0
        %v4458 = vpop.f32.mrb[0].mxu0
        %v4459 = vadd.f32 %v4298, %v4458
        %v4460 = vpop.f32.mrb[0].mxu0
        %4461 = vmatprep.mubr.bf16.mxu0 %v3106
        %4462 = vmatmul.mubr.bf16.gmra.mrb[0].mxu0 %v2872
        %v4463 = vpop.f32.mrb[0].mxu0
        %v4464 = vadd.f32 %v4303, %v4463
        %v4465 = vpop.f32.mrb[0].mxu0
        %v4466 = vpop.f32.mrb[0].mxu0
        %v4467 = vadd.f32 %v4306, %v4466
        %v4468 = vpop.f32.mrb[0].mxu0
        %4469 = vmatprep.mubr.bf16.mxu0 %v3118
        %4470 = vmatmul.mubr.bf16.gmra.mrb[0].mxu0 %v2873
        %v4471 = vpop.f32.mrb[0].mxu0
        %v4472 = vadd.f32 %v4311, %v4471
        %v4473 = vpop.f32.mrb[0].mxu0
        %v4474 = vpop.f32.mrb[0].mxu0
        %v4475 = vadd.f32 %v4314, %v4474
        %v4476 = vpop.f32.mrb[0].mxu0
        %4477 = vmatprep.mubr.bf16.mxu0 %v3130
        %4478 = vmatmul.mubr.bf16.gmra.mrb[0].mxu0 %v2874
        %v4479 = vpop.f32.mrb[0].mxu0
        %v4480 = vadd.f32 %v4319, %v4479
        %v4481 = vpop.f32.mrb[0].mxu0
        %v4482 = vpop.f32.mrb[0].mxu0
        %v4483 = vadd.f32 %v4322, %v4482
        %v4484 = vpop.f32.mrb[0].mxu0
        %4485 = vdwg.mxu0
        %4486 = vmatprep.subr.bf16.mxu0 0
        %4487 = vmatpush1.bf16.msra.mxu0 %v3762
        %4488 = vmatprep.subr.bf16.mxu0 0
        %4489 = vmatpush1.bf16.msra.mxu0 %v3763
        %4490 = vmatprep.subr.bf16.mxu0 0
        %4491 = vmatpush1.bf16.msra.mxu0 %v3764
        %4492 = vmatprep.subr.bf16.mxu0 0
        %4493 = vmatpush1.bf16.msra.mxu0 %v3765
        %4494 = vmatprep.subr.bf16.mxu0 0
        %4495 = vmatpush1.bf16.msra.mxu0 %v3766
        %4496 = vmatprep.subr.bf16.mxu0 0
        %4497 = vmatpush1.bf16.msra.mxu0 %v3767
        %4498 = vmatprep.subr.bf16.mxu0 0
        %4499 = vmatpush1.bf16.msra.mxu0 %v3768
        %4500 = vmatprep.subr.bf16.mxu0 0
        %4501 = vmatpush1.bf16.msra.mxu0 %v3769
        %4502 = vmatprep.subr.bf16.mxu0 0
        %4503 = vmatpush1.bf16.msra.mxu0 0
        %4504 = vmatprep.subr.bf16.mxu0 0
        %4505 = vmatpush1.bf16.msra.mxu0 0
        %4506 = vmatprep.subr.bf16.mxu0 0
        %4507 = vmatpush1.bf16.msra.mxu0 0
        %4508 = vmatprep.subr.bf16.mxu0 0
        %4509 = vmatpush1.bf16.msra.mxu0 0
        %4510 = vmatprep.subr.bf16.mxu0 0
        %4511 = vmatpush1.bf16.msra.mxu0 0
        %4512 = vmatprep.subr.bf16.mxu0 0
        %4513 = vmatpush1.bf16.msra.mxu0 0
        %4514 = vmatprep.subr.bf16.mxu0 0
        %4515 = vmatpush1.bf16.msra.mxu0 0
        %4516 = vmatprep.subr.bf16.mxu0 0
        %4517 = vmatpush1.bf16.msra.mxu0 0
        %4518 = vmatprep.mubr.bf16.mxu0 0
        %4519 = vmatmul.mubr.bf16.gmra.mrb[0].mxu0 %v3197
        %v4520 = vpop.f32.mrb[0].mxu0
        %v4521 = vadd.f32 %v4360, %v4520
        %v4522 = vpop.f32.mrb[0].mxu0
        %v4523 = vpop.f32.mrb[0].mxu0
        %v4524 = vadd.f32 %v4363, %v4523
        %v4525 = vpop.f32.mrb[0].mxu0
        %4526 = vmatprep.mubr.bf16.mxu0 0
        %4527 = vmatmul.mubr.bf16.gmra.mrb[0].mxu0 %v3200
        %v4528 = vpop.f32.mrb[0].mxu0
        %v4529 = vadd.f32 %v4368, %v4528
        %v4530 = vpop.f32.mrb[0].mxu0
        %v4531 = vpop.f32.mrb[0].mxu0
        %v4532 = vadd.f32 %v4371, %v4531
        %v4533 = vpop.f32.mrb[0].mxu0
        %4534 = vmatprep.mubr.bf16.mxu0 0
        %4535 = vmatmul.mubr.bf16.gmra.mrb[0].mxu0 %v3203
        %v4536 = vpop.f32.mrb[0].mxu0
        %v4537 = vadd.f32 %v4376, %v4536
        %v4538 = vpop.f32.mrb[0].mxu0
        %v4539 = vpop.f32.mrb[0].mxu0
        %v4540 = vadd.f32 %v4379, %v4539
        %v4541 = vpop.f32.mrb[0].mxu0
        %4542 = vmatprep.mubr.bf16.mxu0 0
        %4543 = vmatmul.mubr.bf16.gmra.mrb[0].mxu0 %v3206
        %v4544 = vpop.f32.mrb[0].mxu0
        %v4545 = vadd.f32 %v4384, %v4544
        %v4546 = vpop.f32.mrb[0].mxu0
        %v4547 = vpop.f32.mrb[0].mxu0
        %v4548 = vadd.f32 %v4387, %v4547
        %v4549 = vpop.f32.mrb[0].mxu0
        %4550 = vmatprep.mubr.bf16.mxu0 0
        %4551 = vmatmul.mubr.bf16.gmra.mrb[0].mxu0 %v3209
        %v4552 = vpop.f32.mrb[0].mxu0
        %v4553 = vadd.f32 %v4392, %v4552
        %v4554 = vpop.f32.mrb[0].mxu0
        %v4555 = vpop.f32.mrb[0].mxu0
        %v4556 = vadd.f32 %v4395, %v4555
        %v4557 = vpop.f32.mrb[0].mxu0
        %4558 = vmatprep.mubr.bf16.mxu0 0
        %4559 = vmatmul.mubr.bf16.gmra.mrb[0].mxu0 %v3212
        %v4560 = vpop.f32.mrb[0].mxu0
        %v4561 = vadd.f32 %v4400, %v4560
        %v4562 = vpop.f32.mrb[0].mxu0
        %v4563 = vpop.f32.mrb[0].mxu0
        %v4564 = vadd.f32 %v4403, %v4563
        %v4565 = vpop.f32.mrb[0].mxu0
        %4566 = vmatprep.mubr.bf16.mxu0 0
        %4567 = vmatmul.mubr.bf16.gmra.mrb[0].mxu0 %v3215
        %v4568 = vpop.f32.mrb[0].mxu0
        %v4569 = vadd.f32 %v4408, %v4568
        %v4570 = vpop.f32.mrb[0].mxu0
        %v4571 = vpop.f32.mrb[0].mxu0
        %v4572 = vadd.f32 %v4411, %v4571
        %v4573 = vpop.f32.mrb[0].mxu0
        %4574 = vmatprep.mubr.bf16.mxu0 0
        %4575 = vmatmul.mubr.bf16.gmra.mrb[0].mxu0 %v3218
        %v4576 = vpop.f32.mrb[0].mxu0
        %v4577 = vadd.f32 %v4416, %v4576
        %v4578 = vpop.f32.mrb[0].mxu0
        %v4579 = vpop.f32.mrb[0].mxu0
        %v4580 = vadd.f32 %v4419, %v4579
        %v4581 = vpop.f32.mrb[0].mxu0
        %4582 = vmatprep.mubr.bf16.mxu0 0
        %4583 = vmatmul.mubr.bf16.gmra.mrb[0].mxu0 %v3221
        %v4584 = vpop.f32.mrb[0].mxu0
        %v4585 = vadd.f32 %v4424, %v4584
        %v4586 = vpop.f32.mrb[0].mxu0
        %v4587 = vpop.f32.mrb[0].mxu0
        %v4588 = vadd.f32 %v4427, %v4587
        %v4589 = vpop.f32.mrb[0].mxu0
        %4590 = vmatprep.mubr.bf16.mxu0 0
        %4591 = vmatmul.mubr.bf16.gmra.mrb[0].mxu0 %v3224
        %v4592 = vpop.f32.mrb[0].mxu0
        %v4593 = vadd.f32 %v4432, %v4592
        %v4594 = vpop.f32.mrb[0].mxu0
        %v4595 = vpop.f32.mrb[0].mxu0
        %v4596 = vadd.f32 %v4435, %v4595
        %v4597 = vpop.f32.mrb[0].mxu0
        %4598 = vmatprep.mubr.bf16.mxu0 0
        %4599 = vmatmul.mubr.bf16.gmra.mrb[0].mxu0 %v3227
        %v4600 = vpop.f32.mrb[0].mxu0
        %v4601 = vadd.f32 %v4440, %v4600
        %v4602 = vpop.f32.mrb[0].mxu0
        %v4603 = vpop.f32.mrb[0].mxu0
        %v4604 = vadd.f32 %v4443, %v4603
        %v4605 = vpop.f32.mrb[0].mxu0
        %4606 = vmatprep.mubr.bf16.mxu0 0
        %4607 = vmatmul.mubr.bf16.gmra.mrb[0].mxu0 %v3230
        %v4608 = vpop.f32.mrb[0].mxu0
        %v4609 = vadd.f32 %v4448, %v4608
        %v4610 = vpop.f32.mrb[0].mxu0
        %v4611 = vpop.f32.mrb[0].mxu0
        %v4612 = vadd.f32 %v4451, %v4611
        %v4613 = vpop.f32.mrb[0].mxu0
        %4614 = vmatprep.mubr.bf16.mxu0 0
        %4615 = vmatmul.mubr.bf16.gmra.mrb[0].mxu0 %v3233
        %v4616 = vpop.f32.mrb[0].mxu0
        %v4617 = vadd.f32 %v4456, %v4616
        %v4618 = vpop.f32.mrb[0].mxu0
        %v4619 = vpop.f32.mrb[0].mxu0
        %v4620 = vadd.f32 %v4459, %v4619
        %v4621 = vpop.f32.mrb[0].mxu0
        %4622 = vmatprep.mubr.bf16.mxu0 0
        %4623 = vmatmul.mubr.bf16.gmra.mrb[0].mxu0 %v3236
        %v4624 = vpop.f32.mrb[0].mxu0
        %v4625 = vadd.f32 %v4464, %v4624
        %v4626 = vpop.f32.mrb[0].mxu0
        %v4627 = vpop.f32.mrb[0].mxu0
        %v4628 = vadd.f32 %v4467, %v4627
        %v4629 = vpop.f32.mrb[0].mxu0
        %4630 = vmatprep.mubr.bf16.mxu0 0
        %4631 = vmatmul.mubr.bf16.gmra.mrb[0].mxu0 %v3239
        %v4632 = vpop.f32.mrb[0].mxu0
        %v4633 = vadd.f32 %v4472, %v4632
        %v4634 = vpop.f32.mrb[0].mxu0
        %v4635 = vpop.f32.mrb[0].mxu0
        %v4636 = vadd.f32 %v4475, %v4635
        %v4637 = vpop.f32.mrb[0].mxu0
        %4638 = vmatprep.mubr.bf16.mxu0 0
        %4639 = vmatmul.mubr.bf16.gmra.mrb[0].mxu0 %v3242
        %v4640 = vpop.f32.mrb[0].mxu0
        %v4641 = vadd.f32 %v4480, %v4640
        %v4642 = vpop.f32.mrb[0].mxu0
        %v4643 = vpop.f32.mrb[0].mxu0
        %v4644 = vadd.f32 %v4483, %v4643
        %v4645 = vpop.f32.mrb[0].mxu0
        %4646 = vdwg.mxu0
        %v4647 = vmax.f32 %v4521, 0.0
        %v4648 = vmax.f32 %v4524, 0.0
        %v4649 = vmax.f32 %v4529, 0.0
        %v4650 = vmax.f32 %v4532, 0.0
        %v4651 = vmax.f32 %v4537, 0.0
        %v4652 = vmax.f32 %v4540, 0.0
        %v4653 = vmax.f32 %v4545, 0.0
        %v4654 = vmax.f32 %v4548, 0.0
        %v4655 = vmax.f32 %v4553, 0.0
        %v4656 = vmax.f32 %v4556, 0.0
        %v4657 = vmax.f32 %v4561, 0.0
        %v4658 = vmax.f32 %v4564, 0.0
        %v4659 = vmax.f32 %v4569, 0.0
        %v4660 = vmax.f32 %v4572, 0.0
        %v4661 = vmax.f32 %v4577, 0.0
        %v4662 = vmax.f32 %v4580, 0.0
        %v4663 = vmax.f32 %v4585, 0.0
        %v4664 = vmax.f32 %v4588, 0.0
        %v4665 = vmax.f32 %v4593, 0.0
        %v4666 = vmax.f32 %v4596, 0.0
        %v4667 = vmax.f32 %v4601, 0.0
        %v4668 = vmax.f32 %v4604, 0.0
        %v4669 = vmax.f32 %v4609, 0.0
        %v4670 = vmax.f32 %v4612, 0.0
        %v4671 = vmax.f32 %v4617, 0.0
        %v4672 = vmax.f32 %v4620, 0.0
        %v4673 = vmax.f32 %v4625, 0.0
        %v4674 = vmax.f32 %v4628, 0.0
        %v4675 = vmax.f32 %v4633, 0.0
        %v4676 = vmax.f32 %v4636, 0.0
        %v4677 = vmax.f32 %v4641, 0.0
        %v4678 = vmax.f32 %v4644, 0.0
        %v4679 = vpack.c.bf16 %v4648, %v4647
        %v4680 = vpack.c.bf16 %v4650, %v4649
        %v4681 = vpack.c.bf16 %v4652, %v4651
        %v4682 = vpack.c.bf16 %v4654, %v4653
        %v4683 = vpack.c.bf16 %v4656, %v4655
        %v4684 = vpack.c.bf16 %v4658, %v4657
        %v4685 = vpack.c.bf16 %v4660, %v4659
        %v4686 = vpack.c.bf16 %v4662, %v4661
        %v4687 = vpack.c.bf16 %v4664, %v4663
        %v4688 = vpack.c.bf16 %v4666, %v4665
        %v4689 = vpack.c.bf16 %v4668, %v4667
        %v4690 = vpack.c.bf16 %v4670, %v4669
        %v4691 = vpack.c.bf16 %v4672, %v4671
        %v4692 = vpack.c.bf16 %v4674, %v4673
        %v4693 = vpack.c.bf16 %v4676, %v4675
        %v4694 = vpack.c.bf16 %v4678, %v4677
        %v4695 = vld [vmem:[#allocation12] sm:$0xf]
        %v4696 = vld [vmem:[#allocation12 + $0x4] sm:$0xf]
        %v4697 = vld [vmem:[#allocation12 + $0x8] sm:$0xf]
        %v4698 = vld [vmem:[#allocation12 + $0xc] sm:$0xf]
        %v4699 = vld [vmem:[#allocation12 + $0x10] sm:$0xf]
        %v4700 = vld [vmem:[#allocation12 + $0x14] sm:$0xf]
        %v4701 = vld [vmem:[#allocation12 + $0x18] sm:$0xf]
        %v4702 = vld [vmem:[#allocation12 + $0x1c] sm:$0xf]
        %v4703 = vld [vmem:[#allocation12 + $0x20] sm:$0xf]
        %v4704 = vld [vmem:[#allocation12 + $0x24] sm:$0xf]
        %v4705 = vld [vmem:[#allocation12 + $0x28] sm:$0xf]
        %v4706 = vld [vmem:[#allocation12 + $0x2c] sm:$0xf]
        %v4707 = vld [vmem:[#allocation12 + $0x30] sm:$0xf]
        %v4708 = vld [vmem:[#allocation12 + $0x34] sm:$0xf]
        %v4709 = vld [vmem:[#allocation12 + $0x38] sm:$0xf]
        %v4710 = vld [vmem:[#allocation12 + $0x3c] sm:$0xf]
        %v4711 = vld [vmem:[%s8] sm:$0x1]
        %v4713 = vlaneseq
        %v4714 = vshrl.u32 %v4713, 7
        %v4715 = vsub.s32 0, %v4714
        %v4716 = vrot.slane %v4711, %v4715
        %v4734 = vunpack.c.l.b16 %v4695
        %v4735 = vunpack.c.l.b16 %v4696
        %v4736 = vunpack.c.l.b16 %v4697
        %v4737 = vunpack.c.l.b16 %v4698
        %v4738 = vunpack.c.l.b16 %v4699
        %v4739 = vunpack.c.l.b16 %v4700
        %v4740 = vunpack.c.l.b16 %v4701
        %v4741 = vunpack.c.l.b16 %v4702
        %v4742 = vunpack.c.l.b16 %v4703
        %v4743 = vunpack.c.l.b16 %v4704
        %v4744 = vunpack.c.l.b16 %v4705
        %v4745 = vunpack.c.l.b16 %v4706
        %v4746 = vunpack.c.l.b16 %v4707
        %v4747 = vunpack.c.l.b16 %v4708
        %v4748 = vunpack.c.l.b16 %v4709
        %v4749 = vunpack.c.l.b16 %v4710
        %v4750 = vpack.c.b16 %v4735, %v4734
        %v4751 = vpack.c.b16 %v4737, %v4736
        %v4752 = vpack.c.b16 %v4739, %v4738
        %v4753 = vpack.c.b16 %v4741, %v4740
        %v4754 = vpack.c.b16 %v4743, %v4742
        %v4755 = vpack.c.b16 %v4745, %v4744
        %v4756 = vpack.c.b16 %v4747, %v4746
        %v4757 = vpack.c.b16 %v4749, %v4748
        %4766 = vmatprep.subr.bf16.mxu0 0
        %4767 = vmatpush1.bf16.msra.mxu0 %v4750
        %4768 = vmatprep.subr.bf16.mxu0 0
        %4769 = vmatpush1.bf16.msra.mxu0 %v4751
        %4770 = vmatprep.subr.bf16.mxu0 0
        %4771 = vmatpush1.bf16.msra.mxu0 %v4752
        %4772 = vmatprep.subr.bf16.mxu0 0
        %4773 = vmatpush1.bf16.msra.mxu0 %v4753
        %4774 = vmatprep.subr.bf16.mxu0 0
        %4775 = vmatpush1.bf16.msra.mxu0 %v4754
        %4776 = vmatprep.subr.bf16.mxu0 0
        %4777 = vmatpush1.bf16.msra.mxu0 %v4755
        %4778 = vmatprep.subr.bf16.mxu0 0
        %4779 = vmatpush1.bf16.msra.mxu0 %v4756
        %4780 = vmatprep.subr.bf16.mxu0 0
        %4781 = vmatpush1.bf16.msra.mxu0 %v4757
        %4782 = vmatprep.subr.bf16.mxu0 0
        %4783 = vmatpush1.bf16.msra.mxu0 0
        %4784 = vmatprep.subr.bf16.mxu0 0
        %4785 = vmatpush1.bf16.msra.mxu0 0
        %4786 = vmatprep.subr.bf16.mxu0 0
        %4787 = vmatpush1.bf16.msra.mxu0 0
        %4788 = vmatprep.subr.bf16.mxu0 0
        %4789 = vmatpush1.bf16.msra.mxu0 0
        %4790 = vmatprep.subr.bf16.mxu0 0
        %4791 = vmatpush1.bf16.msra.mxu0 0
        %4792 = vmatprep.subr.bf16.mxu0 0
        %4793 = vmatpush1.bf16.msra.mxu0 0
        %4794 = vmatprep.subr.bf16.mxu0 0
        %4795 = vmatpush1.bf16.msra.mxu0 0
        %4796 = vmatprep.subr.bf16.mxu0 0
        %4797 = vmatpush1.bf16.msra.mxu0 0
        %4798 = vmatprep.mubr.bf16.mxu0 0
        %4799 = vmatmul.mubr.bf16.gmra.mrb[0].mxu0 %v4679
        %v4800 = vpop.f32.mrb[0].mxu0
        %v4801 = vadd.f32 %v4716, %v4800
        %v4802 = vpop.f32.mrb[0].mxu0
        %v4803 = vpop.f32.mrb[0].mxu0
        %v4804 = vadd.f32 %v4716, %v4803
        %v4805 = vpop.f32.mrb[0].mxu0
        %4806 = vmatprep.mubr.bf16.mxu0 0
        %4807 = vmatmul.mubr.bf16.gmra.mrb[0].mxu0 %v4680
        %v4808 = vpop.f32.mrb[0].mxu0
        %v4809 = vadd.f32 %v4716, %v4808
        %v4810 = vpop.f32.mrb[0].mxu0
        %v4811 = vpop.f32.mrb[0].mxu0
        %v4812 = vadd.f32 %v4716, %v4811
        %v4813 = vpop.f32.mrb[0].mxu0
        %4814 = vmatprep.mubr.bf16.mxu0 0
        %4815 = vmatmul.mubr.bf16.gmra.mrb[0].mxu0 %v4681
        %v4816 = vpop.f32.mrb[0].mxu0
        %v4817 = vadd.f32 %v4716, %v4816
        %v4818 = vpop.f32.mrb[0].mxu0
        %v4819 = vpop.f32.mrb[0].mxu0
        %v4820 = vadd.f32 %v4716, %v4819
        %v4821 = vpop.f32.mrb[0].mxu0
        %4822 = vmatprep.mubr.bf16.mxu0 0
        %4823 = vmatmul.mubr.bf16.gmra.mrb[0].mxu0 %v4682
        %v4824 = vpop.f32.mrb[0].mxu0
        %v4825 = vadd.f32 %v4716, %v4824
        %v4826 = vpop.f32.mrb[0].mxu0
        %v4827 = vpop.f32.mrb[0].mxu0
        %v4828 = vadd.f32 %v4716, %v4827
        %v4829 = vpop.f32.mrb[0].mxu0
        %4830 = vmatprep.mubr.bf16.mxu0 0
        %4831 = vmatmul.mubr.bf16.gmra.mrb[0].mxu0 %v4683
        %v4832 = vpop.f32.mrb[0].mxu0
        %v4833 = vadd.f32 %v4716, %v4832
        %v4834 = vpop.f32.mrb[0].mxu0
        %v4835 = vpop.f32.mrb[0].mxu0
        %v4836 = vadd.f32 %v4716, %v4835
        %v4837 = vpop.f32.mrb[0].mxu0
        %4838 = vmatprep.mubr.bf16.mxu0 0
        %4839 = vmatmul.mubr.bf16.gmra.mrb[0].mxu0 %v4684
        %v4840 = vpop.f32.mrb[0].mxu0
        %v4841 = vadd.f32 %v4716, %v4840
        %v4842 = vpop.f32.mrb[0].mxu0
        %v4843 = vpop.f32.mrb[0].mxu0
        %v4844 = vadd.f32 %v4716, %v4843
        %v4845 = vpop.f32.mrb[0].mxu0
        %4846 = vmatprep.mubr.bf16.mxu0 0
        %4847 = vmatmul.mubr.bf16.gmra.mrb[0].mxu0 %v4685
        %v4848 = vpop.f32.mrb[0].mxu0
        %v4849 = vadd.f32 %v4716, %v4848
        %v4850 = vpop.f32.mrb[0].mxu0
        %v4851 = vpop.f32.mrb[0].mxu0
        %v4852 = vadd.f32 %v4716, %v4851
        %v4853 = vpop.f32.mrb[0].mxu0
        %4854 = vmatprep.mubr.bf16.mxu0 0
        %4855 = vmatmul.mubr.bf16.gmra.mrb[0].mxu0 %v4686
        %v4856 = vpop.f32.mrb[0].mxu0
        %v4857 = vadd.f32 %v4716, %v4856
        %v4858 = vpop.f32.mrb[0].mxu0
        %v4859 = vpop.f32.mrb[0].mxu0
        %v4860 = vadd.f32 %v4716, %v4859
        %v4861 = vpop.f32.mrb[0].mxu0
        %4862 = vmatprep.mubr.bf16.mxu0 0
        %4863 = vmatmul.mubr.bf16.gmra.mrb[0].mxu0 %v4687
        %v4864 = vpop.f32.mrb[0].mxu0
        %v4865 = vadd.f32 %v4716, %v4864
        %v4866 = vpop.f32.mrb[0].mxu0
        %v4867 = vpop.f32.mrb[0].mxu0
        %v4868 = vadd.f32 %v4716, %v4867
        %v4869 = vpop.f32.mrb[0].mxu0
        %4870 = vmatprep.mubr.bf16.mxu0 0
        %4871 = vmatmul.mubr.bf16.gmra.mrb[0].mxu0 %v4688
        %v4872 = vpop.f32.mrb[0].mxu0
        %v4873 = vadd.f32 %v4716, %v4872
        %v4874 = vpop.f32.mrb[0].mxu0
        %v4875 = vpop.f32.mrb[0].mxu0
        %v4876 = vadd.f32 %v4716, %v4875
        %v4877 = vpop.f32.mrb[0].mxu0
        %4878 = vmatprep.mubr.bf16.mxu0 0
        %4879 = vmatmul.mubr.bf16.gmra.mrb[0].mxu0 %v4689
        %v4880 = vpop.f32.mrb[0].mxu0
        %v4881 = vadd.f32 %v4716, %v4880
        %v4882 = vpop.f32.mrb[0].mxu0
        %v4883 = vpop.f32.mrb[0].mxu0
        %v4884 = vadd.f32 %v4716, %v4883
        %v4885 = vpop.f32.mrb[0].mxu0
        %4886 = vmatprep.mubr.bf16.mxu0 0
        %4887 = vmatmul.mubr.bf16.gmra.mrb[0].mxu0 %v4690
        %v4888 = vpop.f32.mrb[0].mxu0
        %v4889 = vadd.f32 %v4716, %v4888
        %v4890 = vpop.f32.mrb[0].mxu0
        %v4891 = vpop.f32.mrb[0].mxu0
        %v4892 = vadd.f32 %v4716, %v4891
        %v4893 = vpop.f32.mrb[0].mxu0
        %4894 = vmatprep.mubr.bf16.mxu0 0
        %4895 = vmatmul.mubr.bf16.gmra.mrb[0].mxu0 %v4691
        %v4896 = vpop.f32.mrb[0].mxu0
        %v4897 = vadd.f32 %v4716, %v4896
        %v4898 = vpop.f32.mrb[0].mxu0
        %v4899 = vpop.f32.mrb[0].mxu0
        %v4900 = vadd.f32 %v4716, %v4899
        %v4901 = vpop.f32.mrb[0].mxu0
        %4902 = vmatprep.mubr.bf16.mxu0 0
        %4903 = vmatmul.mubr.bf16.gmra.mrb[0].mxu0 %v4692
        %v4904 = vpop.f32.mrb[0].mxu0
        %v4905 = vadd.f32 %v4716, %v4904
        %v4906 = vpop.f32.mrb[0].mxu0
        %v4907 = vpop.f32.mrb[0].mxu0
        %v4908 = vadd.f32 %v4716, %v4907
        %v4909 = vpop.f32.mrb[0].mxu0
        %4910 = vmatprep.mubr.bf16.mxu0 0
        %4911 = vmatmul.mubr.bf16.gmra.mrb[0].mxu0 %v4693
        %v4912 = vpop.f32.mrb[0].mxu0
        %v4913 = vadd.f32 %v4716, %v4912
        %v4914 = vpop.f32.mrb[0].mxu0
        %v4915 = vpop.f32.mrb[0].mxu0
        %v4916 = vadd.f32 %v4716, %v4915
        %v4917 = vpop.f32.mrb[0].mxu0
        %4918 = vmatprep.mubr.bf16.mxu0 0
        %4919 = vmatmul.mubr.bf16.gmra.mrb[0].mxu0 %v4694
        %v4920 = vpop.f32.mrb[0].mxu0
        %v4921 = vadd.f32 %v4716, %v4920
        %v4922 = vpop.f32.mrb[0].mxu0
        %v4923 = vpop.f32.mrb[0].mxu0
        %v4924 = vadd.f32 %v4716, %v4923
        %v4925 = vpop.f32.mrb[0].mxu0
        %4926 = vdwg.mxu0
        %v4927 = vld [vmem:[%s457] sm:$0xff]
        %v4928 = vld [vmem:[%s457 + $0x8] sm:$0xff]
        %v4929 = vld [vmem:[%s457 + $0x10] sm:$0xff]
        %v4930 = vld [vmem:[%s457 + $0x18] sm:$0xff]
        %v4931 = vld [vmem:[%s457 + $0x20] sm:$0xff]
        %v4932 = vld [vmem:[%s457 + $0x28] sm:$0xff]
        %v4933 = vld [vmem:[%s457 + $0x30] sm:$0xff]
        %v4934 = vld [vmem:[%s457 + $0x38] sm:$0xff]
        %v4935 = vld [vmem:[%s457 + $0x40] sm:$0xff]
        %v4936 = vld [vmem:[%s457 + $0x48] sm:$0xff]
        %v4937 = vld [vmem:[%s457 + $0x50] sm:$0xff]
        %v4938 = vld [vmem:[%s457 + $0x58] sm:$0xff]
        %v4939 = vld [vmem:[%s457 + $0x60] sm:$0xff]
        %v4940 = vld [vmem:[%s457 + $0x68] sm:$0xff]
        %v4941 = vld [vmem:[%s457 + $0x70] sm:$0xff]
        %v4942 = vld [vmem:[%s457 + $0x78] sm:$0xff]
        %v4943 = vld [vmem:[%s457 + $0x80] sm:$0xff]
        %v4944 = vld [vmem:[%s457 + $0x88] sm:$0xff]
        %v4945 = vld [vmem:[%s457 + $0x90] sm:$0xff]
        %v4946 = vld [vmem:[%s457 + $0x98] sm:$0xff]
        %v4947 = vld [vmem:[%s457 + $0xa0] sm:$0xff]
        %v4948 = vld [vmem:[%s457 + $0xa8] sm:$0xff]
        %v4949 = vld [vmem:[%s457 + $0xb0] sm:$0xff]
        %v4950 = vld [vmem:[%s457 + $0xb8] sm:$0xff]
        %v4951 = vld [vmem:[%s457 + $0xc0] sm:$0xff]
        %v4952 = vld [vmem:[%s457 + $0xc8] sm:$0xff]
        %v4953 = vld [vmem:[%s457 + $0xd0] sm:$0xff]
        %v4954 = vld [vmem:[%s457 + $0xd8] sm:$0xff]
        %v4955 = vld [vmem:[%s457 + $0xe0] sm:$0xff]
        %v4956 = vld [vmem:[%s457 + $0xe8] sm:$0xff]
        %v4957 = vld [vmem:[%s457 + $0xf0] sm:$0xff]
        %v4958 = vld [vmem:[%s457 + $0xf8] sm:$0xff]
        %v4959 = vadd.f32 %v4801, %v4927
        %v4960 = vadd.f32 %v4804, %v4928
        %v4961 = vadd.f32 %v4809, %v4929
        %v4962 = vadd.f32 %v4812, %v4930
        %v4963 = vadd.f32 %v4817, %v4931
        %v4964 = vadd.f32 %v4820, %v4932
        %v4965 = vadd.f32 %v4825, %v4933
        %v4966 = vadd.f32 %v4828, %v4934
        %v4967 = vadd.f32 %v4833, %v4935
        %v4968 = vadd.f32 %v4836, %v4936
        %v4969 = vadd.f32 %v4841, %v4937
        %v4970 = vadd.f32 %v4844, %v4938
        %v4971 = vadd.f32 %v4849, %v4939
        %v4972 = vadd.f32 %v4852, %v4940
        %v4973 = vadd.f32 %v4857, %v4941
        %v4974 = vadd.f32 %v4860, %v4942
        %v4975 = vadd.f32 %v4865, %v4943
        %v4976 = vadd.f32 %v4868, %v4944
        %v4977 = vadd.f32 %v4873, %v4945
        %v4978 = vadd.f32 %v4876, %v4946
        %v4979 = vadd.f32 %v4881, %v4947
        %v4980 = vadd.f32 %v4884, %v4948
        %v4981 = vadd.f32 %v4889, %v4949
        %v4982 = vadd.f32 %v4892, %v4950
        %v4983 = vadd.f32 %v4897, %v4951
        %v4984 = vadd.f32 %v4900, %v4952
        %v4985 = vadd.f32 %v4905, %v4953
        %v4986 = vadd.f32 %v4908, %v4954
        %v4987 = vadd.f32 %v4913, %v4955
        %v4988 = vadd.f32 %v4916, %v4956
        %v4989 = vadd.f32 %v4921, %v4957
        %v4990 = vadd.f32 %v4924, %v4958
        %v4991 = vmax.f32 %v4959, 0.0
        %v4992 = vmax.f32 %v4960, 0.0
        %v4993 = vmax.f32 %v4961, 0.0
        %v4994 = vmax.f32 %v4962, 0.0
        %v4995 = vmax.f32 %v4963, 0.0
        %v4996 = vmax.f32 %v4964, 0.0
        %v4997 = vmax.f32 %v4965, 0.0
        %v4998 = vmax.f32 %v4966, 0.0
        %v4999 = vmax.f32 %v4967, 0.0
        %v5000 = vmax.f32 %v4968, 0.0
        %v5001 = vmax.f32 %v4969, 0.0
        %v5002 = vmax.f32 %v4970, 0.0
        %v5003 = vmax.f32 %v4971, 0.0
        %v5004 = vmax.f32 %v4972, 0.0
        %v5005 = vmax.f32 %v4973, 0.0
        %v5006 = vmax.f32 %v4974, 0.0
        %v5007 = vmax.f32 %v4975, 0.0
        %v5008 = vmax.f32 %v4976, 0.0
        %v5009 = vmax.f32 %v4977, 0.0
        %v5010 = vmax.f32 %v4978, 0.0
        %v5011 = vmax.f32 %v4979, 0.0
        %v5012 = vmax.f32 %v4980, 0.0
        %v5013 = vmax.f32 %v4981, 0.0
        %v5014 = vmax.f32 %v4982, 0.0
        %v5015 = vmax.f32 %v4983, 0.0
        %v5016 = vmax.f32 %v4984, 0.0
        %v5017 = vmax.f32 %v4985, 0.0
        %v5018 = vmax.f32 %v4986, 0.0
        %v5019 = vmax.f32 %v4987, 0.0
        %v5020 = vmax.f32 %v4988, 0.0
        %v5021 = vmax.f32 %v4989, 0.0
        %v5022 = vmax.f32 %v4990, 0.0
        %5023 = vst [vmem:[%s522] sm:$0xff] %v4991
        %5024 = vst [vmem:[%s522 + $0x8] sm:$0xff] %v4992
        %5025 = vst [vmem:[%s522 + $0x10] sm:$0xff] %v4993
        %5026 = vst [vmem:[%s522 + $0x18] sm:$0xff] %v4994
        %5027 = vst [vmem:[%s522 + $0x20] sm:$0xff] %v4995
        %5028 = vst [vmem:[%s522 + $0x28] sm:$0xff] %v4996
        %5029 = vst [vmem:[%s522 + $0x30] sm:$0xff] %v4997
        %5030 = vst [vmem:[%s522 + $0x38] sm:$0xff] %v4998
        %5031 = vst [vmem:[%s522 + $0x40] sm:$0xff] %v4999
        %5032 = vst [vmem:[%s522 + $0x48] sm:$0xff] %v5000
        %5033 = vst [vmem:[%s522 + $0x50] sm:$0xff] %v5001
        %5034 = vst [vmem:[%s522 + $0x58] sm:$0xff] %v5002
        %5035 = vst [vmem:[%s522 + $0x60] sm:$0xff] %v5003
        %5036 = vst [vmem:[%s522 + $0x68] sm:$0xff] %v5004
        %5037 = vst [vmem:[%s522 + $0x70] sm:$0xff] %v5005
        %5038 = vst [vmem:[%s522 + $0x78] sm:$0xff] %v5006
        %5039 = vst [vmem:[%s522 + $0x80] sm:$0xff] %v5007
        %5040 = vst [vmem:[%s522 + $0x88] sm:$0xff] %v5008
        %5041 = vst [vmem:[%s522 + $0x90] sm:$0xff] %v5009
        %5042 = vst [vmem:[%s522 + $0x98] sm:$0xff] %v5010
        %5043 = vst [vmem:[%s522 + $0xa0] sm:$0xff] %v5011
        %5044 = vst [vmem:[%s522 + $0xa8] sm:$0xff] %v5012
        %5045 = vst [vmem:[%s522 + $0xb0] sm:$0xff] %v5013
        %5046 = vst [vmem:[%s522 + $0xb8] sm:$0xff] %v5014
        %5047 = vst [vmem:[%s522 + $0xc0] sm:$0xff] %v5015
        %5048 = vst [vmem:[%s522 + $0xc8] sm:$0xff] %v5016
        %5049 = vst [vmem:[%s522 + $0xd0] sm:$0xff] %v5017
        %5050 = vst [vmem:[%s522 + $0xd8] sm:$0xff] %v5018
        %5051 = vst [vmem:[%s522 + $0xe0] sm:$0xff] %v5019
        %5052 = vst [vmem:[%s522 + $0xe8] sm:$0xff] %v5020
        %5053 = vst [vmem:[%s522 + $0xf0] sm:$0xff] %v5021
        %5054 = vst [vmem:[%s522 + $0xf8] sm:$0xff] %v5022
        %s5055 = sand.u32 %s279, 1
        %s5056 = scalar_lea.sflag [#allocation5], %s5055
        %s5057 = sand.u32 %s279, 1
        %s5058 = smul.addr %s5057, 256
        %s5059 = scalar_lea.vmem [#allocation14], %s5058
        // Predicated region
        $region97: #{tpu_custom_call.1} parent=55 // pred_check
          %p5060 = pneg %p289
        $region98: #{tpu_custom_call.1} parent=55 // pred_check_branch
          %5062 = sbr.rel (%p5060) target = $region100
        $region99: #{tpu_custom_call.1} parent=55 // pred_region
          %s5063 = smul.u32 16, %s36
          %s5065 = ssub.s32 4096, 4096
          %5066 = vsyncadd %s5056, %s5065
          %s5067 = smul.addr %s5063, 2
          %s5068 = smul.addr %s35, 32
          %s5069 = sadd.s32 %s5067, %s5068
          %s5070 = smul.addr %s5069, 128
          %s5071 = scalar_lea.hbm %s9, %s5070
          %s5072 = sshll.u32 %s5059, 4
          %s5073 = int_to_ptr.vmem [resolvable:$true] %s5072
          %5078 = dma.vmem_to_hbm [thread:$0]  %s5073, 4096, %s5071, %s5056, 128, 128, 8
        $region100: #{tpu_custom_call.1} parent=55 // pred_fallthru
          _
      $region56: #{tpu_custom_call.1} parent=5 // pred_fallthru
        _
      %p5079 = scmp.le.s32.totalorder 2, %s26
      // Predicated region
      $region101: #{tpu_custom_call.1} parent=5 // pred_check
        %p5080 = pneg %p5079
      $region102: #{tpu_custom_call.1} parent=5 // pred_check_branch
        %5082 = sbr.rel (%p5080) target = $region104
      $region103: #{tpu_custom_call.1} parent=5 // pred_region
        %s5083 = ssub.s32 %s26, 2
        // Predicated region
        $region105: #{tpu_custom_call.1} parent=103 // pred_check
          %p5084 = pneg %p295
        $region106: #{tpu_custom_call.1} parent=103 // pred_check_branch
          %5086 = sbr.rel (%p5084) target = $region108
        $region107: #{tpu_custom_call.1} parent=103 // pred_region
          %s5087 = sand.u32 %s280, 1
          %s5088 = scalar_lea.sflag [#allocation5], %s5087
          %s5089 = sand.u32 %s280, 1
          %s5090 = smul.addr %s5089, 256
          %s5091 = scalar_lea.vmem [#allocation14], %s5090
          %5092 = dma.done %s5088, 4096
        $region108: #{tpu_custom_call.1} parent=103 // pred_fallthru
          _
      $region104: #{tpu_custom_call.1} parent=5 // pred_fallthru
        _
    $region6: #{tpu_custom_call.1} parent=1 // loop_footer
      %s30 = sadd.s32 1, %s26
    $region7: #{tpu_custom_call.1} parent=1 // loop_footer_branch
      %25 = sbr.rel target = $region3
    $region8: #{tpu_custom_call.1} parent=1 // loop_exit
      _
    %5093 = vsyncpa [#allocation4], 1
    %s5094 = scalar_lea.sflag [#allocation4], 1
    %5095 = vsyncpa %s5094, 1
    %5096 = vsyncpa [#allocation7], 1
    %s5097 = scalar_lea.sflag [#allocation7], 1
    %5098 = vsyncpa %s5097, 1
    %5099 = vsyncpa [#allocation10], 1
    %5100 = vsyncpa [#allocation13], 1
    %5101 = vsyncpa [#allocation5], 1
    %s5102 = scalar_lea.sflag [#allocation5], 1
    %5103 = vsyncpa %s5102, 1

</llo_original>
